<compile_context>
chip_gen: v7x
topology: tpu7x:2x2x1
jax: 0.10.0
libtpu: 0.0.40
codegen_flags: <defaults>
</compile_context>

<pallas_src>
import functools

import jax
import jax.numpy as jnp
from jax.experimental import pallas as pl
from jax.experimental.pallas import tpu as pltpu

# PyTorch layer dims: (in_features, out_features)
LAYER_DIMS = [(1, 200), (200, 200), (200, 200), (200, 200), (200, 100)]


def _pad_dim(d):
    """Round a feature dim up to a multiple of 128 (keep the scalar input dim 1)."""
    return d if d == 1 else ((d + 127) // 128) * 128


def _model_std_kernel(xy_ref,
                      w1_ref, b1_ref, w2_ref, b2_ref, w3_ref, b3_ref,
                      w4_ref, b4_ref, w5_ref, b5_ref, o_ref):
    """One batch tile. xy_ref is a (1, 2*tb) lane-dense row of scalars [x | y]."""
    tb = xy_ref.shape[-1] // 2

    # Layer 1: Linear(1, 200) is a rank-1 outer product -> VPU broadcast, no MXU.
    # (256, 1) * (1, 2*tb) + (256, 1)  ->  (256, 2*tb)
    h = jnp.maximum(w1_ref[...] * xy_ref[...] + b1_ref[...], 0.0)

    # Layers 2-4: padded 256x256 matmuls on the MXU, batch on lanes, f32 acc.
    for w_ref, b_ref in ((w2_ref, b2_ref), (w3_ref, b3_ref), (w4_ref, b4_ref)):
        h = jnp.dot(w_ref[...], h, preferred_element_type=jnp.float32) + b_ref[...]
        h = jnp.maximum(h, 0.0)

    # Layer 5: 256 -> 128 (padded from 200 -> 100), no ReLU.
    h = jnp.dot(w5_ref[...], h, preferred_element_type=jnp.float32) + b5_ref[...]

    fx = h[:, :tb]          # (128, tb)  model(x) features (padded rows are 0)
    fy = h[:, tb:]          # (128, tb)  model(y) features
    # Per-batch-element dot product over the feature (sublane) axis gives a
    # lane-dense (1, tb) row -> full unmasked stores.
    o_ref[...] = jnp.sum(fx * fy, axis=0, keepdims=True)


def _pad_params(params):
    """Zero-pad PyTorch-layout params (w:(out,in), b:(out,)) to 128-aligned dims."""
    padded = []
    for i, (din, dout) in enumerate(LAYER_DIMS):
        w = params[2 * i].astype(jnp.float32)        # (dout, din)
        b = params[2 * i + 1].astype(jnp.float32)    # (dout,)
        dinp, doutp = _pad_dim(din), _pad_dim(dout)
        wp = jnp.zeros((doutp, dinp), jnp.float32).at[:dout, :din].set(w)
        bp = jnp.zeros((doutp, 1), jnp.float32).at[:dout, 0].set(b)
        padded += [wp, bp]
    return padded


@functools.partial(jax.jit, static_argnames=("tb",))
def model_std_forward(x, y, params, tb=256):
    """x, y: (N, 1) or (N,) float32. params: PyTorch-layout [w1,b1,...,w5,b5]
    with w_i of shape (out, in), b_i of shape (out,). Returns (N,) float32."""
    N = x.shape[0]
    x = x.reshape(N).astype(jnp.float32)
    y = y.reshape(N).astype(jnp.float32)

    # Pad the batch up to a multiple of the batch tile (extra rows discarded).
    n_pad = (-N) % tb
    if n_pad:
        x = jnp.pad(x, (0, n_pad))
        y = jnp.pad(y, (0, n_pad))
    npad = N + n_pad
    g = npad // tb

    # One lane-dense (1, 2*tb) row per grid step: [x tile | y tile].
    xy = jnp.concatenate(
        [x.reshape(g, 1, tb), y.reshape(g, 1, tb)], axis=2)   # (g, 1, 2*tb)

    padded_params = _pad_params(params)

    in_specs = [pl.BlockSpec((None, 1, 2 * tb), lambda i: (i, 0, 0))]
    for din, dout in LAYER_DIMS:
        dinp, doutp = _pad_dim(din), _pad_dim(dout)
        in_specs.append(pl.BlockSpec((doutp, dinp), lambda i: (0, 0)))  # weight
        in_specs.append(pl.BlockSpec((doutp, 1), lambda i: (0, 0)))     # bias
    out_spec = pl.BlockSpec((None, 1, tb), lambda i: (i, 0, 0))

    out = pl.pallas_call(
        _model_std_kernel,
        out_shape=jax.ShapeDtypeStruct((g, 1, tb), jnp.float32),
        grid_spec=pltpu.PrefetchScalarGridSpec(
            num_scalar_prefetch=0,
            grid=(g,),
            in_specs=in_specs,
            out_specs=out_spec,
        ),
        compiler_params=pltpu.CompilerParams(
            dimension_semantics=("parallel",),
        ),
    )(xy, *padded_params)
    return out.reshape(npad)[:N]


def init_params(key):
    """Deterministic init matching the PyTorch module's shapes (w:(out,in), b:(out,))."""
    params = []
    for (din, dout) in LAYER_DIMS:
        key, kw, kb = jax.random.split(key, 3)
        bound = 1.0 / (din ** 0.5)
        w = jax.random.uniform(kw, (dout, din), jnp.float32, -bound, bound)
        b = jax.random.uniform(kb, (dout,), jnp.float32, -bound, bound)
        params += [w, b]
    return params


def _mlp_ref(v, params):
    h = v
    n = len(LAYER_DIMS)
    for i in range(n):
        w, b = params[2 * i], params[2 * i + 1]
        h = h @ w.T + b
        if i < n - 1:
            h = jnp.maximum(h, 0.0)
    return h


def reference_forward(x, y, params):
    return jnp.sum(_mlp_ref(x, params) * _mlp_ref(y, params), axis=1)


if __name__ == "__main__":
    key = jax.random.PRNGKey(0)
    key, kx, ky = jax.random.split(key, 3)

    N = 1000  # the original model is fed 1000 rows of scalar inputs
    x = jax.random.normal(kx, (N, 1), jnp.float32)
    y = jax.random.normal(ky, (N, 1), jnp.float32)

    params = init_params(key)

    out = jax.block_until_ready(model_std_forward(x, y, params, tb=256))
    ref = reference_forward(x, y, params)

    assert out.shape == (N,)
    # Different (but valid) accumulation order vs the reference -> f32-level tolerance.
    assert jnp.allclose(out, ref, rtol=1e-3, atol=1e-3), "mismatch vs JAX reference"

    print("KERNEL_OK")
</pallas_src>

<mosaic_0001>
module attributes {stable_mosaic.version = 11 : i64} {
  func.func @_model_std_kernel(%arg0: i32, %arg1: memref<1x1x512xf32, #tpu.memory_space<vmem>>, %arg2: memref<256x1xf32, #tpu.memory_space<vmem>>, %arg3: memref<256x1xf32, #tpu.memory_space<vmem>>, %arg4: memref<256x256xf32, #tpu.memory_space<vmem>>, %arg5: memref<256x1xf32, #tpu.memory_space<vmem>>, %arg6: memref<256x256xf32, #tpu.memory_space<vmem>>, %arg7: memref<256x1xf32, #tpu.memory_space<vmem>>, %arg8: memref<256x256xf32, #tpu.memory_space<vmem>>, %arg9: memref<256x1xf32, #tpu.memory_space<vmem>>, %arg10: memref<128x256xf32, #tpu.memory_space<vmem>>, %arg11: memref<128x1xf32, #tpu.memory_space<vmem>>, %arg12: memref<1x1x256xf32, #tpu.memory_space<vmem>>) attributes {dimension_semantics = [#tpu.dimension_semantics<parallel>], iteration_bounds = array<i64: 4>, scalar_prefetch = 0 : i64, scratch_operands = 0 : i64, tpu.core_type = #tpu.core_type<tc>, window_params = [{transform_indices = @transform_0, window_bounds = array<i64: 1, 1, 512>}, {pipeline_mode = #tpu.pipeline_mode<synchronous>, transform_indices = @transform_1, window_bounds = array<i64: 256, 1>}, {pipeline_mode = #tpu.pipeline_mode<synchronous>, transform_indices = @transform_2, window_bounds = array<i64: 256, 1>}, {pipeline_mode = #tpu.pipeline_mode<synchronous>, transform_indices = @transform_3, window_bounds = array<i64: 256, 256>}, {pipeline_mode = #tpu.pipeline_mode<synchronous>, transform_indices = @transform_4, window_bounds = array<i64: 256, 1>}, {pipeline_mode = #tpu.pipeline_mode<synchronous>, transform_indices = @transform_5, window_bounds = array<i64: 256, 256>}, {pipeline_mode = #tpu.pipeline_mode<synchronous>, transform_indices = @transform_6, window_bounds = array<i64: 256, 1>}, {pipeline_mode = #tpu.pipeline_mode<synchronous>, transform_indices = @transform_7, window_bounds = array<i64: 256, 256>}, {pipeline_mode = #tpu.pipeline_mode<synchronous>, transform_indices = @transform_8, window_bounds = array<i64: 256, 1>}, {pipeline_mode = #tpu.pipeline_mode<synchronous>, transform_indices = @transform_9, window_bounds = array<i64: 128, 256>}, {pipeline_mode = #tpu.pipeline_mode<synchronous>, transform_indices = @transform_10, window_bounds = array<i64: 128, 1>}, {transform_indices = @transform_11, window_bounds = array<i64: 1, 1, 256>}]} {
    %c0 = arith.constant 0 : index
    %c0_0 = arith.constant 0 : index
    %0 = vector.load %arg2[%c0, %c0_0] : memref<256x1xf32, #tpu.memory_space<vmem>>, vector<256x1xf32>
    %c0_1 = arith.constant 0 : index
    %c0_2 = arith.constant 0 : index
    %c0_3 = arith.constant 0 : index
    %1 = vector.load %arg1[%c0_1, %c0_2, %c0_3] : memref<1x1x512xf32, #tpu.memory_space<vmem>>, vector<1x1x512xf32>
    %2 = vector.shape_cast %1 : vector<1x1x512xf32> to vector<1x512xf32>
    %3 = vector.broadcast %0 : vector<256x1xf32> to vector<256x512xf32>
    %4 = vector.broadcast %2 : vector<1x512xf32> to vector<256x512xf32>
    %5 = arith.mulf %3, %4 : vector<256x512xf32>
    %c0_4 = arith.constant 0 : index
    %c0_5 = arith.constant 0 : index
    %6 = vector.load %arg3[%c0_4, %c0_5] : memref<256x1xf32, #tpu.memory_space<vmem>>, vector<256x1xf32>
    %7 = vector.broadcast %6 : vector<256x1xf32> to vector<256x512xf32>
    %8 = arith.addf %5, %7 : vector<256x512xf32>
    %cst = arith.constant 0.000000e+00 : f32
    %9 = vector.broadcast %cst : f32 to vector<256x512xf32>
    %10 = arith.maximumf %8, %9 : vector<256x512xf32>
    %c0_6 = arith.constant 0 : index
    %c0_7 = arith.constant 0 : index
    %11 = vector.load %arg4[%c0_6, %c0_7] : memref<256x256xf32, #tpu.memory_space<vmem>>, vector<256x256xf32>
    %cst_8 = arith.constant dense<0.000000e+00> : vector<256x512xf32>
    %12 = tpu.matmul %11, %10, %cst_8 {dimension_numbers = #tpu.dot_dimension_numbers<[1], [0], [0], [1], [0, 0, 1, 1], [], []>} : vector<256x256xf32>, vector<256x512xf32>, vector<256x512xf32> -> vector<256x512xf32>
    %c0_9 = arith.constant 0 : index
    %c0_10 = arith.constant 0 : index
    %13 = vector.load %arg5[%c0_9, %c0_10] : memref<256x1xf32, #tpu.memory_space<vmem>>, vector<256x1xf32>
    %14 = vector.broadcast %13 : vector<256x1xf32> to vector<256x512xf32>
    %15 = arith.addf %12, %14 : vector<256x512xf32>
    %cst_11 = arith.constant 0.000000e+00 : f32
    %16 = vector.broadcast %cst_11 : f32 to vector<256x512xf32>
    %17 = arith.maximumf %15, %16 : vector<256x512xf32>
    %c0_12 = arith.constant 0 : index
    %c0_13 = arith.constant 0 : index
    %18 = vector.load %arg6[%c0_12, %c0_13] : memref<256x256xf32, #tpu.memory_space<vmem>>, vector<256x256xf32>
    %cst_14 = arith.constant dense<0.000000e+00> : vector<256x512xf32>
    %19 = tpu.matmul %18, %17, %cst_14 {dimension_numbers = #tpu.dot_dimension_numbers<[1], [0], [0], [1], [0, 0, 1, 1], [], []>} : vector<256x256xf32>, vector<256x512xf32>, vector<256x512xf32> -> vector<256x512xf32>
    %c0_15 = arith.constant 0 : index
    %c0_16 = arith.constant 0 : index
    %20 = vector.load %arg7[%c0_15, %c0_16] : memref<256x1xf32, #tpu.memory_space<vmem>>, vector<256x1xf32>
    %21 = vector.broadcast %20 : vector<256x1xf32> to vector<256x512xf32>
    %22 = arith.addf %19, %21 : vector<256x512xf32>
    %cst_17 = arith.constant 0.000000e+00 : f32
    %23 = vector.broadcast %cst_17 : f32 to vector<256x512xf32>
    %24 = arith.maximumf %22, %23 : vector<256x512xf32>
    %c0_18 = arith.constant 0 : index
    %c0_19 = arith.constant 0 : index
    %25 = vector.load %arg8[%c0_18, %c0_19] : memref<256x256xf32, #tpu.memory_space<vmem>>, vector<256x256xf32>
    %cst_20 = arith.constant dense<0.000000e+00> : vector<256x512xf32>
    %26 = tpu.matmul %25, %24, %cst_20 {dimension_numbers = #tpu.dot_dimension_numbers<[1], [0], [0], [1], [0, 0, 1, 1], [], []>} : vector<256x256xf32>, vector<256x512xf32>, vector<256x512xf32> -> vector<256x512xf32>
    %c0_21 = arith.constant 0 : index
    %c0_22 = arith.constant 0 : index
    %27 = vector.load %arg9[%c0_21, %c0_22] : memref<256x1xf32, #tpu.memory_space<vmem>>, vector<256x1xf32>
    %28 = vector.broadcast %27 : vector<256x1xf32> to vector<256x512xf32>
    %29 = arith.addf %26, %28 : vector<256x512xf32>
    %cst_23 = arith.constant 0.000000e+00 : f32
    %30 = vector.broadcast %cst_23 : f32 to vector<256x512xf32>
    %31 = arith.maximumf %29, %30 : vector<256x512xf32>
    %c0_24 = arith.constant 0 : index
    %c0_25 = arith.constant 0 : index
    %32 = vector.load %arg10[%c0_24, %c0_25] : memref<128x256xf32, #tpu.memory_space<vmem>>, vector<128x256xf32>
    %cst_26 = arith.constant dense<0.000000e+00> : vector<128x512xf32>
    %33 = tpu.matmul %32, %31, %cst_26 {dimension_numbers = #tpu.dot_dimension_numbers<[1], [0], [0], [1], [0, 0, 1, 1], [], []>} : vector<128x256xf32>, vector<256x512xf32>, vector<128x512xf32> -> vector<128x512xf32>
    %c0_27 = arith.constant 0 : index
    %c0_28 = arith.constant 0 : index
    %34 = vector.load %arg11[%c0_27, %c0_28] : memref<128x1xf32, #tpu.memory_space<vmem>>, vector<128x1xf32>
    %35 = vector.broadcast %34 : vector<128x1xf32> to vector<128x512xf32>
    %36 = arith.addf %33, %35 : vector<128x512xf32>
    %37 = vector.extract_strided_slice %36 {offsets = [0, 0], sizes = [128, 256], strides = [1, 1]} : vector<128x512xf32> to vector<128x256xf32>
    %38 = vector.extract_strided_slice %36 {offsets = [0, 256], sizes = [128, 256], strides = [1, 1]} : vector<128x512xf32> to vector<128x256xf32>
    %39 = arith.mulf %37, %38 : vector<128x256xf32>
    %cst_29 = arith.constant dense<0.000000e+00> : vector<256xf32>
    %40 = vector.multi_reduction <add>, %39, %cst_29 [0] : vector<128x256xf32> to vector<256xf32>
    %41 = vector.shape_cast %40 : vector<256xf32> to vector<1x256xf32>
    %c0_30 = arith.constant 0 : index
    %c0_31 = arith.constant 0 : index
    %c0_32 = arith.constant 0 : index
    %42 = vector.load %arg12[%c0_30, %c0_31, %c0_32] : memref<1x1x256xf32, #tpu.memory_space<vmem>>, vector<1x1x256xf32>
    %43 = vector.shape_cast %42 : vector<1x1x256xf32> to vector<1x256xf32>
    %44 = vector.shape_cast %41 : vector<1x256xf32> to vector<1x1x256xf32>
    tpu.vector_store %arg12[%c0_30, %c0_31, %c0_32], %44 {strides = array<i32>} : memref<1x1x256xf32, #tpu.memory_space<vmem>>, vector<1x1x256xf32>,
    return
  }
  func.func @transform_0(%arg0: i32) -> (i32, i32, i32) {
    %c0_i32 = arith.constant 0 : i32
    %c0_i32_0 = arith.constant 0 : i32
    %c0_i32_1 = arith.constant 0 : i32
    return %arg0, %c0_i32, %c0_i32_0 : i32, i32, i32
  }
  func.func @transform_1(%arg0: i32) -> (i32, i32) {
    %c0_i32 = arith.constant 0 : i32
    %c0_i32_0 = arith.constant 0 : i32
    %c0_i32_1 = arith.constant 0 : i32
    return %c0_i32, %c0_i32_0 : i32, i32
  }
  func.func @transform_2(%arg0: i32) -> (i32, i32) {
    %c0_i32 = arith.constant 0 : i32
    %c0_i32_0 = arith.constant 0 : i32
    %c0_i32_1 = arith.constant 0 : i32
    return %c0_i32, %c0_i32_0 : i32, i32
  }
  func.func @transform_3(%arg0: i32) -> (i32, i32) {
    %c0_i32 = arith.constant 0 : i32
    %c0_i32_0 = arith.constant 0 : i32
    %c0_i32_1 = arith.constant 0 : i32
    return %c0_i32, %c0_i32_0 : i32, i32
  }
  func.func @transform_4(%arg0: i32) -> (i32, i32) {
    %c0_i32 = arith.constant 0 : i32
    %c0_i32_0 = arith.constant 0 : i32
    %c0_i32_1 = arith.constant 0 : i32
    return %c0_i32, %c0_i32_0 : i32, i32
  }
  func.func @transform_5(%arg0: i32) -> (i32, i32) {
    %c0_i32 = arith.constant 0 : i32
    %c0_i32_0 = arith.constant 0 : i32
    %c0_i32_1 = arith.constant 0 : i32
    return %c0_i32, %c0_i32_0 : i32, i32
  }
  func.func @transform_6(%arg0: i32) -> (i32, i32) {
    %c0_i32 = arith.constant 0 : i32
    %c0_i32_0 = arith.constant 0 : i32
    %c0_i32_1 = arith.constant 0 : i32
    return %c0_i32, %c0_i32_0 : i32, i32
  }
  func.func @transform_7(%arg0: i32) -> (i32, i32) {
    %c0_i32 = arith.constant 0 : i32
    %c0_i32_0 = arith.constant 0 : i32
    %c0_i32_1 = arith.constant 0 : i32
    return %c0_i32, %c0_i32_0 : i32, i32
  }
  func.func @transform_8(%arg0: i32) -> (i32, i32) {
    %c0_i32 = arith.constant 0 : i32
    %c0_i32_0 = arith.constant 0 : i32
    %c0_i32_1 = arith.constant 0 : i32
    return %c0_i32, %c0_i32_0 : i32, i32
  }
  func.func @transform_9(%arg0: i32) -> (i32, i32) {
    %c0_i32 = arith.constant 0 : i32
    %c0_i32_0 = arith.constant 0 : i32
    %c0_i32_1 = arith.constant 0 : i32
    return %c0_i32, %c0_i32_0 : i32, i32
  }
  func.func @transform_10(%arg0: i32) -> (i32, i32) {
    %c0_i32 = arith.constant 0 : i32
    %c0_i32_0 = arith.constant 0 : i32
    %c0_i32_1 = arith.constant 0 : i32
    return %c0_i32, %c0_i32_0 : i32, i32
  }
  func.func @transform_11(%arg0: i32) -> (i32, i32, i32) {
    %c0_i32 = arith.constant 0 : i32
    %c0_i32_0 = arith.constant 0 : i32
    %c0_i32_1 = arith.constant 0 : i32
    return %arg0, %c0_i32, %c0_i32_0 : i32, i32, i32
  }
}

</mosaic_0001>

<llo_original>
// kernel: model_std_forward.1
$region0: #{model_std_forward.1}
  #allocation0 [shape = 'u32[]', space=smem, size = 0x4, offset = 0x4, fixed_abs, tag = 'smem constant byte address 0x4 - core index']
  #allocation1 [shape = 'u32[144,128]{1,0:T(1,128)}', space=vmem, size = 0x12000, scoped, tag = 'internal scratch']
  %s0 = inlined_call_operand.vmem [shape: f32[4,1,512], index: 0, kind: input, shape index: {}]
  %s1 = inlined_call_operand.vmem [shape: f32[256,1], index: 1, kind: input, shape index: {}]
  %s2 = inlined_call_operand.vmem [shape: f32[256,1], index: 2, kind: input, shape index: {}]
  %s3 = inlined_call_operand.vmem [shape: f32[256,256], index: 3, kind: input, shape index: {}]
  %s4 = inlined_call_operand.vmem [shape: f32[256,1], index: 4, kind: input, shape index: {}]
  %s5 = inlined_call_operand.vmem [shape: f32[256,256], index: 5, kind: input, shape index: {}]
  %s6 = inlined_call_operand.vmem [shape: f32[256,1], index: 6, kind: input, shape index: {}]
  %s7 = inlined_call_operand.vmem [shape: f32[256,256], index: 7, kind: input, shape index: {}]
  %s8 = inlined_call_operand.vmem [shape: f32[256,1], index: 8, kind: input, shape index: {}]
  %s9 = inlined_call_operand.vmem [shape: f32[128,256], index: 9, kind: input, shape index: {}]
  %s10 = inlined_call_operand.vmem [shape: f32[128,1], index: 10, kind: input, shape index: {}]
  %s11 = inlined_call_operand.hbm [shape: f32[4,1,256], index: 11, kind: output, shape index: {}]
  %s12 = sld [smem:[#allocation0]]
  $region77: #{model_std_forward.1} parent=0
    _
  %s14 = ssub.s32 1, %s12
  %s15 = scalar_select 0, %s14, %s12
  $region1: #{model_std_forward.1} parent=0
    #allocation2 [shape = 'u8[2048]{0}', space=vmem, size = 0x800, scoped, tag = 'output window, operand 0']
    #allocation3 [shape = 's32[2]{0}', space=sflag, size = 0x8, scoped, tag = 'scoped memory for model_std_forward.1']
    %16 = vsyncpa [#allocation3], 0
    %s17 = scalar_lea.sflag [#allocation3], 1
    %18 = vsyncpa %s17, 0
    loop: start=0, step=1, limit=6
    $region2: #{model_std_forward.1} parent=1 // loop_pre_header
      _
    $region3: #{model_std_forward.1} parent=1 // loop_header
      %s20 = sphi 0, %s24
      %p21 = scmp.ge.s32.totalorder %s20, 6
      %s30 = sphi 0, %s32
      %s33 = sphi 0, %s30
      %s34 = sphi 0, %s33
      %s50 = sphi 0, %s34
      %s54 = sphi 0, %s54
      %s56 = sphi 0, %s54
      %s57 = sphi 0, %s56
      %s71 = sphi 0, %s57
      %s75 = sphi 0, %s75
      %s77 = sphi 0, %s75
      %s78 = sphi 0, %s77
      %s92 = sphi 0, %s78
      %s96 = sphi 0, %s96
      %s98 = sphi 0, %s96
      %s99 = sphi 0, %s98
      %s113 = sphi 0, %s99
      %s117 = sphi 0, %s117
      %s119 = sphi 0, %s117
      %s120 = sphi 0, %s119
      %s134 = sphi 0, %s120
      %s138 = sphi 0, %s138
      %s140 = sphi 0, %s138
      %s141 = sphi 0, %s140
      %s155 = sphi 0, %s141
      %s159 = sphi 0, %s159
      %s161 = sphi 0, %s159
      %s162 = sphi 0, %s161
      %s176 = sphi 0, %s162
      %s180 = sphi 0, %s180
      %s182 = sphi 0, %s180
      %s183 = sphi 0, %s182
      %s197 = sphi 0, %s183
      %s201 = sphi 0, %s201
      %s203 = sphi 0, %s201
      %s204 = sphi 0, %s203
      %s218 = sphi 0, %s204
      %s222 = sphi 0, %s222
      %s224 = sphi 0, %s222
      %s225 = sphi 0, %s224
      %s239 = sphi 0, %s225
      %s243 = sphi 0, %s243
      %s245 = sphi 0, %s243
      %s246 = sphi 0, %s245
      %s260 = sphi 0, %s246
      %s266 = sphi 0, %s268
      %s269 = sphi 0, %s266
      %s270 = sphi 0, %s269
      %s286 = sphi 0, %s270
    $region4: #{model_std_forward.1} parent=1 // loop_header_branch
      %23 = sbr.rel (%p21) target = $region8
    $region5: #{model_std_forward.1} parent=1 // loop_body
      %s25 = ssub.s32 %s20, 1
      %s26 = ssub.s32 %s20, 2
      %s27 = sadd.s32 %s20, 1
      %s28 = ssub.s32 %s20, %s27
      %p29 = scmp.eq.s32.totalorder %s28, 0
      %s31 = sadd.s32 %s30, 1
      %s32 = scalar_select %p29, %s30, %s31
      %p35 = pneg %p29
      %p36 = scmp.eq.s32.totalorder %s20, 3
      %p37 = por %p35, %p36
      %p38 = scmp.ne.s32.totalorder %s30, %s33
      %p39 = scmp.eq.s32.totalorder %s20, 0
      %p40 = por %p38, %p39
      %p41 = scmp.ne.s32.totalorder %s30, %s33
      %p42 = scmp.eq.s32.totalorder %s25, 3
      %p43 = por %p41, %p42
      %p44 = scmp.ne.s32.totalorder %s33, %s34
      %p45 = scmp.eq.s32.totalorder %s25, 0
      %p46 = por %p44, %p45
      %p47 = scmp.ne.s32.totalorder %s33, %s34
      %p48 = scmp.eq.s32.totalorder %s26, 3
      %p49 = por %p47, %p48
      %p51 = scmp.ne.s32.totalorder %s34, %s50
      %p52 = scmp.eq.s32.totalorder %s26, 0
      %p53 = por %p51, %p52
      %s55 = sadd.s32 %s54, 1
      %p58 = scmp.eq.s32.totalorder %s20, 3
      %p59 = scmp.ne.s32.totalorder %s54, %s56
      %p60 = scmp.eq.s32.totalorder %s20, 0
      %p61 = por %p59, %p60
      %p62 = scmp.ne.s32.totalorder %s54, %s56
      %p63 = scmp.eq.s32.totalorder %s25, 3
      %p64 = por %p62, %p63
      %p65 = scmp.ne.s32.totalorder %s56, %s57
      %p66 = scmp.eq.s32.totalorder %s25, 0
      %p67 = por %p65, %p66
      %p68 = scmp.ne.s32.totalorder %s56, %s57
      %p69 = scmp.eq.s32.totalorder %s26, 3
      %p70 = por %p68, %p69
      %p72 = scmp.ne.s32.totalorder %s57, %s71
      %p73 = scmp.eq.s32.totalorder %s26, 0
      %p74 = por %p72, %p73
      %s76 = sadd.s32 %s75, 1
      %p79 = scmp.eq.s32.totalorder %s20, 3
      %p80 = scmp.ne.s32.totalorder %s75, %s77
      %p81 = scmp.eq.s32.totalorder %s20, 0
      %p82 = por %p80, %p81
      %p83 = scmp.ne.s32.totalorder %s75, %s77
      %p84 = scmp.eq.s32.totalorder %s25, 3
      %p85 = por %p83, %p84
      %p86 = scmp.ne.s32.totalorder %s77, %s78
      %p87 = scmp.eq.s32.totalorder %s25, 0
      %p88 = por %p86, %p87
      %p89 = scmp.ne.s32.totalorder %s77, %s78
      %p90 = scmp.eq.s32.totalorder %s26, 3
      %p91 = por %p89, %p90
      %p93 = scmp.ne.s32.totalorder %s78, %s92
      %p94 = scmp.eq.s32.totalorder %s26, 0
      %p95 = por %p93, %p94
      %s97 = sadd.s32 %s96, 1
      %p100 = scmp.eq.s32.totalorder %s20, 3
      %p101 = scmp.ne.s32.totalorder %s96, %s98
      %p102 = scmp.eq.s32.totalorder %s20, 0
      %p103 = por %p101, %p102
      %p104 = scmp.ne.s32.totalorder %s96, %s98
      %p105 = scmp.eq.s32.totalorder %s25, 3
      %p106 = por %p104, %p105
      %p107 = scmp.ne.s32.totalorder %s98, %s99
      %p108 = scmp.eq.s32.totalorder %s25, 0
      %p109 = por %p107, %p108
      %p110 = scmp.ne.s32.totalorder %s98, %s99
      %p111 = scmp.eq.s32.totalorder %s26, 3
      %p112 = por %p110, %p111
      %p114 = scmp.ne.s32.totalorder %s99, %s113
      %p115 = scmp.eq.s32.totalorder %s26, 0
      %p116 = por %p114, %p115
      %s118 = sadd.s32 %s117, 1
      %p121 = scmp.eq.s32.totalorder %s20, 3
      %p122 = scmp.ne.s32.totalorder %s117, %s119
      %p123 = scmp.eq.s32.totalorder %s20, 0
      %p124 = por %p122, %p123
      %p125 = scmp.ne.s32.totalorder %s117, %s119
      %p126 = scmp.eq.s32.totalorder %s25, 3
      %p127 = por %p125, %p126
      %p128 = scmp.ne.s32.totalorder %s119, %s120
      %p129 = scmp.eq.s32.totalorder %s25, 0
      %p130 = por %p128, %p129
      %p131 = scmp.ne.s32.totalorder %s119, %s120
      %p132 = scmp.eq.s32.totalorder %s26, 3
      %p133 = por %p131, %p132
      %p135 = scmp.ne.s32.totalorder %s120, %s134
      %p136 = scmp.eq.s32.totalorder %s26, 0
      %p137 = por %p135, %p136
      %s139 = sadd.s32 %s138, 1
      %p142 = scmp.eq.s32.totalorder %s20, 3
      %p143 = scmp.ne.s32.totalorder %s138, %s140
      %p144 = scmp.eq.s32.totalorder %s20, 0
      %p145 = por %p143, %p144
      %p146 = scmp.ne.s32.totalorder %s138, %s140
      %p147 = scmp.eq.s32.totalorder %s25, 3
      %p148 = por %p146, %p147
      %p149 = scmp.ne.s32.totalorder %s140, %s141
      %p150 = scmp.eq.s32.totalorder %s25, 0
      %p151 = por %p149, %p150
      %p152 = scmp.ne.s32.totalorder %s140, %s141
      %p153 = scmp.eq.s32.totalorder %s26, 3
      %p154 = por %p152, %p153
      %p156 = scmp.ne.s32.totalorder %s141, %s155
      %p157 = scmp.eq.s32.totalorder %s26, 0
      %p158 = por %p156, %p157
      %s160 = sadd.s32 %s159, 1
      %p163 = scmp.eq.s32.totalorder %s20, 3
      %p164 = scmp.ne.s32.totalorder %s159, %s161
      %p165 = scmp.eq.s32.totalorder %s20, 0
      %p166 = por %p164, %p165
      %p167 = scmp.ne.s32.totalorder %s159, %s161
      %p168 = scmp.eq.s32.totalorder %s25, 3
      %p169 = por %p167, %p168
      %p170 = scmp.ne.s32.totalorder %s161, %s162
      %p171 = scmp.eq.s32.totalorder %s25, 0
      %p172 = por %p170, %p171
      %p173 = scmp.ne.s32.totalorder %s161, %s162
      %p174 = scmp.eq.s32.totalorder %s26, 3
      %p175 = por %p173, %p174
      %p177 = scmp.ne.s32.totalorder %s162, %s176
      %p178 = scmp.eq.s32.totalorder %s26, 0
      %p179 = por %p177, %p178
      %s181 = sadd.s32 %s180, 1
      %p184 = scmp.eq.s32.totalorder %s20, 3
      %p185 = scmp.ne.s32.totalorder %s180, %s182
      %p186 = scmp.eq.s32.totalorder %s20, 0
      %p187 = por %p185, %p186
      %p188 = scmp.ne.s32.totalorder %s180, %s182
      %p189 = scmp.eq.s32.totalorder %s25, 3
      %p190 = por %p188, %p189
      %p191 = scmp.ne.s32.totalorder %s182, %s183
      %p192 = scmp.eq.s32.totalorder %s25, 0
      %p193 = por %p191, %p192
      %p194 = scmp.ne.s32.totalorder %s182, %s183
      %p195 = scmp.eq.s32.totalorder %s26, 3
      %p196 = por %p194, %p195
      %p198 = scmp.ne.s32.totalorder %s183, %s197
      %p199 = scmp.eq.s32.totalorder %s26, 0
      %p200 = por %p198, %p199
      %s202 = sadd.s32 %s201, 1
      %p205 = scmp.eq.s32.totalorder %s20, 3
      %p206 = scmp.ne.s32.totalorder %s201, %s203
      %p207 = scmp.eq.s32.totalorder %s20, 0
      %p208 = por %p206, %p207
      %p209 = scmp.ne.s32.totalorder %s201, %s203
      %p210 = scmp.eq.s32.totalorder %s25, 3
      %p211 = por %p209, %p210
      %p212 = scmp.ne.s32.totalorder %s203, %s204
      %p213 = scmp.eq.s32.totalorder %s25, 0
      %p214 = por %p212, %p213
      %p215 = scmp.ne.s32.totalorder %s203, %s204
      %p216 = scmp.eq.s32.totalorder %s26, 3
      %p217 = por %p215, %p216
      %p219 = scmp.ne.s32.totalorder %s204, %s218
      %p220 = scmp.eq.s32.totalorder %s26, 0
      %p221 = por %p219, %p220
      %s223 = sadd.s32 %s222, 1
      %p226 = scmp.eq.s32.totalorder %s20, 3
      %p227 = scmp.ne.s32.totalorder %s222, %s224
      %p228 = scmp.eq.s32.totalorder %s20, 0
      %p229 = por %p227, %p228
      %p230 = scmp.ne.s32.totalorder %s222, %s224
      %p231 = scmp.eq.s32.totalorder %s25, 3
      %p232 = por %p230, %p231
      %p233 = scmp.ne.s32.totalorder %s224, %s225
      %p234 = scmp.eq.s32.totalorder %s25, 0
      %p235 = por %p233, %p234
      %p236 = scmp.ne.s32.totalorder %s224, %s225
      %p237 = scmp.eq.s32.totalorder %s26, 3
      %p238 = por %p236, %p237
      %p240 = scmp.ne.s32.totalorder %s225, %s239
      %p241 = scmp.eq.s32.totalorder %s26, 0
      %p242 = por %p240, %p241
      %s244 = sadd.s32 %s243, 1
      %p247 = scmp.eq.s32.totalorder %s20, 3
      %p248 = scmp.ne.s32.totalorder %s243, %s245
      %p249 = scmp.eq.s32.totalorder %s20, 0
      %p250 = por %p248, %p249
      %p251 = scmp.ne.s32.totalorder %s243, %s245
      %p252 = scmp.eq.s32.totalorder %s25, 3
      %p253 = por %p251, %p252
      %p254 = scmp.ne.s32.totalorder %s245, %s246
      %p255 = scmp.eq.s32.totalorder %s25, 0
      %p256 = por %p254, %p255
      %p257 = scmp.ne.s32.totalorder %s245, %s246
      %p258 = scmp.eq.s32.totalorder %s26, 3
      %p259 = por %p257, %p258
      %p261 = scmp.ne.s32.totalorder %s246, %s260
      %p262 = scmp.eq.s32.totalorder %s26, 0
      %p263 = por %p261, %p262
      %s264 = ssub.s32 %s20, %s27
      %p265 = scmp.eq.s32.totalorder %s264, 0
      %s267 = sadd.s32 %s266, 1
      %s268 = scalar_select %p265, %s266, %s267
      %p271 = pneg %p265
      %p272 = scmp.eq.s32.totalorder %s20, 3
      %p273 = por %p271, %p272
      %p274 = scmp.ne.s32.totalorder %s266, %s269
      %p275 = scmp.eq.s32.totalorder %s20, 0
      %p276 = por %p274, %p275
      %p277 = scmp.ne.s32.totalorder %s266, %s269
      %p278 = scmp.eq.s32.totalorder %s25, 3
      %p279 = por %p277, %p278
      %p280 = scmp.ne.s32.totalorder %s269, %s270
      %p281 = scmp.eq.s32.totalorder %s25, 0
      %p282 = por %p280, %p281
      %p283 = scmp.ne.s32.totalorder %s269, %s270
      %p284 = scmp.eq.s32.totalorder %s26, 3
      %p285 = por %p283, %p284
      %p287 = scmp.ne.s32.totalorder %s270, %s286
      %p288 = scmp.eq.s32.totalorder %s26, 0
      %p289 = por %p287, %p288
      %p290 = scmp.le.s32.totalorder 1, %s20
      %p291 = scmp.lt.s32.totalorder %s20, 5
      %p292 = pnand %p290, %p291
      %p293 = pneg %p292
      // Predicated region
      $region9: #{model_std_forward.1} parent=5 // pred_check
        _
      $region10: #{model_std_forward.1} parent=5 // pred_check_branch
        %295 = sbr.rel (%p292) target = $region12
      $region11: #{model_std_forward.1} parent=5 // pred_region
        %s296 = ssub.s32 %s20, 1
        // Predicated region
        $region13: #{model_std_forward.1} parent=11 // pred_check
          %p297 = pneg %p67
        $region14: #{model_std_forward.1} parent=11 // pred_check_branch
          %299 = sbr.rel (%p297) target = $region16
        $region15: #{model_std_forward.1} parent=11 // pred_region
          _
        $region16: #{model_std_forward.1} parent=11 // pred_fallthru
          _
        // Predicated region
        $region17: #{model_std_forward.1} parent=11 // pred_check
          %p300 = pneg %p88
        $region18: #{model_std_forward.1} parent=11 // pred_check_branch
          %302 = sbr.rel (%p300) target = $region20
        $region19: #{model_std_forward.1} parent=11 // pred_region
          _
        $region20: #{model_std_forward.1} parent=11 // pred_fallthru
          _
        // Predicated region
        $region21: #{model_std_forward.1} parent=11 // pred_check
          %p303 = pneg %p109
        $region22: #{model_std_forward.1} parent=11 // pred_check_branch
          %305 = sbr.rel (%p303) target = $region24
        $region23: #{model_std_forward.1} parent=11 // pred_region
          _
        $region24: #{model_std_forward.1} parent=11 // pred_fallthru
          _
        // Predicated region
        $region25: #{model_std_forward.1} parent=11 // pred_check
          %p306 = pneg %p130
        $region26: #{model_std_forward.1} parent=11 // pred_check_branch
          %308 = sbr.rel (%p306) target = $region28
        $region27: #{model_std_forward.1} parent=11 // pred_region
          _
        $region28: #{model_std_forward.1} parent=11 // pred_fallthru
          _
        // Predicated region
        $region29: #{model_std_forward.1} parent=11 // pred_check
          %p309 = pneg %p151
        $region30: #{model_std_forward.1} parent=11 // pred_check_branch
          %311 = sbr.rel (%p309) target = $region32
        $region31: #{model_std_forward.1} parent=11 // pred_region
          _
        $region32: #{model_std_forward.1} parent=11 // pred_fallthru
          _
        // Predicated region
        $region33: #{model_std_forward.1} parent=11 // pred_check
          %p312 = pneg %p172
        $region34: #{model_std_forward.1} parent=11 // pred_check_branch
          %314 = sbr.rel (%p312) target = $region36
        $region35: #{model_std_forward.1} parent=11 // pred_region
          _
        $region36: #{model_std_forward.1} parent=11 // pred_fallthru
          _
        // Predicated region
        $region37: #{model_std_forward.1} parent=11 // pred_check
          %p315 = pneg %p193
        $region38: #{model_std_forward.1} parent=11 // pred_check_branch
          %317 = sbr.rel (%p315) target = $region40
        $region39: #{model_std_forward.1} parent=11 // pred_region
          _
        $region40: #{model_std_forward.1} parent=11 // pred_fallthru
          _
        // Predicated region
        $region41: #{model_std_forward.1} parent=11 // pred_check
          %p318 = pneg %p214
        $region42: #{model_std_forward.1} parent=11 // pred_check_branch
          %320 = sbr.rel (%p318) target = $region44
        $region43: #{model_std_forward.1} parent=11 // pred_region
          _
        $region44: #{model_std_forward.1} parent=11 // pred_fallthru
          _
        // Predicated region
        $region45: #{model_std_forward.1} parent=11 // pred_check
          %p321 = pneg %p235
        $region46: #{model_std_forward.1} parent=11 // pred_check_branch
          %323 = sbr.rel (%p321) target = $region48
        $region47: #{model_std_forward.1} parent=11 // pred_region
          _
        $region48: #{model_std_forward.1} parent=11 // pred_fallthru
          _
        // Predicated region
        $region49: #{model_std_forward.1} parent=11 // pred_check
          %p324 = pneg %p256
        $region50: #{model_std_forward.1} parent=11 // pred_check_branch
          %326 = sbr.rel (%p324) target = $region52
        $region51: #{model_std_forward.1} parent=11 // pred_region
          _
        $region52: #{model_std_forward.1} parent=11 // pred_fallthru
          _
      $region12: #{model_std_forward.1} parent=5 // pred_fallthru
        _
      %p327 = scmp.lt.s32.totalorder %s20, 4
      // Predicated region
      $region53: #{model_std_forward.1} parent=5 // pred_check
        %p328 = pneg %p327
      $region54: #{model_std_forward.1} parent=5 // pred_check_branch
        %330 = sbr.rel (%p328) target = $region56
      $region55: #{model_std_forward.1} parent=5 // pred_region
        // Predicated region
        $region57: #{model_std_forward.1} parent=55 // pred_check
          %p331 = pneg %p40
        $region58: #{model_std_forward.1} parent=55 // pred_check_branch
          %333 = sbr.rel (%p331) target = $region60
        $region59: #{model_std_forward.1} parent=55 // pred_region
          %p334 = scmp.lt.s32.totalorder %s20, 3
          %s335 = scalar_select %p334, %s20, 3
          %s336 = smul.addr %s335, 4
          %s337 = scalar_lea.vmem %s0, %s336
        $region60: #{model_std_forward.1} parent=55 // pred_fallthru
          _
      $region56: #{model_std_forward.1} parent=5 // pred_fallthru
        _
      %p338 = scmp.le.s32.totalorder 1, %s20
      %p339 = scmp.lt.s32.totalorder %s20, 5
      %p340 = pnand %p338, %p339
      %p341 = pneg %p340
      // Predicated region
      $region61: #{model_std_forward.1} parent=5 // pred_check
        _
      $region62: #{model_std_forward.1} parent=5 // pred_check_branch
        %343 = sbr.rel (%p340) target = $region64
      $region63: #{model_std_forward.1} parent=5 // pred_region
        %s344 = ssub.s32 %s20, 1
        %p345 = scmp.lt.s32.totalorder %s25, 3
        %s346 = scalar_select %p345, %s25, 3
        %s347 = smul.addr %s346, 4
        %s348 = scalar_lea.vmem %s0, %s347
        %p349 = pneg %p46
        %p350 = pneg %p43
        %p351 = pneg %p67
        %p352 = pneg %p64
        %p353 = pneg %p88
        %p354 = pneg %p85
        %p355 = pneg %p109
        %p356 = pneg %p106
        %p357 = pneg %p130
        %p358 = pneg %p127
        %p359 = pneg %p151
        %p360 = pneg %p148
        %p361 = pneg %p172
        %p362 = pneg %p169
        %p363 = pneg %p193
        %p364 = pneg %p190
        %p365 = pneg %p214
        %p366 = pneg %p211
        %p367 = pneg %p235
        %p368 = pneg %p232
        %p369 = pneg %p256
        %p370 = pneg %p253
        %p371 = pneg %p282
        %p372 = pneg %p279
        %s373 = sand.u32 %s269, 1
        %s374 = scalar_lea.sflag [#allocation3], %s373
        %s375 = sand.u32 %s269, 1
        %s376 = smul.addr %s375, 2
        %s377 = scalar_lea.vmem [#allocation2], %s376
        %p378 = scmp.lt.s32.totalorder %s25, 3
        %s379 = scalar_select %p378, %s25, 3
        %s380 = smul.addr %s379, 4
        %s381 = scalar_lea.vmem %s0, %s380
        %v382 = vld [vmem:[%s1] sm:$0xff]
        %v383 = vld [vmem:[%s1 + $0x8] sm:$0xff]
        %v384 = vld [vmem:[%s1 + $0x10] sm:$0xff]
        %v385 = vld [vmem:[%s1 + $0x18] sm:$0xff]
        %v386 = vld [vmem:[%s1 + $0x20] sm:$0xff]
        %v387 = vld [vmem:[%s1 + $0x28] sm:$0xff]
        %v388 = vld [vmem:[%s1 + $0x30] sm:$0xff]
        %v389 = vld [vmem:[%s1 + $0x38] sm:$0xff]
        %v390 = vld [vmem:[%s1 + $0x40] sm:$0xff]
        %v391 = vld [vmem:[%s1 + $0x48] sm:$0xff]
        %v392 = vld [vmem:[%s1 + $0x50] sm:$0xff]
        %v393 = vld [vmem:[%s1 + $0x58] sm:$0xff]
        %v394 = vld [vmem:[%s1 + $0x60] sm:$0xff]
        %v395 = vld [vmem:[%s1 + $0x68] sm:$0xff]
        %v396 = vld [vmem:[%s1 + $0x70] sm:$0xff]
        %v397 = vld [vmem:[%s1 + $0x78] sm:$0xff]
        %v398 = vld [vmem:[%s1 + $0x80] sm:$0xff]
        %v399 = vld [vmem:[%s1 + $0x88] sm:$0xff]
        %v400 = vld [vmem:[%s1 + $0x90] sm:$0xff]
        %v401 = vld [vmem:[%s1 + $0x98] sm:$0xff]
        %v402 = vld [vmem:[%s1 + $0xa0] sm:$0xff]
        %v403 = vld [vmem:[%s1 + $0xa8] sm:$0xff]
        %v404 = vld [vmem:[%s1 + $0xb0] sm:$0xff]
        %v405 = vld [vmem:[%s1 + $0xb8] sm:$0xff]
        %v406 = vld [vmem:[%s1 + $0xc0] sm:$0xff]
        %v407 = vld [vmem:[%s1 + $0xc8] sm:$0xff]
        %v408 = vld [vmem:[%s1 + $0xd0] sm:$0xff]
        %v409 = vld [vmem:[%s1 + $0xd8] sm:$0xff]
        %v410 = vld [vmem:[%s1 + $0xe0] sm:$0xff]
        %v411 = vld [vmem:[%s1 + $0xe8] sm:$0xff]
        %v412 = vld [vmem:[%s1 + $0xf0] sm:$0xff]
        %v413 = vld [vmem:[%s1 + $0xf8] sm:$0xff]
        %v414 = vld [vmem:[%s381] sm:$0xf]
        %416 = vset.pattern.permute.xlu0 0
        %417 = vperm.xlu0 %416, %v382
        %v418 = vpop.permute.xlu0 %417
        %421 = vset.pattern.permute.xlu0 0
        %422 = vperm.xlu0 %421, %v383
        %v423 = vpop.permute.xlu0 %422
        %426 = vset.pattern.permute.xlu0 0
        %427 = vperm.xlu0 %426, %v384
        %v428 = vpop.permute.xlu0 %427
        %431 = vset.pattern.permute.xlu0 0
        %432 = vperm.xlu0 %431, %v385
        %v433 = vpop.permute.xlu0 %432
        %436 = vset.pattern.permute.xlu0 0
        %437 = vperm.xlu0 %436, %v386
        %v438 = vpop.permute.xlu0 %437
        %441 = vset.pattern.permute.xlu0 0
        %442 = vperm.xlu0 %441, %v387
        %v443 = vpop.permute.xlu0 %442
        %446 = vset.pattern.permute.xlu0 0
        %447 = vperm.xlu0 %446, %v388
        %v448 = vpop.permute.xlu0 %447
        %451 = vset.pattern.permute.xlu0 0
        %452 = vperm.xlu0 %451, %v389
        %v453 = vpop.permute.xlu0 %452
        %456 = vset.pattern.permute.xlu0 0
        %457 = vperm.xlu0 %456, %v390
        %v458 = vpop.permute.xlu0 %457
        %461 = vset.pattern.permute.xlu0 0
        %462 = vperm.xlu0 %461, %v391
        %v463 = vpop.permute.xlu0 %462
        %466 = vset.pattern.permute.xlu0 0
        %467 = vperm.xlu0 %466, %v392
        %v468 = vpop.permute.xlu0 %467
        %471 = vset.pattern.permute.xlu0 0
        %472 = vperm.xlu0 %471, %v393
        %v473 = vpop.permute.xlu0 %472
        %476 = vset.pattern.permute.xlu0 0
        %477 = vperm.xlu0 %476, %v394
        %v478 = vpop.permute.xlu0 %477
        %481 = vset.pattern.permute.xlu0 0
        %482 = vperm.xlu0 %481, %v395
        %v483 = vpop.permute.xlu0 %482
        %486 = vset.pattern.permute.xlu0 0
        %487 = vperm.xlu0 %486, %v396
        %v488 = vpop.permute.xlu0 %487
        %491 = vset.pattern.permute.xlu0 0
        %492 = vperm.xlu0 %491, %v397
        %v493 = vpop.permute.xlu0 %492
        %496 = vset.pattern.permute.xlu0 0
        %497 = vperm.xlu0 %496, %v398
        %v498 = vpop.permute.xlu0 %497
        %501 = vset.pattern.permute.xlu0 0
        %502 = vperm.xlu0 %501, %v399
        %v503 = vpop.permute.xlu0 %502
        %506 = vset.pattern.permute.xlu0 0
        %507 = vperm.xlu0 %506, %v400
        %v508 = vpop.permute.xlu0 %507
        %511 = vset.pattern.permute.xlu0 0
        %512 = vperm.xlu0 %511, %v401
        %v513 = vpop.permute.xlu0 %512
        %516 = vset.pattern.permute.xlu0 0
        %517 = vperm.xlu0 %516, %v402
        %v518 = vpop.permute.xlu0 %517
        %521 = vset.pattern.permute.xlu0 0
        %522 = vperm.xlu0 %521, %v403
        %v523 = vpop.permute.xlu0 %522
        %526 = vset.pattern.permute.xlu0 0
        %527 = vperm.xlu0 %526, %v404
        %v528 = vpop.permute.xlu0 %527
        %531 = vset.pattern.permute.xlu0 0
        %532 = vperm.xlu0 %531, %v405
        %v533 = vpop.permute.xlu0 %532
        %536 = vset.pattern.permute.xlu0 0
        %537 = vperm.xlu0 %536, %v406
        %v538 = vpop.permute.xlu0 %537
        %541 = vset.pattern.permute.xlu0 0
        %542 = vperm.xlu0 %541, %v407
        %v543 = vpop.permute.xlu0 %542
        %546 = vset.pattern.permute.xlu0 0
        %547 = vperm.xlu0 %546, %v408
        %v548 = vpop.permute.xlu0 %547
        %551 = vset.pattern.permute.xlu0 0
        %552 = vperm.xlu0 %551, %v409
        %v553 = vpop.permute.xlu0 %552
        %556 = vset.pattern.permute.xlu0 0
        %557 = vperm.xlu0 %556, %v410
        %v558 = vpop.permute.xlu0 %557
        %561 = vset.pattern.permute.xlu0 0
        %562 = vperm.xlu0 %561, %v411
        %v563 = vpop.permute.xlu0 %562
        %566 = vset.pattern.permute.xlu0 0
        %567 = vperm.xlu0 %566, %v412
        %v568 = vpop.permute.xlu0 %567
        %571 = vset.pattern.permute.xlu0 0
        %572 = vperm.xlu0 %571, %v413
        %v573 = vpop.permute.xlu0 %572
        %v576 = vlaneseq
        %v577 = vshrl.u32 %v576, 7
        %v578 = vsub.s32 0, %v577
        %v579 = vrot.slane %v414, %v578
        %v580 = vlaneseq
        %v581 = vshrl.u32 %v580, 7
        %v582 = vsub.s32 1, %v581
        %v583 = vrot.slane %v414, %v582
        %v584 = vlaneseq
        %v585 = vshrl.u32 %v584, 7
        %v586 = vsub.s32 2, %v585
        %v587 = vrot.slane %v414, %v586
        %v588 = vlaneseq
        %v589 = vshrl.u32 %v588, 7
        %v590 = vsub.s32 3, %v589
        %v591 = vrot.slane %v414, %v590
        %v596 = vmul.f32 %v418, %v579
        %v597 = vmul.f32 %v418, %v583
        %v598 = vmul.f32 %v418, %v587
        %v599 = vmul.f32 %v418, %v591
        %v600 = vmul.f32 %v423, %v579
        %v601 = vmul.f32 %v423, %v583
        %v602 = vmul.f32 %v423, %v587
        %v603 = vmul.f32 %v423, %v591
        %v604 = vmul.f32 %v428, %v579
        %v605 = vmul.f32 %v428, %v583
        %v606 = vmul.f32 %v428, %v587
        %v607 = vmul.f32 %v428, %v591
        %v608 = vmul.f32 %v433, %v579
        %v609 = vmul.f32 %v433, %v583
        %v610 = vmul.f32 %v433, %v587
        %v611 = vmul.f32 %v433, %v591
        %v612 = vmul.f32 %v438, %v579
        %v613 = vmul.f32 %v438, %v583
        %v614 = vmul.f32 %v438, %v587
        %v615 = vmul.f32 %v438, %v591
        %v616 = vmul.f32 %v443, %v579
        %v617 = vmul.f32 %v443, %v583
        %v618 = vmul.f32 %v443, %v587
        %v619 = vmul.f32 %v443, %v591
        %v620 = vmul.f32 %v448, %v579
        %v621 = vmul.f32 %v448, %v583
        %v622 = vmul.f32 %v448, %v587
        %v623 = vmul.f32 %v448, %v591
        %v624 = vmul.f32 %v453, %v579
        %v625 = vmul.f32 %v453, %v583
        %v626 = vmul.f32 %v453, %v587
        %v627 = vmul.f32 %v453, %v591
        %v628 = vmul.f32 %v458, %v579
        %v629 = vmul.f32 %v458, %v583
        %v630 = vmul.f32 %v458, %v587
        %v631 = vmul.f32 %v458, %v591
        %v632 = vmul.f32 %v463, %v579
        %v633 = vmul.f32 %v463, %v583
        %v634 = vmul.f32 %v463, %v587
        %v635 = vmul.f32 %v463, %v591
        %v636 = vmul.f32 %v468, %v579
        %v637 = vmul.f32 %v468, %v583
        %v638 = vmul.f32 %v468, %v587
        %v639 = vmul.f32 %v468, %v591
        %v640 = vmul.f32 %v473, %v579
        %v641 = vmul.f32 %v473, %v583
        %v642 = vmul.f32 %v473, %v587
        %v643 = vmul.f32 %v473, %v591
        %v644 = vmul.f32 %v478, %v579
        %v645 = vmul.f32 %v478, %v583
        %v646 = vmul.f32 %v478, %v587
        %v647 = vmul.f32 %v478, %v591
        %v648 = vmul.f32 %v483, %v579
        %v649 = vmul.f32 %v483, %v583
        %v650 = vmul.f32 %v483, %v587
        %v651 = vmul.f32 %v483, %v591
        %v652 = vmul.f32 %v488, %v579
        %v653 = vmul.f32 %v488, %v583
        %v654 = vmul.f32 %v488, %v587
        %v655 = vmul.f32 %v488, %v591
        %v656 = vmul.f32 %v493, %v579
        %v657 = vmul.f32 %v493, %v583
        %v658 = vmul.f32 %v493, %v587
        %v659 = vmul.f32 %v493, %v591
        %v660 = vmul.f32 %v498, %v579
        %v661 = vmul.f32 %v498, %v583
        %v662 = vmul.f32 %v498, %v587
        %v663 = vmul.f32 %v498, %v591
        %v664 = vmul.f32 %v503, %v579
        %v665 = vmul.f32 %v503, %v583
        %v666 = vmul.f32 %v503, %v587
        %v667 = vmul.f32 %v503, %v591
        %v668 = vmul.f32 %v508, %v579
        %v669 = vmul.f32 %v508, %v583
        %v670 = vmul.f32 %v508, %v587
        %v671 = vmul.f32 %v508, %v591
        %v672 = vmul.f32 %v513, %v579
        %v673 = vmul.f32 %v513, %v583
        %v674 = vmul.f32 %v513, %v587
        %v675 = vmul.f32 %v513, %v591
        %v676 = vmul.f32 %v518, %v579
        %v677 = vmul.f32 %v518, %v583
        %v678 = vmul.f32 %v518, %v587
        %v679 = vmul.f32 %v518, %v591
        %v680 = vmul.f32 %v523, %v579
        %v681 = vmul.f32 %v523, %v583
        %v682 = vmul.f32 %v523, %v587
        %v683 = vmul.f32 %v523, %v591
        %v684 = vmul.f32 %v528, %v579
        %v685 = vmul.f32 %v528, %v583
        %v686 = vmul.f32 %v528, %v587
        %v687 = vmul.f32 %v528, %v591
        %v688 = vmul.f32 %v533, %v579
        %v689 = vmul.f32 %v533, %v583
        %v690 = vmul.f32 %v533, %v587
        %v691 = vmul.f32 %v533, %v591
        %v692 = vmul.f32 %v538, %v579
        %v693 = vmul.f32 %v538, %v583
        %v694 = vmul.f32 %v538, %v587
        %v695 = vmul.f32 %v538, %v591
        %v696 = vmul.f32 %v543, %v579
        %v697 = vmul.f32 %v543, %v583
        %v698 = vmul.f32 %v543, %v587
        %v699 = vmul.f32 %v543, %v591
        %v700 = vmul.f32 %v548, %v579
        %v701 = vmul.f32 %v548, %v583
        %v702 = vmul.f32 %v548, %v587
        %v703 = vmul.f32 %v548, %v591
        %v704 = vmul.f32 %v553, %v579
        %v705 = vmul.f32 %v553, %v583
        %v706 = vmul.f32 %v553, %v587
        %v707 = vmul.f32 %v553, %v591
        %v708 = vmul.f32 %v558, %v579
        %v709 = vmul.f32 %v558, %v583
        %v710 = vmul.f32 %v558, %v587
        %v711 = vmul.f32 %v558, %v591
        %v712 = vmul.f32 %v563, %v579
        %v713 = vmul.f32 %v563, %v583
        %v714 = vmul.f32 %v563, %v587
        %v715 = vmul.f32 %v563, %v591
        %v716 = vmul.f32 %v568, %v579
        %v717 = vmul.f32 %v568, %v583
        %v718 = vmul.f32 %v568, %v587
        %v719 = vmul.f32 %v568, %v591
        %v720 = vmul.f32 %v573, %v579
        %v721 = vmul.f32 %v573, %v583
        %v722 = vmul.f32 %v573, %v587
        %v723 = vmul.f32 %v573, %v591
        %v724 = vld [vmem:[%s2] sm:$0xff]
        %v725 = vld [vmem:[%s2 + $0x8] sm:$0xff]
        %v726 = vld [vmem:[%s2 + $0x10] sm:$0xff]
        %v727 = vld [vmem:[%s2 + $0x18] sm:$0xff]
        %v728 = vld [vmem:[%s2 + $0x20] sm:$0xff]
        %v729 = vld [vmem:[%s2 + $0x28] sm:$0xff]
        %v730 = vld [vmem:[%s2 + $0x30] sm:$0xff]
        %v731 = vld [vmem:[%s2 + $0x38] sm:$0xff]
        %v732 = vld [vmem:[%s2 + $0x40] sm:$0xff]
        %v733 = vld [vmem:[%s2 + $0x48] sm:$0xff]
        %v734 = vld [vmem:[%s2 + $0x50] sm:$0xff]
        %v735 = vld [vmem:[%s2 + $0x58] sm:$0xff]
        %v736 = vld [vmem:[%s2 + $0x60] sm:$0xff]
        %v737 = vld [vmem:[%s2 + $0x68] sm:$0xff]
        %v738 = vld [vmem:[%s2 + $0x70] sm:$0xff]
        %v739 = vld [vmem:[%s2 + $0x78] sm:$0xff]
        %v740 = vld [vmem:[%s2 + $0x80] sm:$0xff]
        %v741 = vld [vmem:[%s2 + $0x88] sm:$0xff]
        %v742 = vld [vmem:[%s2 + $0x90] sm:$0xff]
        %v743 = vld [vmem:[%s2 + $0x98] sm:$0xff]
        %v744 = vld [vmem:[%s2 + $0xa0] sm:$0xff]
        %v745 = vld [vmem:[%s2 + $0xa8] sm:$0xff]
        %v746 = vld [vmem:[%s2 + $0xb0] sm:$0xff]
        %v747 = vld [vmem:[%s2 + $0xb8] sm:$0xff]
        %v748 = vld [vmem:[%s2 + $0xc0] sm:$0xff]
        %v749 = vld [vmem:[%s2 + $0xc8] sm:$0xff]
        %v750 = vld [vmem:[%s2 + $0xd0] sm:$0xff]
        %v751 = vld [vmem:[%s2 + $0xd8] sm:$0xff]
        %v752 = vld [vmem:[%s2 + $0xe0] sm:$0xff]
        %v753 = vld [vmem:[%s2 + $0xe8] sm:$0xff]
        %v754 = vld [vmem:[%s2 + $0xf0] sm:$0xff]
        %v755 = vld [vmem:[%s2 + $0xf8] sm:$0xff]
        %757 = vset.pattern.permute.xlu0 0
        %758 = vperm.xlu0 %757, %v724
        %v759 = vpop.permute.xlu0 %758
        %762 = vset.pattern.permute.xlu0 0
        %763 = vperm.xlu0 %762, %v725
        %v764 = vpop.permute.xlu0 %763
        %767 = vset.pattern.permute.xlu0 0
        %768 = vperm.xlu0 %767, %v726
        %v769 = vpop.permute.xlu0 %768
        %772 = vset.pattern.permute.xlu0 0
        %773 = vperm.xlu0 %772, %v727
        %v774 = vpop.permute.xlu0 %773
        %777 = vset.pattern.permute.xlu0 0
        %778 = vperm.xlu0 %777, %v728
        %v779 = vpop.permute.xlu0 %778
        %782 = vset.pattern.permute.xlu0 0
        %783 = vperm.xlu0 %782, %v729
        %v784 = vpop.permute.xlu0 %783
        %787 = vset.pattern.permute.xlu0 0
        %788 = vperm.xlu0 %787, %v730
        %v789 = vpop.permute.xlu0 %788
        %792 = vset.pattern.permute.xlu0 0
        %793 = vperm.xlu0 %792, %v731
        %v794 = vpop.permute.xlu0 %793
        %797 = vset.pattern.permute.xlu0 0
        %798 = vperm.xlu0 %797, %v732
        %v799 = vpop.permute.xlu0 %798
        %802 = vset.pattern.permute.xlu0 0
        %803 = vperm.xlu0 %802, %v733
        %v804 = vpop.permute.xlu0 %803
        %807 = vset.pattern.permute.xlu0 0
        %808 = vperm.xlu0 %807, %v734
        %v809 = vpop.permute.xlu0 %808
        %812 = vset.pattern.permute.xlu0 0
        %813 = vperm.xlu0 %812, %v735
        %v814 = vpop.permute.xlu0 %813
        %817 = vset.pattern.permute.xlu0 0
        %818 = vperm.xlu0 %817, %v736
        %v819 = vpop.permute.xlu0 %818
        %822 = vset.pattern.permute.xlu0 0
        %823 = vperm.xlu0 %822, %v737
        %v824 = vpop.permute.xlu0 %823
        %827 = vset.pattern.permute.xlu0 0
        %828 = vperm.xlu0 %827, %v738
        %v829 = vpop.permute.xlu0 %828
        %832 = vset.pattern.permute.xlu0 0
        %833 = vperm.xlu0 %832, %v739
        %v834 = vpop.permute.xlu0 %833
        %837 = vset.pattern.permute.xlu0 0
        %838 = vperm.xlu0 %837, %v740
        %v839 = vpop.permute.xlu0 %838
        %842 = vset.pattern.permute.xlu0 0
        %843 = vperm.xlu0 %842, %v741
        %v844 = vpop.permute.xlu0 %843
        %847 = vset.pattern.permute.xlu0 0
        %848 = vperm.xlu0 %847, %v742
        %v849 = vpop.permute.xlu0 %848
        %852 = vset.pattern.permute.xlu0 0
        %853 = vperm.xlu0 %852, %v743
        %v854 = vpop.permute.xlu0 %853
        %857 = vset.pattern.permute.xlu0 0
        %858 = vperm.xlu0 %857, %v744
        %v859 = vpop.permute.xlu0 %858
        %862 = vset.pattern.permute.xlu0 0
        %863 = vperm.xlu0 %862, %v745
        %v864 = vpop.permute.xlu0 %863
        %867 = vset.pattern.permute.xlu0 0
        %868 = vperm.xlu0 %867, %v746
        %v869 = vpop.permute.xlu0 %868
        %872 = vset.pattern.permute.xlu0 0
        %873 = vperm.xlu0 %872, %v747
        %v874 = vpop.permute.xlu0 %873
        %877 = vset.pattern.permute.xlu0 0
        %878 = vperm.xlu0 %877, %v748
        %v879 = vpop.permute.xlu0 %878
        %882 = vset.pattern.permute.xlu0 0
        %883 = vperm.xlu0 %882, %v749
        %v884 = vpop.permute.xlu0 %883
        %887 = vset.pattern.permute.xlu0 0
        %888 = vperm.xlu0 %887, %v750
        %v889 = vpop.permute.xlu0 %888
        %892 = vset.pattern.permute.xlu0 0
        %893 = vperm.xlu0 %892, %v751
        %v894 = vpop.permute.xlu0 %893
        %897 = vset.pattern.permute.xlu0 0
        %898 = vperm.xlu0 %897, %v752
        %v899 = vpop.permute.xlu0 %898
        %902 = vset.pattern.permute.xlu0 0
        %903 = vperm.xlu0 %902, %v753
        %v904 = vpop.permute.xlu0 %903
        %907 = vset.pattern.permute.xlu0 0
        %908 = vperm.xlu0 %907, %v754
        %v909 = vpop.permute.xlu0 %908
        %912 = vset.pattern.permute.xlu0 0
        %913 = vperm.xlu0 %912, %v755
        %v914 = vpop.permute.xlu0 %913
        %v916 = vadd.f32 %v596, %v759
        %v917 = vadd.f32 %v597, %v759
        %v918 = vadd.f32 %v598, %v759
        %v919 = vadd.f32 %v599, %v759
        %v920 = vadd.f32 %v600, %v764
        %v921 = vadd.f32 %v601, %v764
        %v922 = vadd.f32 %v602, %v764
        %v923 = vadd.f32 %v603, %v764
        %v924 = vadd.f32 %v604, %v769
        %v925 = vadd.f32 %v605, %v769
        %v926 = vadd.f32 %v606, %v769
        %v927 = vadd.f32 %v607, %v769
        %v928 = vadd.f32 %v608, %v774
        %v929 = vadd.f32 %v609, %v774
        %v930 = vadd.f32 %v610, %v774
        %v931 = vadd.f32 %v611, %v774
        %v932 = vadd.f32 %v612, %v779
        %v933 = vadd.f32 %v613, %v779
        %v934 = vadd.f32 %v614, %v779
        %v935 = vadd.f32 %v615, %v779
        %v936 = vadd.f32 %v616, %v784
        %v937 = vadd.f32 %v617, %v784
        %v938 = vadd.f32 %v618, %v784
        %v939 = vadd.f32 %v619, %v784
        %v940 = vadd.f32 %v620, %v789
        %v941 = vadd.f32 %v621, %v789
        %v942 = vadd.f32 %v622, %v789
        %v943 = vadd.f32 %v623, %v789
        %v944 = vadd.f32 %v624, %v794
        %v945 = vadd.f32 %v625, %v794
        %v946 = vadd.f32 %v626, %v794
        %v947 = vadd.f32 %v627, %v794
        %v948 = vadd.f32 %v628, %v799
        %v949 = vadd.f32 %v629, %v799
        %v950 = vadd.f32 %v630, %v799
        %v951 = vadd.f32 %v631, %v799
        %v952 = vadd.f32 %v632, %v804
        %v953 = vadd.f32 %v633, %v804
        %v954 = vadd.f32 %v634, %v804
        %v955 = vadd.f32 %v635, %v804
        %v956 = vadd.f32 %v636, %v809
        %v957 = vadd.f32 %v637, %v809
        %v958 = vadd.f32 %v638, %v809
        %v959 = vadd.f32 %v639, %v809
        %v960 = vadd.f32 %v640, %v814
        %v961 = vadd.f32 %v641, %v814
        %v962 = vadd.f32 %v642, %v814
        %v963 = vadd.f32 %v643, %v814
        %v964 = vadd.f32 %v644, %v819
        %v965 = vadd.f32 %v645, %v819
        %v966 = vadd.f32 %v646, %v819
        %v967 = vadd.f32 %v647, %v819
        %v968 = vadd.f32 %v648, %v824
        %v969 = vadd.f32 %v649, %v824
        %v970 = vadd.f32 %v650, %v824
        %v971 = vadd.f32 %v651, %v824
        %v972 = vadd.f32 %v652, %v829
        %v973 = vadd.f32 %v653, %v829
        %v974 = vadd.f32 %v654, %v829
        %v975 = vadd.f32 %v655, %v829
        %v976 = vadd.f32 %v656, %v834
        %v977 = vadd.f32 %v657, %v834
        %v978 = vadd.f32 %v658, %v834
        %v979 = vadd.f32 %v659, %v834
        %v980 = vadd.f32 %v660, %v839
        %v981 = vadd.f32 %v661, %v839
        %v982 = vadd.f32 %v662, %v839
        %v983 = vadd.f32 %v663, %v839
        %v984 = vadd.f32 %v664, %v844
        %v985 = vadd.f32 %v665, %v844
        %v986 = vadd.f32 %v666, %v844
        %v987 = vadd.f32 %v667, %v844
        %v988 = vadd.f32 %v668, %v849
        %v989 = vadd.f32 %v669, %v849
        %v990 = vadd.f32 %v670, %v849
        %v991 = vadd.f32 %v671, %v849
        %v992 = vadd.f32 %v672, %v854
        %v993 = vadd.f32 %v673, %v854
        %v994 = vadd.f32 %v674, %v854
        %v995 = vadd.f32 %v675, %v854
        %v996 = vadd.f32 %v676, %v859
        %v997 = vadd.f32 %v677, %v859
        %v998 = vadd.f32 %v678, %v859
        %v999 = vadd.f32 %v679, %v859
        %v1000 = vadd.f32 %v680, %v864
        %v1001 = vadd.f32 %v681, %v864
        %v1002 = vadd.f32 %v682, %v864
        %v1003 = vadd.f32 %v683, %v864
        %v1004 = vadd.f32 %v684, %v869
        %v1005 = vadd.f32 %v685, %v869
        %v1006 = vadd.f32 %v686, %v869
        %v1007 = vadd.f32 %v687, %v869
        %v1008 = vadd.f32 %v688, %v874
        %v1009 = vadd.f32 %v689, %v874
        %v1010 = vadd.f32 %v690, %v874
        %v1011 = vadd.f32 %v691, %v874
        %v1012 = vadd.f32 %v692, %v879
        %v1013 = vadd.f32 %v693, %v879
        %v1014 = vadd.f32 %v694, %v879
        %v1015 = vadd.f32 %v695, %v879
        %v1016 = vadd.f32 %v696, %v884
        %v1017 = vadd.f32 %v697, %v884
        %v1018 = vadd.f32 %v698, %v884
        %v1019 = vadd.f32 %v699, %v884
        %v1020 = vadd.f32 %v700, %v889
        %v1021 = vadd.f32 %v701, %v889
        %v1022 = vadd.f32 %v702, %v889
        %v1023 = vadd.f32 %v703, %v889
        %v1024 = vadd.f32 %v704, %v894
        %v1025 = vadd.f32 %v705, %v894
        %v1026 = vadd.f32 %v706, %v894
        %v1027 = vadd.f32 %v707, %v894
        %v1028 = vadd.f32 %v708, %v899
        %v1029 = vadd.f32 %v709, %v899
        %v1030 = vadd.f32 %v710, %v899
        %v1031 = vadd.f32 %v711, %v899
        %v1032 = vadd.f32 %v712, %v904
        %v1033 = vadd.f32 %v713, %v904
        %v1034 = vadd.f32 %v714, %v904
        %v1035 = vadd.f32 %v715, %v904
        %v1036 = vadd.f32 %v716, %v909
        %v1037 = vadd.f32 %v717, %v909
        %v1038 = vadd.f32 %v718, %v909
        %v1039 = vadd.f32 %v719, %v909
        %v1040 = vadd.f32 %v720, %v914
        %v1041 = vadd.f32 %v721, %v914
        %v1042 = vadd.f32 %v722, %v914
        %v1043 = vadd.f32 %v723, %v914
        %v1044 = vmax.f32 %v916, 0.0
        %v1045 = vmax.f32 %v917, 0.0
        %v1046 = vmax.f32 %v918, 0.0
        %v1047 = vmax.f32 %v919, 0.0
        %v1048 = vmax.f32 %v920, 0.0
        %v1049 = vmax.f32 %v921, 0.0
        %v1050 = vmax.f32 %v922, 0.0
        %v1051 = vmax.f32 %v923, 0.0
        %v1052 = vmax.f32 %v924, 0.0
        %v1053 = vmax.f32 %v925, 0.0
        %v1054 = vmax.f32 %v926, 0.0
        %v1055 = vmax.f32 %v927, 0.0
        %v1056 = vmax.f32 %v928, 0.0
        %v1057 = vmax.f32 %v929, 0.0
        %v1058 = vmax.f32 %v930, 0.0
        %v1059 = vmax.f32 %v931, 0.0
        %v1060 = vmax.f32 %v932, 0.0
        %v1061 = vmax.f32 %v933, 0.0
        %v1062 = vmax.f32 %v934, 0.0
        %v1063 = vmax.f32 %v935, 0.0
        %v1064 = vmax.f32 %v936, 0.0
        %v1065 = vmax.f32 %v937, 0.0
        %v1066 = vmax.f32 %v938, 0.0
        %v1067 = vmax.f32 %v939, 0.0
        %v1068 = vmax.f32 %v940, 0.0
        %v1069 = vmax.f32 %v941, 0.0
        %v1070 = vmax.f32 %v942, 0.0
        %v1071 = vmax.f32 %v943, 0.0
        %v1072 = vmax.f32 %v944, 0.0
        %v1073 = vmax.f32 %v945, 0.0
        %v1074 = vmax.f32 %v946, 0.0
        %v1075 = vmax.f32 %v947, 0.0
        %v1076 = vmax.f32 %v948, 0.0
        %v1077 = vmax.f32 %v949, 0.0
        %v1078 = vmax.f32 %v950, 0.0
        %v1079 = vmax.f32 %v951, 0.0
        %v1080 = vmax.f32 %v952, 0.0
        %v1081 = vmax.f32 %v953, 0.0
        %v1082 = vmax.f32 %v954, 0.0
        %v1083 = vmax.f32 %v955, 0.0
        %v1084 = vmax.f32 %v956, 0.0
        %v1085 = vmax.f32 %v957, 0.0
        %v1086 = vmax.f32 %v958, 0.0
        %v1087 = vmax.f32 %v959, 0.0
        %v1088 = vmax.f32 %v960, 0.0
        %v1089 = vmax.f32 %v961, 0.0
        %v1090 = vmax.f32 %v962, 0.0
        %v1091 = vmax.f32 %v963, 0.0
        %v1092 = vmax.f32 %v964, 0.0
        %v1093 = vmax.f32 %v965, 0.0
        %v1094 = vmax.f32 %v966, 0.0
        %v1095 = vmax.f32 %v967, 0.0
        %v1096 = vmax.f32 %v968, 0.0
        %v1097 = vmax.f32 %v969, 0.0
        %v1098 = vmax.f32 %v970, 0.0
        %v1099 = vmax.f32 %v971, 0.0
        %v1100 = vmax.f32 %v972, 0.0
        %v1101 = vmax.f32 %v973, 0.0
        %v1102 = vmax.f32 %v974, 0.0
        %v1103 = vmax.f32 %v975, 0.0
        %v1104 = vmax.f32 %v976, 0.0
        %v1105 = vmax.f32 %v977, 0.0
        %v1106 = vmax.f32 %v978, 0.0
        %v1107 = vmax.f32 %v979, 0.0
        %v1108 = vmax.f32 %v980, 0.0
        %v1109 = vmax.f32 %v981, 0.0
        %v1110 = vmax.f32 %v982, 0.0
        %v1111 = vmax.f32 %v983, 0.0
        %v1112 = vmax.f32 %v984, 0.0
        %v1113 = vmax.f32 %v985, 0.0
        %v1114 = vmax.f32 %v986, 0.0
        %v1115 = vmax.f32 %v987, 0.0
        %v1116 = vmax.f32 %v988, 0.0
        %v1117 = vmax.f32 %v989, 0.0
        %v1118 = vmax.f32 %v990, 0.0
        %v1119 = vmax.f32 %v991, 0.0
        %v1120 = vmax.f32 %v992, 0.0
        %v1121 = vmax.f32 %v993, 0.0
        %v1122 = vmax.f32 %v994, 0.0
        %v1123 = vmax.f32 %v995, 0.0
        %v1124 = vmax.f32 %v996, 0.0
        %v1125 = vmax.f32 %v997, 0.0
        %v1126 = vmax.f32 %v998, 0.0
        %v1127 = vmax.f32 %v999, 0.0
        %v1128 = vmax.f32 %v1000, 0.0
        %v1129 = vmax.f32 %v1001, 0.0
        %v1130 = vmax.f32 %v1002, 0.0
        %v1131 = vmax.f32 %v1003, 0.0
        %v1132 = vmax.f32 %v1004, 0.0
        %v1133 = vmax.f32 %v1005, 0.0
        %v1134 = vmax.f32 %v1006, 0.0
        %v1135 = vmax.f32 %v1007, 0.0
        %v1136 = vmax.f32 %v1008, 0.0
        %v1137 = vmax.f32 %v1009, 0.0
        %v1138 = vmax.f32 %v1010, 0.0
        %v1139 = vmax.f32 %v1011, 0.0
        %v1140 = vmax.f32 %v1012, 0.0
        %v1141 = vmax.f32 %v1013, 0.0
        %v1142 = vmax.f32 %v1014, 0.0
        %v1143 = vmax.f32 %v1015, 0.0
        %v1144 = vmax.f32 %v1016, 0.0
        %v1145 = vmax.f32 %v1017, 0.0
        %v1146 = vmax.f32 %v1018, 0.0
        %v1147 = vmax.f32 %v1019, 0.0
        %v1148 = vmax.f32 %v1020, 0.0
        %v1149 = vmax.f32 %v1021, 0.0
        %v1150 = vmax.f32 %v1022, 0.0
        %v1151 = vmax.f32 %v1023, 0.0
        %v1152 = vmax.f32 %v1024, 0.0
        %v1153 = vmax.f32 %v1025, 0.0
        %v1154 = vmax.f32 %v1026, 0.0
        %v1155 = vmax.f32 %v1027, 0.0
        %v1156 = vmax.f32 %v1028, 0.0
        %v1157 = vmax.f32 %v1029, 0.0
        %v1158 = vmax.f32 %v1030, 0.0
        %v1159 = vmax.f32 %v1031, 0.0
        %v1160 = vmax.f32 %v1032, 0.0
        %v1161 = vmax.f32 %v1033, 0.0
        %v1162 = vmax.f32 %v1034, 0.0
        %v1163 = vmax.f32 %v1035, 0.0
        %v1164 = vmax.f32 %v1036, 0.0
        %v1165 = vmax.f32 %v1037, 0.0
        %v1166 = vmax.f32 %v1038, 0.0
        %v1167 = vmax.f32 %v1039, 0.0
        %v1168 = vmax.f32 %v1040, 0.0
        %v1169 = vmax.f32 %v1041, 0.0
        %v1170 = vmax.f32 %v1042, 0.0
        %v1171 = vmax.f32 %v1043, 0.0
        %v1172 = vld [vmem:[%s3] sm:$0xff]
        %v1173 = vld [vmem:[%s3 + $0x8] sm:$0xff]
        %v1174 = vld [vmem:[%s3 + $0x10] sm:$0xff]
        %v1175 = vld [vmem:[%s3 + $0x18] sm:$0xff]
        %v1176 = vld [vmem:[%s3 + $0x20] sm:$0xff]
        %v1177 = vld [vmem:[%s3 + $0x28] sm:$0xff]
        %v1178 = vld [vmem:[%s3 + $0x30] sm:$0xff]
        %v1179 = vld [vmem:[%s3 + $0x38] sm:$0xff]
        %v1180 = vld [vmem:[%s3 + $0x40] sm:$0xff]
        %v1181 = vld [vmem:[%s3 + $0x48] sm:$0xff]
        %v1182 = vld [vmem:[%s3 + $0x50] sm:$0xff]
        %v1183 = vld [vmem:[%s3 + $0x58] sm:$0xff]
        %v1184 = vld [vmem:[%s3 + $0x60] sm:$0xff]
        %v1185 = vld [vmem:[%s3 + $0x68] sm:$0xff]
        %v1186 = vld [vmem:[%s3 + $0x70] sm:$0xff]
        %v1187 = vld [vmem:[%s3 + $0x78] sm:$0xff]
        %v1188 = vld [vmem:[%s3 + $0x80] sm:$0xff]
        %v1189 = vld [vmem:[%s3 + $0x88] sm:$0xff]
        %v1190 = vld [vmem:[%s3 + $0x90] sm:$0xff]
        %v1191 = vld [vmem:[%s3 + $0x98] sm:$0xff]
        %v1192 = vld [vmem:[%s3 + $0xa0] sm:$0xff]
        %v1193 = vld [vmem:[%s3 + $0xa8] sm:$0xff]
        %v1194 = vld [vmem:[%s3 + $0xb0] sm:$0xff]
        %v1195 = vld [vmem:[%s3 + $0xb8] sm:$0xff]
        %v1196 = vld [vmem:[%s3 + $0xc0] sm:$0xff]
        %v1197 = vld [vmem:[%s3 + $0xc8] sm:$0xff]
        %v1198 = vld [vmem:[%s3 + $0xd0] sm:$0xff]
        %v1199 = vld [vmem:[%s3 + $0xd8] sm:$0xff]
        %v1200 = vld [vmem:[%s3 + $0xe0] sm:$0xff]
        %v1201 = vld [vmem:[%s3 + $0xe8] sm:$0xff]
        %v1202 = vld [vmem:[%s3 + $0xf0] sm:$0xff]
        %v1203 = vld [vmem:[%s3 + $0xf8] sm:$0xff]
        %v1204 = vld [vmem:[%s3 + $0x100] sm:$0xff]
        %v1205 = vld [vmem:[%s3 + $0x108] sm:$0xff]
        %v1206 = vld [vmem:[%s3 + $0x110] sm:$0xff]
        %v1207 = vld [vmem:[%s3 + $0x118] sm:$0xff]
        %v1208 = vld [vmem:[%s3 + $0x120] sm:$0xff]
        %v1209 = vld [vmem:[%s3 + $0x128] sm:$0xff]
        %v1210 = vld [vmem:[%s3 + $0x130] sm:$0xff]
        %v1211 = vld [vmem:[%s3 + $0x138] sm:$0xff]
        %v1212 = vld [vmem:[%s3 + $0x140] sm:$0xff]
        %v1213 = vld [vmem:[%s3 + $0x148] sm:$0xff]
        %v1214 = vld [vmem:[%s3 + $0x150] sm:$0xff]
        %v1215 = vld [vmem:[%s3 + $0x158] sm:$0xff]
        %v1216 = vld [vmem:[%s3 + $0x160] sm:$0xff]
        %v1217 = vld [vmem:[%s3 + $0x168] sm:$0xff]
        %v1218 = vld [vmem:[%s3 + $0x170] sm:$0xff]
        %v1219 = vld [vmem:[%s3 + $0x178] sm:$0xff]
        %v1220 = vld [vmem:[%s3 + $0x180] sm:$0xff]
        %v1221 = vld [vmem:[%s3 + $0x188] sm:$0xff]
        %v1222 = vld [vmem:[%s3 + $0x190] sm:$0xff]
        %v1223 = vld [vmem:[%s3 + $0x198] sm:$0xff]
        %v1224 = vld [vmem:[%s3 + $0x1a0] sm:$0xff]
        %v1225 = vld [vmem:[%s3 + $0x1a8] sm:$0xff]
        %v1226 = vld [vmem:[%s3 + $0x1b0] sm:$0xff]
        %v1227 = vld [vmem:[%s3 + $0x1b8] sm:$0xff]
        %v1228 = vld [vmem:[%s3 + $0x1c0] sm:$0xff]
        %v1229 = vld [vmem:[%s3 + $0x1c8] sm:$0xff]
        %v1230 = vld [vmem:[%s3 + $0x1d0] sm:$0xff]
        %v1231 = vld [vmem:[%s3 + $0x1d8] sm:$0xff]
        %v1232 = vld [vmem:[%s3 + $0x1e0] sm:$0xff]
        %v1233 = vld [vmem:[%s3 + $0x1e8] sm:$0xff]
        %v1234 = vld [vmem:[%s3 + $0x1f0] sm:$0xff]
        %v1235 = vld [vmem:[%s3 + $0x1f8] sm:$0xff]
        %v1236 = vld [vmem:[%s4] sm:$0xff]
        %v1237 = vld [vmem:[%s4 + $0x8] sm:$0xff]
        %v1238 = vld [vmem:[%s4 + $0x10] sm:$0xff]
        %v1239 = vld [vmem:[%s4 + $0x18] sm:$0xff]
        %v1240 = vld [vmem:[%s4 + $0x20] sm:$0xff]
        %v1241 = vld [vmem:[%s4 + $0x28] sm:$0xff]
        %v1242 = vld [vmem:[%s4 + $0x30] sm:$0xff]
        %v1243 = vld [vmem:[%s4 + $0x38] sm:$0xff]
        %v1244 = vld [vmem:[%s4 + $0x40] sm:$0xff]
        %v1245 = vld [vmem:[%s4 + $0x48] sm:$0xff]
        %v1246 = vld [vmem:[%s4 + $0x50] sm:$0xff]
        %v1247 = vld [vmem:[%s4 + $0x58] sm:$0xff]
        %v1248 = vld [vmem:[%s4 + $0x60] sm:$0xff]
        %v1249 = vld [vmem:[%s4 + $0x68] sm:$0xff]
        %v1250 = vld [vmem:[%s4 + $0x70] sm:$0xff]
        %v1251 = vld [vmem:[%s4 + $0x78] sm:$0xff]
        %v1252 = vld [vmem:[%s4 + $0x80] sm:$0xff]
        %v1253 = vld [vmem:[%s4 + $0x88] sm:$0xff]
        %v1254 = vld [vmem:[%s4 + $0x90] sm:$0xff]
        %v1255 = vld [vmem:[%s4 + $0x98] sm:$0xff]
        %v1256 = vld [vmem:[%s4 + $0xa0] sm:$0xff]
        %v1257 = vld [vmem:[%s4 + $0xa8] sm:$0xff]
        %v1258 = vld [vmem:[%s4 + $0xb0] sm:$0xff]
        %v1259 = vld [vmem:[%s4 + $0xb8] sm:$0xff]
        %v1260 = vld [vmem:[%s4 + $0xc0] sm:$0xff]
        %v1261 = vld [vmem:[%s4 + $0xc8] sm:$0xff]
        %v1262 = vld [vmem:[%s4 + $0xd0] sm:$0xff]
        %v1263 = vld [vmem:[%s4 + $0xd8] sm:$0xff]
        %v1264 = vld [vmem:[%s4 + $0xe0] sm:$0xff]
        %v1265 = vld [vmem:[%s4 + $0xe8] sm:$0xff]
        %v1266 = vld [vmem:[%s4 + $0xf0] sm:$0xff]
        %v1267 = vld [vmem:[%s4 + $0xf8] sm:$0xff]
        %1269 = vset.pattern.permute.xlu0 0
        %1270 = vperm.xlu0 %1269, %v1236
        %v1271 = vpop.permute.xlu0 %1270
        %1274 = vset.pattern.permute.xlu0 0
        %1275 = vperm.xlu0 %1274, %v1237
        %v1276 = vpop.permute.xlu0 %1275
        %1279 = vset.pattern.permute.xlu0 0
        %1280 = vperm.xlu0 %1279, %v1238
        %v1281 = vpop.permute.xlu0 %1280
        %1284 = vset.pattern.permute.xlu0 0
        %1285 = vperm.xlu0 %1284, %v1239
        %v1286 = vpop.permute.xlu0 %1285
        %1289 = vset.pattern.permute.xlu0 0
        %1290 = vperm.xlu0 %1289, %v1240
        %v1291 = vpop.permute.xlu0 %1290
        %1294 = vset.pattern.permute.xlu0 0
        %1295 = vperm.xlu0 %1294, %v1241
        %v1296 = vpop.permute.xlu0 %1295
        %1299 = vset.pattern.permute.xlu0 0
        %1300 = vperm.xlu0 %1299, %v1242
        %v1301 = vpop.permute.xlu0 %1300
        %1304 = vset.pattern.permute.xlu0 0
        %1305 = vperm.xlu0 %1304, %v1243
        %v1306 = vpop.permute.xlu0 %1305
        %1309 = vset.pattern.permute.xlu0 0
        %1310 = vperm.xlu0 %1309, %v1244
        %v1311 = vpop.permute.xlu0 %1310
        %1314 = vset.pattern.permute.xlu0 0
        %1315 = vperm.xlu0 %1314, %v1245
        %v1316 = vpop.permute.xlu0 %1315
        %1319 = vset.pattern.permute.xlu0 0
        %1320 = vperm.xlu0 %1319, %v1246
        %v1321 = vpop.permute.xlu0 %1320
        %1324 = vset.pattern.permute.xlu0 0
        %1325 = vperm.xlu0 %1324, %v1247
        %v1326 = vpop.permute.xlu0 %1325
        %1329 = vset.pattern.permute.xlu0 0
        %1330 = vperm.xlu0 %1329, %v1248
        %v1331 = vpop.permute.xlu0 %1330
        %1334 = vset.pattern.permute.xlu0 0
        %1335 = vperm.xlu0 %1334, %v1249
        %v1336 = vpop.permute.xlu0 %1335
        %1339 = vset.pattern.permute.xlu0 0
        %1340 = vperm.xlu0 %1339, %v1250
        %v1341 = vpop.permute.xlu0 %1340
        %1344 = vset.pattern.permute.xlu0 0
        %1345 = vperm.xlu0 %1344, %v1251
        %v1346 = vpop.permute.xlu0 %1345
        %1349 = vset.pattern.permute.xlu0 0
        %1350 = vperm.xlu0 %1349, %v1252
        %v1351 = vpop.permute.xlu0 %1350
        %1354 = vset.pattern.permute.xlu0 0
        %1355 = vperm.xlu0 %1354, %v1253
        %v1356 = vpop.permute.xlu0 %1355
        %1359 = vset.pattern.permute.xlu0 0
        %1360 = vperm.xlu0 %1359, %v1254
        %v1361 = vpop.permute.xlu0 %1360
        %1364 = vset.pattern.permute.xlu0 0
        %1365 = vperm.xlu0 %1364, %v1255
        %v1366 = vpop.permute.xlu0 %1365
        %1369 = vset.pattern.permute.xlu0 0
        %1370 = vperm.xlu0 %1369, %v1256
        %v1371 = vpop.permute.xlu0 %1370
        %1374 = vset.pattern.permute.xlu0 0
        %1375 = vperm.xlu0 %1374, %v1257
        %v1376 = vpop.permute.xlu0 %1375
        %1379 = vset.pattern.permute.xlu0 0
        %1380 = vperm.xlu0 %1379, %v1258
        %v1381 = vpop.permute.xlu0 %1380
        %1384 = vset.pattern.permute.xlu0 0
        %1385 = vperm.xlu0 %1384, %v1259
        %v1386 = vpop.permute.xlu0 %1385
        %1389 = vset.pattern.permute.xlu0 0
        %1390 = vperm.xlu0 %1389, %v1260
        %v1391 = vpop.permute.xlu0 %1390
        %1394 = vset.pattern.permute.xlu0 0
        %1395 = vperm.xlu0 %1394, %v1261
        %v1396 = vpop.permute.xlu0 %1395
        %1399 = vset.pattern.permute.xlu0 0
        %1400 = vperm.xlu0 %1399, %v1262
        %v1401 = vpop.permute.xlu0 %1400
        %1404 = vset.pattern.permute.xlu0 0
        %1405 = vperm.xlu0 %1404, %v1263
        %v1406 = vpop.permute.xlu0 %1405
        %1409 = vset.pattern.permute.xlu0 0
        %1410 = vperm.xlu0 %1409, %v1264
        %v1411 = vpop.permute.xlu0 %1410
        %1414 = vset.pattern.permute.xlu0 0
        %1415 = vperm.xlu0 %1414, %v1265
        %v1416 = vpop.permute.xlu0 %1415
        %1419 = vset.pattern.permute.xlu0 0
        %1420 = vperm.xlu0 %1419, %v1266
        %v1421 = vpop.permute.xlu0 %1420
        %1424 = vset.pattern.permute.xlu0 0
        %1425 = vperm.xlu0 %1424, %v1267
        %v1426 = vpop.permute.xlu0 %1425
        %1428 = vmatprep.subr.mxu0 %v1045
        %1429 = vmatpush1.msra.mxu0 %v1044
        %1430 = vmatprep.subr.mxu0 %v1049
        %1431 = vmatpush1.msra.mxu0 %v1048
        %1432 = vmatprep.subr.mxu0 %v1053
        %1433 = vmatpush1.msra.mxu0 %v1052
        %1434 = vmatprep.subr.mxu0 %v1057
        %1435 = vmatpush1.msra.mxu0 %v1056
        %1436 = vmatprep.subr.mxu0 %v1061
        %1437 = vmatpush1.msra.mxu0 %v1060
        %1438 = vmatprep.subr.mxu0 %v1065
        %1439 = vmatpush1.msra.mxu0 %v1064
        %1440 = vmatprep.subr.mxu0 %v1069
        %1441 = vmatpush1.msra.mxu0 %v1068
        %1442 = vmatprep.subr.mxu0 %v1073
        %1443 = vmatpush1.msra.mxu0 %v1072
        %1444 = vmatprep.subr.mxu0 %v1077
        %1445 = vmatpush1.msra.mxu0 %v1076
        %1446 = vmatprep.subr.mxu0 %v1081
        %1447 = vmatpush1.msra.mxu0 %v1080
        %1448 = vmatprep.subr.mxu0 %v1085
        %1449 = vmatpush1.msra.mxu0 %v1084
        %1450 = vmatprep.subr.mxu0 %v1089
        %1451 = vmatpush1.msra.mxu0 %v1088
        %1452 = vmatprep.subr.mxu0 %v1093
        %1453 = vmatpush1.msra.mxu0 %v1092
        %1454 = vmatprep.subr.mxu0 %v1097
        %1455 = vmatpush1.msra.mxu0 %v1096
        %1456 = vmatprep.subr.mxu0 %v1101
        %1457 = vmatpush1.msra.mxu0 %v1100
        %1458 = vmatprep.subr.mxu0 %v1105
        %1459 = vmatpush1.msra.mxu0 %v1104
        %1460 = vmatprep.subr.mxu0 %v1109
        %1461 = vmatpush1.msra.mxu0 %v1108
        %1462 = vmatprep.subr.mxu0 %v1113
        %1463 = vmatpush1.msra.mxu0 %v1112
        %1464 = vmatprep.subr.mxu0 %v1117
        %1465 = vmatpush1.msra.mxu0 %v1116
        %1466 = vmatprep.subr.mxu0 %v1121
        %1467 = vmatpush1.msra.mxu0 %v1120
        %1468 = vmatprep.subr.mxu0 %v1125
        %1469 = vmatpush1.msra.mxu0 %v1124
        %1470 = vmatprep.subr.mxu0 %v1129
        %1471 = vmatpush1.msra.mxu0 %v1128
        %1472 = vmatprep.subr.mxu0 %v1133
        %1473 = vmatpush1.msra.mxu0 %v1132
        %1474 = vmatprep.subr.mxu0 %v1137
        %1475 = vmatpush1.msra.mxu0 %v1136
        %1476 = vmatprep.subr.mxu0 %v1141
        %1477 = vmatpush1.msra.mxu0 %v1140
        %1478 = vmatprep.subr.mxu0 %v1145
        %1479 = vmatpush1.msra.mxu0 %v1144
        %1480 = vmatprep.subr.mxu0 %v1149
        %1481 = vmatpush1.msra.mxu0 %v1148
        %1482 = vmatprep.subr.mxu0 %v1153
        %1483 = vmatpush1.msra.mxu0 %v1152
        %1484 = vmatprep.subr.mxu0 %v1157
        %1485 = vmatpush1.msra.mxu0 %v1156
        %1486 = vmatprep.subr.mxu0 %v1161
        %1487 = vmatpush1.msra.mxu0 %v1160
        %1488 = vmatprep.subr.mxu0 %v1165
        %1489 = vmatpush1.msra.mxu0 %v1164
        %1490 = vmatprep.subr.mxu0 %v1169
        %1491 = vmatpush1.msra.mxu0 %v1168
        %1492 = vmatprep.mubr.f32.mxu0 %v1173
        %1493 = vmatmul.mubr.f32.gmra.mrb[0].mxu0 %v1172
        %v1494 = vpop.f32.mrb[0].mxu0
        %v1495 = vadd.f32 %v1271, %v1494
        %v1496 = vpop.f32.mrb[0].mxu0
        %v1497 = vadd.f32 %v1271, %v1496
        %1498 = vmatprep.mubr.f32.mxu0 %v1175
        %1499 = vmatmul.mubr.f32.gmra.mrb[0].mxu0 %v1174
        %v1500 = vpop.f32.mrb[0].mxu0
        %v1501 = vadd.f32 %v1276, %v1500
        %v1502 = vpop.f32.mrb[0].mxu0
        %v1503 = vadd.f32 %v1276, %v1502
        %1504 = vmatprep.mubr.f32.mxu0 %v1177
        %1505 = vmatmul.mubr.f32.gmra.mrb[0].mxu0 %v1176
        %v1506 = vpop.f32.mrb[0].mxu0
        %v1507 = vadd.f32 %v1281, %v1506
        %v1508 = vpop.f32.mrb[0].mxu0
        %v1509 = vadd.f32 %v1281, %v1508
        %1510 = vmatprep.mubr.f32.mxu0 %v1179
        %1511 = vmatmul.mubr.f32.gmra.mrb[0].mxu0 %v1178
        %v1512 = vpop.f32.mrb[0].mxu0
        %v1513 = vadd.f32 %v1286, %v1512
        %v1514 = vpop.f32.mrb[0].mxu0
        %v1515 = vadd.f32 %v1286, %v1514
        %1516 = vmatprep.mubr.f32.mxu0 %v1181
        %1517 = vmatmul.mubr.f32.gmra.mrb[0].mxu0 %v1180
        %v1518 = vpop.f32.mrb[0].mxu0
        %v1519 = vadd.f32 %v1291, %v1518
        %v1520 = vpop.f32.mrb[0].mxu0
        %v1521 = vadd.f32 %v1291, %v1520
        %1522 = vmatprep.mubr.f32.mxu0 %v1183
        %1523 = vmatmul.mubr.f32.gmra.mrb[0].mxu0 %v1182
        %v1524 = vpop.f32.mrb[0].mxu0
        %v1525 = vadd.f32 %v1296, %v1524
        %v1526 = vpop.f32.mrb[0].mxu0
        %v1527 = vadd.f32 %v1296, %v1526
        %1528 = vmatprep.mubr.f32.mxu0 %v1185
        %1529 = vmatmul.mubr.f32.gmra.mrb[0].mxu0 %v1184
        %v1530 = vpop.f32.mrb[0].mxu0
        %v1531 = vadd.f32 %v1301, %v1530
        %v1532 = vpop.f32.mrb[0].mxu0
        %v1533 = vadd.f32 %v1301, %v1532
        %1534 = vmatprep.mubr.f32.mxu0 %v1187
        %1535 = vmatmul.mubr.f32.gmra.mrb[0].mxu0 %v1186
        %v1536 = vpop.f32.mrb[0].mxu0
        %v1537 = vadd.f32 %v1306, %v1536
        %v1538 = vpop.f32.mrb[0].mxu0
        %v1539 = vadd.f32 %v1306, %v1538
        %1540 = vmatprep.mubr.f32.mxu0 %v1189
        %1541 = vmatmul.mubr.f32.gmra.mrb[0].mxu0 %v1188
        %v1542 = vpop.f32.mrb[0].mxu0
        %v1543 = vadd.f32 %v1311, %v1542
        %v1544 = vpop.f32.mrb[0].mxu0
        %v1545 = vadd.f32 %v1311, %v1544
        %1546 = vmatprep.mubr.f32.mxu0 %v1191
        %1547 = vmatmul.mubr.f32.gmra.mrb[0].mxu0 %v1190
        %v1548 = vpop.f32.mrb[0].mxu0
        %v1549 = vadd.f32 %v1316, %v1548
        %v1550 = vpop.f32.mrb[0].mxu0
        %v1551 = vadd.f32 %v1316, %v1550
        %1552 = vmatprep.mubr.f32.mxu0 %v1193
        %1553 = vmatmul.mubr.f32.gmra.mrb[0].mxu0 %v1192
        %v1554 = vpop.f32.mrb[0].mxu0
        %v1555 = vadd.f32 %v1321, %v1554
        %v1556 = vpop.f32.mrb[0].mxu0
        %v1557 = vadd.f32 %v1321, %v1556
        %1558 = vmatprep.mubr.f32.mxu0 %v1195
        %1559 = vmatmul.mubr.f32.gmra.mrb[0].mxu0 %v1194
        %v1560 = vpop.f32.mrb[0].mxu0
        %v1561 = vadd.f32 %v1326, %v1560
        %v1562 = vpop.f32.mrb[0].mxu0
        %v1563 = vadd.f32 %v1326, %v1562
        %1564 = vmatprep.mubr.f32.mxu0 %v1197
        %1565 = vmatmul.mubr.f32.gmra.mrb[0].mxu0 %v1196
        %v1566 = vpop.f32.mrb[0].mxu0
        %v1567 = vadd.f32 %v1331, %v1566
        %v1568 = vpop.f32.mrb[0].mxu0
        %v1569 = vadd.f32 %v1331, %v1568
        %1570 = vmatprep.mubr.f32.mxu0 %v1199
        %1571 = vmatmul.mubr.f32.gmra.mrb[0].mxu0 %v1198
        %v1572 = vpop.f32.mrb[0].mxu0
        %v1573 = vadd.f32 %v1336, %v1572
        %v1574 = vpop.f32.mrb[0].mxu0
        %v1575 = vadd.f32 %v1336, %v1574
        %1576 = vmatprep.mubr.f32.mxu0 %v1201
        %1577 = vmatmul.mubr.f32.gmra.mrb[0].mxu0 %v1200
        %v1578 = vpop.f32.mrb[0].mxu0
        %v1579 = vadd.f32 %v1341, %v1578
        %v1580 = vpop.f32.mrb[0].mxu0
        %v1581 = vadd.f32 %v1341, %v1580
        %1582 = vmatprep.mubr.f32.mxu0 %v1203
        %1583 = vmatmul.mubr.f32.gmra.mrb[0].mxu0 %v1202
        %v1584 = vpop.f32.mrb[0].mxu0
        %v1585 = vadd.f32 %v1346, %v1584
        %v1586 = vpop.f32.mrb[0].mxu0
        %v1587 = vadd.f32 %v1346, %v1586
        %1588 = vmatprep.mubr.f32.mxu0 %v1205
        %1589 = vmatmul.mubr.f32.gmra.mrb[0].mxu0 %v1204
        %v1590 = vpop.f32.mrb[0].mxu0
        %v1591 = vadd.f32 %v1351, %v1590
        %v1592 = vpop.f32.mrb[0].mxu0
        %v1593 = vadd.f32 %v1351, %v1592
        %1594 = vmatprep.mubr.f32.mxu0 %v1207
        %1595 = vmatmul.mubr.f32.gmra.mrb[0].mxu0 %v1206
        %v1596 = vpop.f32.mrb[0].mxu0
        %v1597 = vadd.f32 %v1356, %v1596
        %v1598 = vpop.f32.mrb[0].mxu0
        %v1599 = vadd.f32 %v1356, %v1598
        %1600 = vmatprep.mubr.f32.mxu0 %v1209
        %1601 = vmatmul.mubr.f32.gmra.mrb[0].mxu0 %v1208
        %v1602 = vpop.f32.mrb[0].mxu0
        %v1603 = vadd.f32 %v1361, %v1602
        %v1604 = vpop.f32.mrb[0].mxu0
        %v1605 = vadd.f32 %v1361, %v1604
        %1606 = vmatprep.mubr.f32.mxu0 %v1211
        %1607 = vmatmul.mubr.f32.gmra.mrb[0].mxu0 %v1210
        %v1608 = vpop.f32.mrb[0].mxu0
        %v1609 = vadd.f32 %v1366, %v1608
        %v1610 = vpop.f32.mrb[0].mxu0
        %v1611 = vadd.f32 %v1366, %v1610
        %1612 = vmatprep.mubr.f32.mxu0 %v1213
        %1613 = vmatmul.mubr.f32.gmra.mrb[0].mxu0 %v1212
        %v1614 = vpop.f32.mrb[0].mxu0
        %v1615 = vadd.f32 %v1371, %v1614
        %v1616 = vpop.f32.mrb[0].mxu0
        %v1617 = vadd.f32 %v1371, %v1616
        %1618 = vmatprep.mubr.f32.mxu0 %v1215
        %1619 = vmatmul.mubr.f32.gmra.mrb[0].mxu0 %v1214
        %v1620 = vpop.f32.mrb[0].mxu0
        %v1621 = vadd.f32 %v1376, %v1620
        %v1622 = vpop.f32.mrb[0].mxu0
        %v1623 = vadd.f32 %v1376, %v1622
        %1624 = vmatprep.mubr.f32.mxu0 %v1217
        %1625 = vmatmul.mubr.f32.gmra.mrb[0].mxu0 %v1216
        %v1626 = vpop.f32.mrb[0].mxu0
        %v1627 = vadd.f32 %v1381, %v1626
        %v1628 = vpop.f32.mrb[0].mxu0
        %v1629 = vadd.f32 %v1381, %v1628
        %1630 = vmatprep.mubr.f32.mxu0 %v1219
        %1631 = vmatmul.mubr.f32.gmra.mrb[0].mxu0 %v1218
        %v1632 = vpop.f32.mrb[0].mxu0
        %v1633 = vadd.f32 %v1386, %v1632
        %v1634 = vpop.f32.mrb[0].mxu0
        %v1635 = vadd.f32 %v1386, %v1634
        %1636 = vmatprep.mubr.f32.mxu0 %v1221
        %1637 = vmatmul.mubr.f32.gmra.mrb[0].mxu0 %v1220
        %v1638 = vpop.f32.mrb[0].mxu0
        %v1639 = vadd.f32 %v1391, %v1638
        %v1640 = vpop.f32.mrb[0].mxu0
        %v1641 = vadd.f32 %v1391, %v1640
        %1642 = vmatprep.mubr.f32.mxu0 %v1223
        %1643 = vmatmul.mubr.f32.gmra.mrb[0].mxu0 %v1222
        %v1644 = vpop.f32.mrb[0].mxu0
        %v1645 = vadd.f32 %v1396, %v1644
        %v1646 = vpop.f32.mrb[0].mxu0
        %v1647 = vadd.f32 %v1396, %v1646
        %1648 = vmatprep.mubr.f32.mxu0 %v1225
        %1649 = vmatmul.mubr.f32.gmra.mrb[0].mxu0 %v1224
        %v1650 = vpop.f32.mrb[0].mxu0
        %v1651 = vadd.f32 %v1401, %v1650
        %v1652 = vpop.f32.mrb[0].mxu0
        %v1653 = vadd.f32 %v1401, %v1652
        %1654 = vmatprep.mubr.f32.mxu0 %v1227
        %1655 = vmatmul.mubr.f32.gmra.mrb[0].mxu0 %v1226
        %v1656 = vpop.f32.mrb[0].mxu0
        %v1657 = vadd.f32 %v1406, %v1656
        %v1658 = vpop.f32.mrb[0].mxu0
        %v1659 = vadd.f32 %v1406, %v1658
        %1660 = vmatprep.mubr.f32.mxu0 %v1229
        %1661 = vmatmul.mubr.f32.gmra.mrb[0].mxu0 %v1228
        %v1662 = vpop.f32.mrb[0].mxu0
        %v1663 = vadd.f32 %v1411, %v1662
        %v1664 = vpop.f32.mrb[0].mxu0
        %v1665 = vadd.f32 %v1411, %v1664
        %1666 = vmatprep.mubr.f32.mxu0 %v1231
        %1667 = vmatmul.mubr.f32.gmra.mrb[0].mxu0 %v1230
        %v1668 = vpop.f32.mrb[0].mxu0
        %v1669 = vadd.f32 %v1416, %v1668
        %v1670 = vpop.f32.mrb[0].mxu0
        %v1671 = vadd.f32 %v1416, %v1670
        %1672 = vmatprep.mubr.f32.mxu0 %v1233
        %1673 = vmatmul.mubr.f32.gmra.mrb[0].mxu0 %v1232
        %v1674 = vpop.f32.mrb[0].mxu0
        %v1675 = vadd.f32 %v1421, %v1674
        %v1676 = vpop.f32.mrb[0].mxu0
        %v1677 = vadd.f32 %v1421, %v1676
        %1678 = vmatprep.mubr.f32.mxu0 %v1235
        %1679 = vmatmul.mubr.f32.gmra.mrb[0].mxu0 %v1234
        %v1680 = vpop.f32.mrb[0].mxu0
        %v1681 = vadd.f32 %v1426, %v1680
        %v1682 = vpop.f32.mrb[0].mxu0
        %v1683 = vadd.f32 %v1426, %v1682
        %1684 = vdwg.mxu0
        %1685 = vmatprep.subr.mxu0 %v1047
        %1686 = vmatpush1.msra.mxu0 %v1046
        %1687 = vmatprep.subr.mxu0 %v1051
        %1688 = vmatpush1.msra.mxu0 %v1050
        %1689 = vmatprep.subr.mxu0 %v1055
        %1690 = vmatpush1.msra.mxu0 %v1054
        %1691 = vmatprep.subr.mxu0 %v1059
        %1692 = vmatpush1.msra.mxu0 %v1058
        %1693 = vmatprep.subr.mxu0 %v1063
        %1694 = vmatpush1.msra.mxu0 %v1062
        %1695 = vmatprep.subr.mxu0 %v1067
        %1696 = vmatpush1.msra.mxu0 %v1066
        %1697 = vmatprep.subr.mxu0 %v1071
        %1698 = vmatpush1.msra.mxu0 %v1070
        %1699 = vmatprep.subr.mxu0 %v1075
        %1700 = vmatpush1.msra.mxu0 %v1074
        %1701 = vmatprep.subr.mxu0 %v1079
        %1702 = vmatpush1.msra.mxu0 %v1078
        %1703 = vmatprep.subr.mxu0 %v1083
        %1704 = vmatpush1.msra.mxu0 %v1082
        %1705 = vmatprep.subr.mxu0 %v1087
        %1706 = vmatpush1.msra.mxu0 %v1086
        %1707 = vmatprep.subr.mxu0 %v1091
        %1708 = vmatpush1.msra.mxu0 %v1090
        %1709 = vmatprep.subr.mxu0 %v1095
        %1710 = vmatpush1.msra.mxu0 %v1094
        %1711 = vmatprep.subr.mxu0 %v1099
        %1712 = vmatpush1.msra.mxu0 %v1098
        %1713 = vmatprep.subr.mxu0 %v1103
        %1714 = vmatpush1.msra.mxu0 %v1102
        %1715 = vmatprep.subr.mxu0 %v1107
        %1716 = vmatpush1.msra.mxu0 %v1106
        %1717 = vmatprep.subr.mxu0 %v1111
        %1718 = vmatpush1.msra.mxu0 %v1110
        %1719 = vmatprep.subr.mxu0 %v1115
        %1720 = vmatpush1.msra.mxu0 %v1114
        %1721 = vmatprep.subr.mxu0 %v1119
        %1722 = vmatpush1.msra.mxu0 %v1118
        %1723 = vmatprep.subr.mxu0 %v1123
        %1724 = vmatpush1.msra.mxu0 %v1122
        %1725 = vmatprep.subr.mxu0 %v1127
        %1726 = vmatpush1.msra.mxu0 %v1126
        %1727 = vmatprep.subr.mxu0 %v1131
        %1728 = vmatpush1.msra.mxu0 %v1130
        %1729 = vmatprep.subr.mxu0 %v1135
        %1730 = vmatpush1.msra.mxu0 %v1134
        %1731 = vmatprep.subr.mxu0 %v1139
        %1732 = vmatpush1.msra.mxu0 %v1138
        %1733 = vmatprep.subr.mxu0 %v1143
        %1734 = vmatpush1.msra.mxu0 %v1142
        %1735 = vmatprep.subr.mxu0 %v1147
        %1736 = vmatpush1.msra.mxu0 %v1146
        %1737 = vmatprep.subr.mxu0 %v1151
        %1738 = vmatpush1.msra.mxu0 %v1150
        %1739 = vmatprep.subr.mxu0 %v1155
        %1740 = vmatpush1.msra.mxu0 %v1154
        %1741 = vmatprep.subr.mxu0 %v1159
        %1742 = vmatpush1.msra.mxu0 %v1158
        %1743 = vmatprep.subr.mxu0 %v1163
        %1744 = vmatpush1.msra.mxu0 %v1162
        %1745 = vmatprep.subr.mxu0 %v1167
        %1746 = vmatpush1.msra.mxu0 %v1166
        %1747 = vmatprep.subr.mxu0 %v1171
        %1748 = vmatpush1.msra.mxu0 %v1170
        %1749 = vmatprep.mubr.f32.mxu0 %v1173
        %1750 = vmatmul.mubr.f32.gmra.mrb[0].mxu0 %v1172
        %v1751 = vpop.f32.mrb[0].mxu0
        %v1752 = vadd.f32 %v1271, %v1751
        %v1753 = vpop.f32.mrb[0].mxu0
        %v1754 = vadd.f32 %v1271, %v1753
        %1755 = vmatprep.mubr.f32.mxu0 %v1175
        %1756 = vmatmul.mubr.f32.gmra.mrb[0].mxu0 %v1174
        %v1757 = vpop.f32.mrb[0].mxu0
        %v1758 = vadd.f32 %v1276, %v1757
        %v1759 = vpop.f32.mrb[0].mxu0
        %v1760 = vadd.f32 %v1276, %v1759
        %1761 = vmatprep.mubr.f32.mxu0 %v1177
        %1762 = vmatmul.mubr.f32.gmra.mrb[0].mxu0 %v1176
        %v1763 = vpop.f32.mrb[0].mxu0
        %v1764 = vadd.f32 %v1281, %v1763
        %v1765 = vpop.f32.mrb[0].mxu0
        %v1766 = vadd.f32 %v1281, %v1765
        %1767 = vmatprep.mubr.f32.mxu0 %v1179
        %1768 = vmatmul.mubr.f32.gmra.mrb[0].mxu0 %v1178
        %v1769 = vpop.f32.mrb[0].mxu0
        %v1770 = vadd.f32 %v1286, %v1769
        %v1771 = vpop.f32.mrb[0].mxu0
        %v1772 = vadd.f32 %v1286, %v1771
        %1773 = vmatprep.mubr.f32.mxu0 %v1181
        %1774 = vmatmul.mubr.f32.gmra.mrb[0].mxu0 %v1180
        %v1775 = vpop.f32.mrb[0].mxu0
        %v1776 = vadd.f32 %v1291, %v1775
        %v1777 = vpop.f32.mrb[0].mxu0
        %v1778 = vadd.f32 %v1291, %v1777
        %1779 = vmatprep.mubr.f32.mxu0 %v1183
        %1780 = vmatmul.mubr.f32.gmra.mrb[0].mxu0 %v1182
        %v1781 = vpop.f32.mrb[0].mxu0
        %v1782 = vadd.f32 %v1296, %v1781
        %v1783 = vpop.f32.mrb[0].mxu0
        %v1784 = vadd.f32 %v1296, %v1783
        %1785 = vmatprep.mubr.f32.mxu0 %v1185
        %1786 = vmatmul.mubr.f32.gmra.mrb[0].mxu0 %v1184
        %v1787 = vpop.f32.mrb[0].mxu0
        %v1788 = vadd.f32 %v1301, %v1787
        %v1789 = vpop.f32.mrb[0].mxu0
        %v1790 = vadd.f32 %v1301, %v1789
        %1791 = vmatprep.mubr.f32.mxu0 %v1187
        %1792 = vmatmul.mubr.f32.gmra.mrb[0].mxu0 %v1186
        %v1793 = vpop.f32.mrb[0].mxu0
        %v1794 = vadd.f32 %v1306, %v1793
        %v1795 = vpop.f32.mrb[0].mxu0
        %v1796 = vadd.f32 %v1306, %v1795
        %1797 = vmatprep.mubr.f32.mxu0 %v1189
        %1798 = vmatmul.mubr.f32.gmra.mrb[0].mxu0 %v1188
        %v1799 = vpop.f32.mrb[0].mxu0
        %v1800 = vadd.f32 %v1311, %v1799
        %v1801 = vpop.f32.mrb[0].mxu0
        %v1802 = vadd.f32 %v1311, %v1801
        %1803 = vmatprep.mubr.f32.mxu0 %v1191
        %1804 = vmatmul.mubr.f32.gmra.mrb[0].mxu0 %v1190
        %v1805 = vpop.f32.mrb[0].mxu0
        %v1806 = vadd.f32 %v1316, %v1805
        %v1807 = vpop.f32.mrb[0].mxu0
        %v1808 = vadd.f32 %v1316, %v1807
        %1809 = vmatprep.mubr.f32.mxu0 %v1193
        %1810 = vmatmul.mubr.f32.gmra.mrb[0].mxu0 %v1192
        %v1811 = vpop.f32.mrb[0].mxu0
        %v1812 = vadd.f32 %v1321, %v1811
        %v1813 = vpop.f32.mrb[0].mxu0
        %v1814 = vadd.f32 %v1321, %v1813
        %1815 = vmatprep.mubr.f32.mxu0 %v1195
        %1816 = vmatmul.mubr.f32.gmra.mrb[0].mxu0 %v1194
        %v1817 = vpop.f32.mrb[0].mxu0
        %v1818 = vadd.f32 %v1326, %v1817
        %v1819 = vpop.f32.mrb[0].mxu0
        %v1820 = vadd.f32 %v1326, %v1819
        %1821 = vmatprep.mubr.f32.mxu0 %v1197
        %1822 = vmatmul.mubr.f32.gmra.mrb[0].mxu0 %v1196
        %v1823 = vpop.f32.mrb[0].mxu0
        %v1824 = vadd.f32 %v1331, %v1823
        %v1825 = vpop.f32.mrb[0].mxu0
        %v1826 = vadd.f32 %v1331, %v1825
        %1827 = vmatprep.mubr.f32.mxu0 %v1199
        %1828 = vmatmul.mubr.f32.gmra.mrb[0].mxu0 %v1198
        %v1829 = vpop.f32.mrb[0].mxu0
        %v1830 = vadd.f32 %v1336, %v1829
        %v1831 = vpop.f32.mrb[0].mxu0
        %v1832 = vadd.f32 %v1336, %v1831
        %1833 = vmatprep.mubr.f32.mxu0 %v1201
        %1834 = vmatmul.mubr.f32.gmra.mrb[0].mxu0 %v1200
        %v1835 = vpop.f32.mrb[0].mxu0
        %v1836 = vadd.f32 %v1341, %v1835
        %v1837 = vpop.f32.mrb[0].mxu0
        %v1838 = vadd.f32 %v1341, %v1837
        %1839 = vmatprep.mubr.f32.mxu0 %v1203
        %1840 = vmatmul.mubr.f32.gmra.mrb[0].mxu0 %v1202
        %v1841 = vpop.f32.mrb[0].mxu0
        %v1842 = vadd.f32 %v1346, %v1841
        %v1843 = vpop.f32.mrb[0].mxu0
        %v1844 = vadd.f32 %v1346, %v1843
        %1845 = vmatprep.mubr.f32.mxu0 %v1205
        %1846 = vmatmul.mubr.f32.gmra.mrb[0].mxu0 %v1204
        %v1847 = vpop.f32.mrb[0].mxu0
        %v1848 = vadd.f32 %v1351, %v1847
        %v1849 = vpop.f32.mrb[0].mxu0
        %v1850 = vadd.f32 %v1351, %v1849
        %1851 = vmatprep.mubr.f32.mxu0 %v1207
        %1852 = vmatmul.mubr.f32.gmra.mrb[0].mxu0 %v1206
        %v1853 = vpop.f32.mrb[0].mxu0
        %v1854 = vadd.f32 %v1356, %v1853
        %v1855 = vpop.f32.mrb[0].mxu0
        %v1856 = vadd.f32 %v1356, %v1855
        %1857 = vmatprep.mubr.f32.mxu0 %v1209
        %1858 = vmatmul.mubr.f32.gmra.mrb[0].mxu0 %v1208
        %v1859 = vpop.f32.mrb[0].mxu0
        %v1860 = vadd.f32 %v1361, %v1859
        %v1861 = vpop.f32.mrb[0].mxu0
        %v1862 = vadd.f32 %v1361, %v1861
        %1863 = vmatprep.mubr.f32.mxu0 %v1211
        %1864 = vmatmul.mubr.f32.gmra.mrb[0].mxu0 %v1210
        %v1865 = vpop.f32.mrb[0].mxu0
        %v1866 = vadd.f32 %v1366, %v1865
        %v1867 = vpop.f32.mrb[0].mxu0
        %v1868 = vadd.f32 %v1366, %v1867
        %1869 = vmatprep.mubr.f32.mxu0 %v1213
        %1870 = vmatmul.mubr.f32.gmra.mrb[0].mxu0 %v1212
        %v1871 = vpop.f32.mrb[0].mxu0
        %v1872 = vadd.f32 %v1371, %v1871
        %v1873 = vpop.f32.mrb[0].mxu0
        %v1874 = vadd.f32 %v1371, %v1873
        %1875 = vmatprep.mubr.f32.mxu0 %v1215
        %1876 = vmatmul.mubr.f32.gmra.mrb[0].mxu0 %v1214
        %v1877 = vpop.f32.mrb[0].mxu0
        %v1878 = vadd.f32 %v1376, %v1877
        %v1879 = vpop.f32.mrb[0].mxu0
        %v1880 = vadd.f32 %v1376, %v1879
        %1881 = vmatprep.mubr.f32.mxu0 %v1217
        %1882 = vmatmul.mubr.f32.gmra.mrb[0].mxu0 %v1216
        %v1883 = vpop.f32.mrb[0].mxu0
        %v1884 = vadd.f32 %v1381, %v1883
        %v1885 = vpop.f32.mrb[0].mxu0
        %v1886 = vadd.f32 %v1381, %v1885
        %1887 = vmatprep.mubr.f32.mxu0 %v1219
        %1888 = vmatmul.mubr.f32.gmra.mrb[0].mxu0 %v1218
        %v1889 = vpop.f32.mrb[0].mxu0
        %v1890 = vadd.f32 %v1386, %v1889
        %v1891 = vpop.f32.mrb[0].mxu0
        %v1892 = vadd.f32 %v1386, %v1891
        %1893 = vmatprep.mubr.f32.mxu0 %v1221
        %1894 = vmatmul.mubr.f32.gmra.mrb[0].mxu0 %v1220
        %v1895 = vpop.f32.mrb[0].mxu0
        %v1896 = vadd.f32 %v1391, %v1895
        %v1897 = vpop.f32.mrb[0].mxu0
        %v1898 = vadd.f32 %v1391, %v1897
        %1899 = vmatprep.mubr.f32.mxu0 %v1223
        %1900 = vmatmul.mubr.f32.gmra.mrb[0].mxu0 %v1222
        %v1901 = vpop.f32.mrb[0].mxu0
        %v1902 = vadd.f32 %v1396, %v1901
        %v1903 = vpop.f32.mrb[0].mxu0
        %v1904 = vadd.f32 %v1396, %v1903
        %1905 = vmatprep.mubr.f32.mxu0 %v1225
        %1906 = vmatmul.mubr.f32.gmra.mrb[0].mxu0 %v1224
        %v1907 = vpop.f32.mrb[0].mxu0
        %v1908 = vadd.f32 %v1401, %v1907
        %v1909 = vpop.f32.mrb[0].mxu0
        %v1910 = vadd.f32 %v1401, %v1909
        %1911 = vmatprep.mubr.f32.mxu0 %v1227
        %1912 = vmatmul.mubr.f32.gmra.mrb[0].mxu0 %v1226
        %v1913 = vpop.f32.mrb[0].mxu0
        %v1914 = vadd.f32 %v1406, %v1913
        %v1915 = vpop.f32.mrb[0].mxu0
        %v1916 = vadd.f32 %v1406, %v1915
        %1917 = vmatprep.mubr.f32.mxu0 %v1229
        %1918 = vmatmul.mubr.f32.gmra.mrb[0].mxu0 %v1228
        %v1919 = vpop.f32.mrb[0].mxu0
        %v1920 = vadd.f32 %v1411, %v1919
        %v1921 = vpop.f32.mrb[0].mxu0
        %v1922 = vadd.f32 %v1411, %v1921
        %1923 = vmatprep.mubr.f32.mxu0 %v1231
        %1924 = vmatmul.mubr.f32.gmra.mrb[0].mxu0 %v1230
        %v1925 = vpop.f32.mrb[0].mxu0
        %v1926 = vadd.f32 %v1416, %v1925
        %v1927 = vpop.f32.mrb[0].mxu0
        %v1928 = vadd.f32 %v1416, %v1927
        %1929 = vmatprep.mubr.f32.mxu0 %v1233
        %1930 = vmatmul.mubr.f32.gmra.mrb[0].mxu0 %v1232
        %v1931 = vpop.f32.mrb[0].mxu0
        %v1932 = vadd.f32 %v1421, %v1931
        %v1933 = vpop.f32.mrb[0].mxu0
        %v1934 = vadd.f32 %v1421, %v1933
        %1935 = vmatprep.mubr.f32.mxu0 %v1235
        %1936 = vmatmul.mubr.f32.gmra.mrb[0].mxu0 %v1234
        %v1937 = vpop.f32.mrb[0].mxu0
        %v1938 = vadd.f32 %v1426, %v1937
        %v1939 = vpop.f32.mrb[0].mxu0
        %v1940 = vadd.f32 %v1426, %v1939
        %1941 = vdwg.mxu0
        %v1942 = vmax.f32 %v1495, 0.0
        %v1943 = vmax.f32 %v1497, 0.0
        %v1944 = vmax.f32 %v1752, 0.0
        %v1945 = vmax.f32 %v1754, 0.0
        %v1946 = vmax.f32 %v1501, 0.0
        %v1947 = vmax.f32 %v1503, 0.0
        %v1948 = vmax.f32 %v1758, 0.0
        %v1949 = vmax.f32 %v1760, 0.0
        %v1950 = vmax.f32 %v1507, 0.0
        %v1951 = vmax.f32 %v1509, 0.0
        %v1952 = vmax.f32 %v1764, 0.0
        %v1953 = vmax.f32 %v1766, 0.0
        %v1954 = vmax.f32 %v1513, 0.0
        %v1955 = vmax.f32 %v1515, 0.0
        %v1956 = vmax.f32 %v1770, 0.0
        %v1957 = vmax.f32 %v1772, 0.0
        %v1958 = vmax.f32 %v1519, 0.0
        %v1959 = vmax.f32 %v1521, 0.0
        %v1960 = vmax.f32 %v1776, 0.0
        %v1961 = vmax.f32 %v1778, 0.0
        %v1962 = vmax.f32 %v1525, 0.0
        %v1963 = vmax.f32 %v1527, 0.0
        %v1964 = vmax.f32 %v1782, 0.0
        %v1965 = vmax.f32 %v1784, 0.0
        %v1966 = vmax.f32 %v1531, 0.0
        %v1967 = vmax.f32 %v1533, 0.0
        %v1968 = vmax.f32 %v1788, 0.0
        %v1969 = vmax.f32 %v1790, 0.0
        %v1970 = vmax.f32 %v1537, 0.0
        %v1971 = vmax.f32 %v1539, 0.0
        %v1972 = vmax.f32 %v1794, 0.0
        %v1973 = vmax.f32 %v1796, 0.0
        %v1974 = vmax.f32 %v1543, 0.0
        %v1975 = vmax.f32 %v1545, 0.0
        %v1976 = vmax.f32 %v1800, 0.0
        %v1977 = vmax.f32 %v1802, 0.0
        %v1978 = vmax.f32 %v1549, 0.0
        %v1979 = vmax.f32 %v1551, 0.0
        %v1980 = vmax.f32 %v1806, 0.0
        %v1981 = vmax.f32 %v1808, 0.0
        %v1982 = vmax.f32 %v1555, 0.0
        %v1983 = vmax.f32 %v1557, 0.0
        %v1984 = vmax.f32 %v1812, 0.0
        %v1985 = vmax.f32 %v1814, 0.0
        %v1986 = vmax.f32 %v1561, 0.0
        %v1987 = vmax.f32 %v1563, 0.0
        %v1988 = vmax.f32 %v1818, 0.0
        %v1989 = vmax.f32 %v1820, 0.0
        %v1990 = vmax.f32 %v1567, 0.0
        %v1991 = vmax.f32 %v1569, 0.0
        %v1992 = vmax.f32 %v1824, 0.0
        %v1993 = vmax.f32 %v1826, 0.0
        %v1994 = vmax.f32 %v1573, 0.0
        %v1995 = vmax.f32 %v1575, 0.0
        %v1996 = vmax.f32 %v1830, 0.0
        %v1997 = vmax.f32 %v1832, 0.0
        %v1998 = vmax.f32 %v1579, 0.0
        %v1999 = vmax.f32 %v1581, 0.0
        %v2000 = vmax.f32 %v1836, 0.0
        %v2001 = vmax.f32 %v1838, 0.0
        %v2002 = vmax.f32 %v1585, 0.0
        %v2003 = vmax.f32 %v1587, 0.0
        %v2004 = vmax.f32 %v1842, 0.0
        %v2005 = vmax.f32 %v1844, 0.0
        %v2006 = vmax.f32 %v1591, 0.0
        %v2007 = vmax.f32 %v1593, 0.0
        %v2008 = vmax.f32 %v1848, 0.0
        %v2009 = vmax.f32 %v1850, 0.0
        %v2010 = vmax.f32 %v1597, 0.0
        %v2011 = vmax.f32 %v1599, 0.0
        %v2012 = vmax.f32 %v1854, 0.0
        %v2013 = vmax.f32 %v1856, 0.0
        %v2014 = vmax.f32 %v1603, 0.0
        %v2015 = vmax.f32 %v1605, 0.0
        %v2016 = vmax.f32 %v1860, 0.0
        %v2017 = vmax.f32 %v1862, 0.0
        %v2018 = vmax.f32 %v1609, 0.0
        %v2019 = vmax.f32 %v1611, 0.0
        %v2020 = vmax.f32 %v1866, 0.0
        %v2021 = vmax.f32 %v1868, 0.0
        %v2022 = vmax.f32 %v1615, 0.0
        %v2023 = vmax.f32 %v1617, 0.0
        %v2024 = vmax.f32 %v1872, 0.0
        %v2025 = vmax.f32 %v1874, 0.0
        %v2026 = vmax.f32 %v1621, 0.0
        %v2027 = vmax.f32 %v1623, 0.0
        %v2028 = vmax.f32 %v1878, 0.0
        %v2029 = vmax.f32 %v1880, 0.0
        %v2030 = vmax.f32 %v1627, 0.0
        %v2031 = vmax.f32 %v1629, 0.0
        %v2032 = vmax.f32 %v1884, 0.0
        %v2033 = vmax.f32 %v1886, 0.0
        %v2034 = vmax.f32 %v1633, 0.0
        %v2035 = vmax.f32 %v1635, 0.0
        %v2036 = vmax.f32 %v1890, 0.0
        %v2037 = vmax.f32 %v1892, 0.0
        %v2038 = vmax.f32 %v1639, 0.0
        %v2039 = vmax.f32 %v1641, 0.0
        %v2040 = vmax.f32 %v1896, 0.0
        %v2041 = vmax.f32 %v1898, 0.0
        %v2042 = vmax.f32 %v1645, 0.0
        %v2043 = vmax.f32 %v1647, 0.0
        %v2044 = vmax.f32 %v1902, 0.0
        %v2045 = vmax.f32 %v1904, 0.0
        %v2046 = vmax.f32 %v1651, 0.0
        %v2047 = vmax.f32 %v1653, 0.0
        %v2048 = vmax.f32 %v1908, 0.0
        %v2049 = vmax.f32 %v1910, 0.0
        %v2050 = vmax.f32 %v1657, 0.0
        %v2051 = vmax.f32 %v1659, 0.0
        %v2052 = vmax.f32 %v1914, 0.0
        %v2053 = vmax.f32 %v1916, 0.0
        %v2054 = vmax.f32 %v1663, 0.0
        %v2055 = vmax.f32 %v1665, 0.0
        %v2056 = vmax.f32 %v1920, 0.0
        %v2057 = vmax.f32 %v1922, 0.0
        %v2058 = vmax.f32 %v1669, 0.0
        %v2059 = vmax.f32 %v1671, 0.0
        %v2060 = vmax.f32 %v1926, 0.0
        %v2061 = vmax.f32 %v1928, 0.0
        %v2062 = vmax.f32 %v1675, 0.0
        %v2063 = vmax.f32 %v1677, 0.0
        %v2064 = vmax.f32 %v1932, 0.0
        %v2065 = vmax.f32 %v1934, 0.0
        %v2066 = vmax.f32 %v1681, 0.0
        %v2067 = vmax.f32 %v1683, 0.0
        %v2068 = vmax.f32 %v1938, 0.0
        %v2069 = vmax.f32 %v1940, 0.0
        %v2070 = vld [vmem:[%s5] sm:$0xff]
        %v2071 = vld [vmem:[%s5 + $0x8] sm:$0xff]
        %v2072 = vld [vmem:[%s5 + $0x10] sm:$0xff]
        %v2073 = vld [vmem:[%s5 + $0x18] sm:$0xff]
        %v2074 = vld [vmem:[%s5 + $0x20] sm:$0xff]
        %v2075 = vld [vmem:[%s5 + $0x28] sm:$0xff]
        %v2076 = vld [vmem:[%s5 + $0x30] sm:$0xff]
        %v2077 = vld [vmem:[%s5 + $0x38] sm:$0xff]
        %v2078 = vld [vmem:[%s5 + $0x40] sm:$0xff]
        %v2079 = vld [vmem:[%s5 + $0x48] sm:$0xff]
        %v2080 = vld [vmem:[%s5 + $0x50] sm:$0xff]
        %v2081 = vld [vmem:[%s5 + $0x58] sm:$0xff]
        %v2082 = vld [vmem:[%s5 + $0x60] sm:$0xff]
        %v2083 = vld [vmem:[%s5 + $0x68] sm:$0xff]
        %v2084 = vld [vmem:[%s5 + $0x70] sm:$0xff]
        %v2085 = vld [vmem:[%s5 + $0x78] sm:$0xff]
        %v2086 = vld [vmem:[%s5 + $0x80] sm:$0xff]
        %v2087 = vld [vmem:[%s5 + $0x88] sm:$0xff]
        %v2088 = vld [vmem:[%s5 + $0x90] sm:$0xff]
        %v2089 = vld [vmem:[%s5 + $0x98] sm:$0xff]
        %v2090 = vld [vmem:[%s5 + $0xa0] sm:$0xff]
        %v2091 = vld [vmem:[%s5 + $0xa8] sm:$0xff]
        %v2092 = vld [vmem:[%s5 + $0xb0] sm:$0xff]
        %v2093 = vld [vmem:[%s5 + $0xb8] sm:$0xff]
        %v2094 = vld [vmem:[%s5 + $0xc0] sm:$0xff]
        %v2095 = vld [vmem:[%s5 + $0xc8] sm:$0xff]
        %v2096 = vld [vmem:[%s5 + $0xd0] sm:$0xff]
        %v2097 = vld [vmem:[%s5 + $0xd8] sm:$0xff]
        %v2098 = vld [vmem:[%s5 + $0xe0] sm:$0xff]
        %v2099 = vld [vmem:[%s5 + $0xe8] sm:$0xff]
        %v2100 = vld [vmem:[%s5 + $0xf0] sm:$0xff]
        %v2101 = vld [vmem:[%s5 + $0xf8] sm:$0xff]
        %v2102 = vld [vmem:[%s5 + $0x100] sm:$0xff]
        %v2103 = vld [vmem:[%s5 + $0x108] sm:$0xff]
        %v2104 = vld [vmem:[%s5 + $0x110] sm:$0xff]
        %v2105 = vld [vmem:[%s5 + $0x118] sm:$0xff]
        %v2106 = vld [vmem:[%s5 + $0x120] sm:$0xff]
        %v2107 = vld [vmem:[%s5 + $0x128] sm:$0xff]
        %v2108 = vld [vmem:[%s5 + $0x130] sm:$0xff]
        %v2109 = vld [vmem:[%s5 + $0x138] sm:$0xff]
        %v2110 = vld [vmem:[%s5 + $0x140] sm:$0xff]
        %v2111 = vld [vmem:[%s5 + $0x148] sm:$0xff]
        %v2112 = vld [vmem:[%s5 + $0x150] sm:$0xff]
        %v2113 = vld [vmem:[%s5 + $0x158] sm:$0xff]
        %v2114 = vld [vmem:[%s5 + $0x160] sm:$0xff]
        %v2115 = vld [vmem:[%s5 + $0x168] sm:$0xff]
        %v2116 = vld [vmem:[%s5 + $0x170] sm:$0xff]
        %v2117 = vld [vmem:[%s5 + $0x178] sm:$0xff]
        %v2118 = vld [vmem:[%s5 + $0x180] sm:$0xff]
        %v2119 = vld [vmem:[%s5 + $0x188] sm:$0xff]
        %v2120 = vld [vmem:[%s5 + $0x190] sm:$0xff]
        %v2121 = vld [vmem:[%s5 + $0x198] sm:$0xff]
        %v2122 = vld [vmem:[%s5 + $0x1a0] sm:$0xff]
        %v2123 = vld [vmem:[%s5 + $0x1a8] sm:$0xff]
        %v2124 = vld [vmem:[%s5 + $0x1b0] sm:$0xff]
        %v2125 = vld [vmem:[%s5 + $0x1b8] sm:$0xff]
        %v2126 = vld [vmem:[%s5 + $0x1c0] sm:$0xff]
        %v2127 = vld [vmem:[%s5 + $0x1c8] sm:$0xff]
        %v2128 = vld [vmem:[%s5 + $0x1d0] sm:$0xff]
        %v2129 = vld [vmem:[%s5 + $0x1d8] sm:$0xff]
        %v2130 = vld [vmem:[%s5 + $0x1e0] sm:$0xff]
        %v2131 = vld [vmem:[%s5 + $0x1e8] sm:$0xff]
        %v2132 = vld [vmem:[%s5 + $0x1f0] sm:$0xff]
        %v2133 = vld [vmem:[%s5 + $0x1f8] sm:$0xff]
        %v2134 = vld [vmem:[%s6] sm:$0xff]
        %v2135 = vld [vmem:[%s6 + $0x8] sm:$0xff]
        %v2136 = vld [vmem:[%s6 + $0x10] sm:$0xff]
        %v2137 = vld [vmem:[%s6 + $0x18] sm:$0xff]
        %v2138 = vld [vmem:[%s6 + $0x20] sm:$0xff]
        %v2139 = vld [vmem:[%s6 + $0x28] sm:$0xff]
        %v2140 = vld [vmem:[%s6 + $0x30] sm:$0xff]
        %v2141 = vld [vmem:[%s6 + $0x38] sm:$0xff]
        %v2142 = vld [vmem:[%s6 + $0x40] sm:$0xff]
        %v2143 = vld [vmem:[%s6 + $0x48] sm:$0xff]
        %v2144 = vld [vmem:[%s6 + $0x50] sm:$0xff]
        %v2145 = vld [vmem:[%s6 + $0x58] sm:$0xff]
        %v2146 = vld [vmem:[%s6 + $0x60] sm:$0xff]
        %v2147 = vld [vmem:[%s6 + $0x68] sm:$0xff]
        %v2148 = vld [vmem:[%s6 + $0x70] sm:$0xff]
        %v2149 = vld [vmem:[%s6 + $0x78] sm:$0xff]
        %v2150 = vld [vmem:[%s6 + $0x80] sm:$0xff]
        %v2151 = vld [vmem:[%s6 + $0x88] sm:$0xff]
        %v2152 = vld [vmem:[%s6 + $0x90] sm:$0xff]
        %v2153 = vld [vmem:[%s6 + $0x98] sm:$0xff]
        %v2154 = vld [vmem:[%s6 + $0xa0] sm:$0xff]
        %v2155 = vld [vmem:[%s6 + $0xa8] sm:$0xff]
        %v2156 = vld [vmem:[%s6 + $0xb0] sm:$0xff]
        %v2157 = vld [vmem:[%s6 + $0xb8] sm:$0xff]
        %v2158 = vld [vmem:[%s6 + $0xc0] sm:$0xff]
        %v2159 = vld [vmem:[%s6 + $0xc8] sm:$0xff]
        %v2160 = vld [vmem:[%s6 + $0xd0] sm:$0xff]
        %v2161 = vld [vmem:[%s6 + $0xd8] sm:$0xff]
        %v2162 = vld [vmem:[%s6 + $0xe0] sm:$0xff]
        %v2163 = vld [vmem:[%s6 + $0xe8] sm:$0xff]
        %v2164 = vld [vmem:[%s6 + $0xf0] sm:$0xff]
        %v2165 = vld [vmem:[%s6 + $0xf8] sm:$0xff]
        %2167 = vset.pattern.permute.xlu0 0
        %2168 = vperm.xlu0 %2167, %v2134
        %v2169 = vpop.permute.xlu0 %2168
        %2172 = vset.pattern.permute.xlu0 0
        %2173 = vperm.xlu0 %2172, %v2135
        %v2174 = vpop.permute.xlu0 %2173
        %2177 = vset.pattern.permute.xlu0 0
        %2178 = vperm.xlu0 %2177, %v2136
        %v2179 = vpop.permute.xlu0 %2178
        %2182 = vset.pattern.permute.xlu0 0
        %2183 = vperm.xlu0 %2182, %v2137
        %v2184 = vpop.permute.xlu0 %2183
        %2187 = vset.pattern.permute.xlu0 0
        %2188 = vperm.xlu0 %2187, %v2138
        %v2189 = vpop.permute.xlu0 %2188
        %2192 = vset.pattern.permute.xlu0 0
        %2193 = vperm.xlu0 %2192, %v2139
        %v2194 = vpop.permute.xlu0 %2193
        %2197 = vset.pattern.permute.xlu0 0
        %2198 = vperm.xlu0 %2197, %v2140
        %v2199 = vpop.permute.xlu0 %2198
        %2202 = vset.pattern.permute.xlu0 0
        %2203 = vperm.xlu0 %2202, %v2141
        %v2204 = vpop.permute.xlu0 %2203
        %2207 = vset.pattern.permute.xlu0 0
        %2208 = vperm.xlu0 %2207, %v2142
        %v2209 = vpop.permute.xlu0 %2208
        %2212 = vset.pattern.permute.xlu0 0
        %2213 = vperm.xlu0 %2212, %v2143
        %v2214 = vpop.permute.xlu0 %2213
        %2217 = vset.pattern.permute.xlu0 0
        %2218 = vperm.xlu0 %2217, %v2144
        %v2219 = vpop.permute.xlu0 %2218
        %2222 = vset.pattern.permute.xlu0 0
        %2223 = vperm.xlu0 %2222, %v2145
        %v2224 = vpop.permute.xlu0 %2223
        %2227 = vset.pattern.permute.xlu0 0
        %2228 = vperm.xlu0 %2227, %v2146
        %v2229 = vpop.permute.xlu0 %2228
        %2232 = vset.pattern.permute.xlu0 0
        %2233 = vperm.xlu0 %2232, %v2147
        %v2234 = vpop.permute.xlu0 %2233
        %2237 = vset.pattern.permute.xlu0 0
        %2238 = vperm.xlu0 %2237, %v2148
        %v2239 = vpop.permute.xlu0 %2238
        %2242 = vset.pattern.permute.xlu0 0
        %2243 = vperm.xlu0 %2242, %v2149
        %v2244 = vpop.permute.xlu0 %2243
        %2247 = vset.pattern.permute.xlu0 0
        %2248 = vperm.xlu0 %2247, %v2150
        %v2249 = vpop.permute.xlu0 %2248
        %2252 = vset.pattern.permute.xlu0 0
        %2253 = vperm.xlu0 %2252, %v2151
        %v2254 = vpop.permute.xlu0 %2253
        %2257 = vset.pattern.permute.xlu0 0
        %2258 = vperm.xlu0 %2257, %v2152
        %v2259 = vpop.permute.xlu0 %2258
        %2262 = vset.pattern.permute.xlu0 0
        %2263 = vperm.xlu0 %2262, %v2153
        %v2264 = vpop.permute.xlu0 %2263
        %2267 = vset.pattern.permute.xlu0 0
        %2268 = vperm.xlu0 %2267, %v2154
        %v2269 = vpop.permute.xlu0 %2268
        %2272 = vset.pattern.permute.xlu0 0
        %2273 = vperm.xlu0 %2272, %v2155
        %v2274 = vpop.permute.xlu0 %2273
        %2277 = vset.pattern.permute.xlu0 0
        %2278 = vperm.xlu0 %2277, %v2156
        %v2279 = vpop.permute.xlu0 %2278
        %2282 = vset.pattern.permute.xlu0 0
        %2283 = vperm.xlu0 %2282, %v2157
        %v2284 = vpop.permute.xlu0 %2283
        %2287 = vset.pattern.permute.xlu0 0
        %2288 = vperm.xlu0 %2287, %v2158
        %v2289 = vpop.permute.xlu0 %2288
        %2292 = vset.pattern.permute.xlu0 0
        %2293 = vperm.xlu0 %2292, %v2159
        %v2294 = vpop.permute.xlu0 %2293
        %2297 = vset.pattern.permute.xlu0 0
        %2298 = vperm.xlu0 %2297, %v2160
        %v2299 = vpop.permute.xlu0 %2298
        %2302 = vset.pattern.permute.xlu0 0
        %2303 = vperm.xlu0 %2302, %v2161
        %v2304 = vpop.permute.xlu0 %2303
        %2307 = vset.pattern.permute.xlu0 0
        %2308 = vperm.xlu0 %2307, %v2162
        %v2309 = vpop.permute.xlu0 %2308
        %2312 = vset.pattern.permute.xlu0 0
        %2313 = vperm.xlu0 %2312, %v2163
        %v2314 = vpop.permute.xlu0 %2313
        %2317 = vset.pattern.permute.xlu0 0
        %2318 = vperm.xlu0 %2317, %v2164
        %v2319 = vpop.permute.xlu0 %2318
        %2322 = vset.pattern.permute.xlu0 0
        %2323 = vperm.xlu0 %2322, %v2165
        %v2324 = vpop.permute.xlu0 %2323
        %2326 = vmatprep.subr.mxu0 %v1943
        %2327 = vmatpush1.msra.mxu0 %v1942
        %2328 = vmatprep.subr.mxu0 %v1947
        %2329 = vmatpush1.msra.mxu0 %v1946
        %2330 = vmatprep.subr.mxu0 %v1951
        %2331 = vmatpush1.msra.mxu0 %v1950
        %2332 = vmatprep.subr.mxu0 %v1955
        %2333 = vmatpush1.msra.mxu0 %v1954
        %2334 = vmatprep.subr.mxu0 %v1959
        %2335 = vmatpush1.msra.mxu0 %v1958
        %2336 = vmatprep.subr.mxu0 %v1963
        %2337 = vmatpush1.msra.mxu0 %v1962
        %2338 = vmatprep.subr.mxu0 %v1967
        %2339 = vmatpush1.msra.mxu0 %v1966
        %2340 = vmatprep.subr.mxu0 %v1971
        %2341 = vmatpush1.msra.mxu0 %v1970
        %2342 = vmatprep.subr.mxu0 %v1975
        %2343 = vmatpush1.msra.mxu0 %v1974
        %2344 = vmatprep.subr.mxu0 %v1979
        %2345 = vmatpush1.msra.mxu0 %v1978
        %2346 = vmatprep.subr.mxu0 %v1983
        %2347 = vmatpush1.msra.mxu0 %v1982
        %2348 = vmatprep.subr.mxu0 %v1987
        %2349 = vmatpush1.msra.mxu0 %v1986
        %2350 = vmatprep.subr.mxu0 %v1991
        %2351 = vmatpush1.msra.mxu0 %v1990
        %2352 = vmatprep.subr.mxu0 %v1995
        %2353 = vmatpush1.msra.mxu0 %v1994
        %2354 = vmatprep.subr.mxu0 %v1999
        %2355 = vmatpush1.msra.mxu0 %v1998
        %2356 = vmatprep.subr.mxu0 %v2003
        %2357 = vmatpush1.msra.mxu0 %v2002
        %2358 = vmatprep.subr.mxu0 %v2007
        %2359 = vmatpush1.msra.mxu0 %v2006
        %2360 = vmatprep.subr.mxu0 %v2011
        %2361 = vmatpush1.msra.mxu0 %v2010
        %2362 = vmatprep.subr.mxu0 %v2015
        %2363 = vmatpush1.msra.mxu0 %v2014
        %2364 = vmatprep.subr.mxu0 %v2019
        %2365 = vmatpush1.msra.mxu0 %v2018
        %2366 = vmatprep.subr.mxu0 %v2023
        %2367 = vmatpush1.msra.mxu0 %v2022
        %2368 = vmatprep.subr.mxu0 %v2027
        %2369 = vmatpush1.msra.mxu0 %v2026
        %2370 = vmatprep.subr.mxu0 %v2031
        %2371 = vmatpush1.msra.mxu0 %v2030
        %2372 = vmatprep.subr.mxu0 %v2035
        %2373 = vmatpush1.msra.mxu0 %v2034
        %2374 = vmatprep.subr.mxu0 %v2039
        %2375 = vmatpush1.msra.mxu0 %v2038
        %2376 = vmatprep.subr.mxu0 %v2043
        %2377 = vmatpush1.msra.mxu0 %v2042
        %2378 = vmatprep.subr.mxu0 %v2047
        %2379 = vmatpush1.msra.mxu0 %v2046
        %2380 = vmatprep.subr.mxu0 %v2051
        %2381 = vmatpush1.msra.mxu0 %v2050
        %2382 = vmatprep.subr.mxu0 %v2055
        %2383 = vmatpush1.msra.mxu0 %v2054
        %2384 = vmatprep.subr.mxu0 %v2059
        %2385 = vmatpush1.msra.mxu0 %v2058
        %2386 = vmatprep.subr.mxu0 %v2063
        %2387 = vmatpush1.msra.mxu0 %v2062
        %2388 = vmatprep.subr.mxu0 %v2067
        %2389 = vmatpush1.msra.mxu0 %v2066
        %2390 = vmatprep.mubr.f32.mxu0 %v2071
        %2391 = vmatmul.mubr.f32.gmra.mrb[0].mxu0 %v2070
        %v2392 = vpop.f32.mrb[0].mxu0
        %v2393 = vadd.f32 %v2169, %v2392
        %v2394 = vpop.f32.mrb[0].mxu0
        %v2395 = vadd.f32 %v2169, %v2394
        %2396 = vmatprep.mubr.f32.mxu0 %v2073
        %2397 = vmatmul.mubr.f32.gmra.mrb[0].mxu0 %v2072
        %v2398 = vpop.f32.mrb[0].mxu0
        %v2399 = vadd.f32 %v2174, %v2398
        %v2400 = vpop.f32.mrb[0].mxu0
        %v2401 = vadd.f32 %v2174, %v2400
        %2402 = vmatprep.mubr.f32.mxu0 %v2075
        %2403 = vmatmul.mubr.f32.gmra.mrb[0].mxu0 %v2074
        %v2404 = vpop.f32.mrb[0].mxu0
        %v2405 = vadd.f32 %v2179, %v2404
        %v2406 = vpop.f32.mrb[0].mxu0
        %v2407 = vadd.f32 %v2179, %v2406
        %2408 = vmatprep.mubr.f32.mxu0 %v2077
        %2409 = vmatmul.mubr.f32.gmra.mrb[0].mxu0 %v2076
        %v2410 = vpop.f32.mrb[0].mxu0
        %v2411 = vadd.f32 %v2184, %v2410
        %v2412 = vpop.f32.mrb[0].mxu0
        %v2413 = vadd.f32 %v2184, %v2412
        %2414 = vmatprep.mubr.f32.mxu0 %v2079
        %2415 = vmatmul.mubr.f32.gmra.mrb[0].mxu0 %v2078
        %v2416 = vpop.f32.mrb[0].mxu0
        %v2417 = vadd.f32 %v2189, %v2416
        %v2418 = vpop.f32.mrb[0].mxu0
        %v2419 = vadd.f32 %v2189, %v2418
        %2420 = vmatprep.mubr.f32.mxu0 %v2081
        %2421 = vmatmul.mubr.f32.gmra.mrb[0].mxu0 %v2080
        %v2422 = vpop.f32.mrb[0].mxu0
        %v2423 = vadd.f32 %v2194, %v2422
        %v2424 = vpop.f32.mrb[0].mxu0
        %v2425 = vadd.f32 %v2194, %v2424
        %2426 = vmatprep.mubr.f32.mxu0 %v2083
        %2427 = vmatmul.mubr.f32.gmra.mrb[0].mxu0 %v2082
        %v2428 = vpop.f32.mrb[0].mxu0
        %v2429 = vadd.f32 %v2199, %v2428
        %v2430 = vpop.f32.mrb[0].mxu0
        %v2431 = vadd.f32 %v2199, %v2430
        %2432 = vmatprep.mubr.f32.mxu0 %v2085
        %2433 = vmatmul.mubr.f32.gmra.mrb[0].mxu0 %v2084
        %v2434 = vpop.f32.mrb[0].mxu0
        %v2435 = vadd.f32 %v2204, %v2434
        %v2436 = vpop.f32.mrb[0].mxu0
        %v2437 = vadd.f32 %v2204, %v2436
        %2438 = vmatprep.mubr.f32.mxu0 %v2087
        %2439 = vmatmul.mubr.f32.gmra.mrb[0].mxu0 %v2086
        %v2440 = vpop.f32.mrb[0].mxu0
        %v2441 = vadd.f32 %v2209, %v2440
        %v2442 = vpop.f32.mrb[0].mxu0
        %v2443 = vadd.f32 %v2209, %v2442
        %2444 = vmatprep.mubr.f32.mxu0 %v2089
        %2445 = vmatmul.mubr.f32.gmra.mrb[0].mxu0 %v2088
        %v2446 = vpop.f32.mrb[0].mxu0
        %v2447 = vadd.f32 %v2214, %v2446
        %v2448 = vpop.f32.mrb[0].mxu0
        %v2449 = vadd.f32 %v2214, %v2448
        %2450 = vmatprep.mubr.f32.mxu0 %v2091
        %2451 = vmatmul.mubr.f32.gmra.mrb[0].mxu0 %v2090
        %v2452 = vpop.f32.mrb[0].mxu0
        %v2453 = vadd.f32 %v2219, %v2452
        %v2454 = vpop.f32.mrb[0].mxu0
        %v2455 = vadd.f32 %v2219, %v2454
        %2456 = vmatprep.mubr.f32.mxu0 %v2093
        %2457 = vmatmul.mubr.f32.gmra.mrb[0].mxu0 %v2092
        %v2458 = vpop.f32.mrb[0].mxu0
        %v2459 = vadd.f32 %v2224, %v2458
        %v2460 = vpop.f32.mrb[0].mxu0
        %v2461 = vadd.f32 %v2224, %v2460
        %2462 = vmatprep.mubr.f32.mxu0 %v2095
        %2463 = vmatmul.mubr.f32.gmra.mrb[0].mxu0 %v2094
        %v2464 = vpop.f32.mrb[0].mxu0
        %v2465 = vadd.f32 %v2229, %v2464
        %v2466 = vpop.f32.mrb[0].mxu0
        %v2467 = vadd.f32 %v2229, %v2466
        %2468 = vmatprep.mubr.f32.mxu0 %v2097
        %2469 = vmatmul.mubr.f32.gmra.mrb[0].mxu0 %v2096
        %v2470 = vpop.f32.mrb[0].mxu0
        %v2471 = vadd.f32 %v2234, %v2470
        %v2472 = vpop.f32.mrb[0].mxu0
        %v2473 = vadd.f32 %v2234, %v2472
        %2474 = vmatprep.mubr.f32.mxu0 %v2099
        %2475 = vmatmul.mubr.f32.gmra.mrb[0].mxu0 %v2098
        %v2476 = vpop.f32.mrb[0].mxu0
        %v2477 = vadd.f32 %v2239, %v2476
        %v2478 = vpop.f32.mrb[0].mxu0
        %v2479 = vadd.f32 %v2239, %v2478
        %2480 = vmatprep.mubr.f32.mxu0 %v2101
        %2481 = vmatmul.mubr.f32.gmra.mrb[0].mxu0 %v2100
        %v2482 = vpop.f32.mrb[0].mxu0
        %v2483 = vadd.f32 %v2244, %v2482
        %v2484 = vpop.f32.mrb[0].mxu0
        %v2485 = vadd.f32 %v2244, %v2484
        %2486 = vmatprep.mubr.f32.mxu0 %v2103
        %2487 = vmatmul.mubr.f32.gmra.mrb[0].mxu0 %v2102
        %v2488 = vpop.f32.mrb[0].mxu0
        %v2489 = vadd.f32 %v2249, %v2488
        %v2490 = vpop.f32.mrb[0].mxu0
        %v2491 = vadd.f32 %v2249, %v2490
        %2492 = vmatprep.mubr.f32.mxu0 %v2105
        %2493 = vmatmul.mubr.f32.gmra.mrb[0].mxu0 %v2104
        %v2494 = vpop.f32.mrb[0].mxu0
        %v2495 = vadd.f32 %v2254, %v2494
        %v2496 = vpop.f32.mrb[0].mxu0
        %v2497 = vadd.f32 %v2254, %v2496
        %2498 = vmatprep.mubr.f32.mxu0 %v2107
        %2499 = vmatmul.mubr.f32.gmra.mrb[0].mxu0 %v2106
        %v2500 = vpop.f32.mrb[0].mxu0
        %v2501 = vadd.f32 %v2259, %v2500
        %v2502 = vpop.f32.mrb[0].mxu0
        %v2503 = vadd.f32 %v2259, %v2502
        %2504 = vmatprep.mubr.f32.mxu0 %v2109
        %2505 = vmatmul.mubr.f32.gmra.mrb[0].mxu0 %v2108
        %v2506 = vpop.f32.mrb[0].mxu0
        %v2507 = vadd.f32 %v2264, %v2506
        %v2508 = vpop.f32.mrb[0].mxu0
        %v2509 = vadd.f32 %v2264, %v2508
        %2510 = vmatprep.mubr.f32.mxu0 %v2111
        %2511 = vmatmul.mubr.f32.gmra.mrb[0].mxu0 %v2110
        %v2512 = vpop.f32.mrb[0].mxu0
        %v2513 = vadd.f32 %v2269, %v2512
        %v2514 = vpop.f32.mrb[0].mxu0
        %v2515 = vadd.f32 %v2269, %v2514
        %2516 = vmatprep.mubr.f32.mxu0 %v2113
        %2517 = vmatmul.mubr.f32.gmra.mrb[0].mxu0 %v2112
        %v2518 = vpop.f32.mrb[0].mxu0
        %v2519 = vadd.f32 %v2274, %v2518
        %v2520 = vpop.f32.mrb[0].mxu0
        %v2521 = vadd.f32 %v2274, %v2520
        %2522 = vmatprep.mubr.f32.mxu0 %v2115
        %2523 = vmatmul.mubr.f32.gmra.mrb[0].mxu0 %v2114
        %v2524 = vpop.f32.mrb[0].mxu0
        %v2525 = vadd.f32 %v2279, %v2524
        %v2526 = vpop.f32.mrb[0].mxu0
        %v2527 = vadd.f32 %v2279, %v2526
        %2528 = vmatprep.mubr.f32.mxu0 %v2117
        %2529 = vmatmul.mubr.f32.gmra.mrb[0].mxu0 %v2116
        %v2530 = vpop.f32.mrb[0].mxu0
        %v2531 = vadd.f32 %v2284, %v2530
        %v2532 = vpop.f32.mrb[0].mxu0
        %v2533 = vadd.f32 %v2284, %v2532
        %2534 = vmatprep.mubr.f32.mxu0 %v2119
        %2535 = vmatmul.mubr.f32.gmra.mrb[0].mxu0 %v2118
        %v2536 = vpop.f32.mrb[0].mxu0
        %v2537 = vadd.f32 %v2289, %v2536
        %v2538 = vpop.f32.mrb[0].mxu0
        %v2539 = vadd.f32 %v2289, %v2538
        %2540 = vmatprep.mubr.f32.mxu0 %v2121
        %2541 = vmatmul.mubr.f32.gmra.mrb[0].mxu0 %v2120
        %v2542 = vpop.f32.mrb[0].mxu0
        %v2543 = vadd.f32 %v2294, %v2542
        %v2544 = vpop.f32.mrb[0].mxu0
        %v2545 = vadd.f32 %v2294, %v2544
        %2546 = vmatprep.mubr.f32.mxu0 %v2123
        %2547 = vmatmul.mubr.f32.gmra.mrb[0].mxu0 %v2122
        %v2548 = vpop.f32.mrb[0].mxu0
        %v2549 = vadd.f32 %v2299, %v2548
        %v2550 = vpop.f32.mrb[0].mxu0
        %v2551 = vadd.f32 %v2299, %v2550
        %2552 = vmatprep.mubr.f32.mxu0 %v2125
        %2553 = vmatmul.mubr.f32.gmra.mrb[0].mxu0 %v2124
        %v2554 = vpop.f32.mrb[0].mxu0
        %v2555 = vadd.f32 %v2304, %v2554
        %v2556 = vpop.f32.mrb[0].mxu0
        %v2557 = vadd.f32 %v2304, %v2556
        %2558 = vmatprep.mubr.f32.mxu0 %v2127
        %2559 = vmatmul.mubr.f32.gmra.mrb[0].mxu0 %v2126
        %v2560 = vpop.f32.mrb[0].mxu0
        %v2561 = vadd.f32 %v2309, %v2560
        %v2562 = vpop.f32.mrb[0].mxu0
        %v2563 = vadd.f32 %v2309, %v2562
        %2564 = vmatprep.mubr.f32.mxu0 %v2129
        %2565 = vmatmul.mubr.f32.gmra.mrb[0].mxu0 %v2128
        %v2566 = vpop.f32.mrb[0].mxu0
        %v2567 = vadd.f32 %v2314, %v2566
        %v2568 = vpop.f32.mrb[0].mxu0
        %v2569 = vadd.f32 %v2314, %v2568
        %2570 = vmatprep.mubr.f32.mxu0 %v2131
        %2571 = vmatmul.mubr.f32.gmra.mrb[0].mxu0 %v2130
        %v2572 = vpop.f32.mrb[0].mxu0
        %v2573 = vadd.f32 %v2319, %v2572
        %v2574 = vpop.f32.mrb[0].mxu0
        %v2575 = vadd.f32 %v2319, %v2574
        %2576 = vmatprep.mubr.f32.mxu0 %v2133
        %2577 = vmatmul.mubr.f32.gmra.mrb[0].mxu0 %v2132
        %v2578 = vpop.f32.mrb[0].mxu0
        %v2579 = vadd.f32 %v2324, %v2578
        %v2580 = vpop.f32.mrb[0].mxu0
        %v2581 = vadd.f32 %v2324, %v2580
        %2582 = vdwg.mxu0
        %2583 = vmatprep.subr.mxu0 %v1945
        %2584 = vmatpush1.msra.mxu0 %v1944
        %2585 = vmatprep.subr.mxu0 %v1949
        %2586 = vmatpush1.msra.mxu0 %v1948
        %2587 = vmatprep.subr.mxu0 %v1953
        %2588 = vmatpush1.msra.mxu0 %v1952
        %2589 = vmatprep.subr.mxu0 %v1957
        %2590 = vmatpush1.msra.mxu0 %v1956
        %2591 = vmatprep.subr.mxu0 %v1961
        %2592 = vmatpush1.msra.mxu0 %v1960
        %2593 = vmatprep.subr.mxu0 %v1965
        %2594 = vmatpush1.msra.mxu0 %v1964
        %2595 = vmatprep.subr.mxu0 %v1969
        %2596 = vmatpush1.msra.mxu0 %v1968
        %2597 = vmatprep.subr.mxu0 %v1973
        %2598 = vmatpush1.msra.mxu0 %v1972
        %2599 = vmatprep.subr.mxu0 %v1977
        %2600 = vmatpush1.msra.mxu0 %v1976
        %2601 = vmatprep.subr.mxu0 %v1981
        %2602 = vmatpush1.msra.mxu0 %v1980
        %2603 = vmatprep.subr.mxu0 %v1985
        %2604 = vmatpush1.msra.mxu0 %v1984
        %2605 = vmatprep.subr.mxu0 %v1989
        %2606 = vmatpush1.msra.mxu0 %v1988
        %2607 = vmatprep.subr.mxu0 %v1993
        %2608 = vmatpush1.msra.mxu0 %v1992
        %2609 = vmatprep.subr.mxu0 %v1997
        %2610 = vmatpush1.msra.mxu0 %v1996
        %2611 = vmatprep.subr.mxu0 %v2001
        %2612 = vmatpush1.msra.mxu0 %v2000
        %2613 = vmatprep.subr.mxu0 %v2005
        %2614 = vmatpush1.msra.mxu0 %v2004
        %2615 = vmatprep.subr.mxu0 %v2009
        %2616 = vmatpush1.msra.mxu0 %v2008
        %2617 = vmatprep.subr.mxu0 %v2013
        %2618 = vmatpush1.msra.mxu0 %v2012
        %2619 = vmatprep.subr.mxu0 %v2017
        %2620 = vmatpush1.msra.mxu0 %v2016
        %2621 = vmatprep.subr.mxu0 %v2021
        %2622 = vmatpush1.msra.mxu0 %v2020
        %2623 = vmatprep.subr.mxu0 %v2025
        %2624 = vmatpush1.msra.mxu0 %v2024
        %2625 = vmatprep.subr.mxu0 %v2029
        %2626 = vmatpush1.msra.mxu0 %v2028
        %2627 = vmatprep.subr.mxu0 %v2033
        %2628 = vmatpush1.msra.mxu0 %v2032
        %2629 = vmatprep.subr.mxu0 %v2037
        %2630 = vmatpush1.msra.mxu0 %v2036
        %2631 = vmatprep.subr.mxu0 %v2041
        %2632 = vmatpush1.msra.mxu0 %v2040
        %2633 = vmatprep.subr.mxu0 %v2045
        %2634 = vmatpush1.msra.mxu0 %v2044
        %2635 = vmatprep.subr.mxu0 %v2049
        %2636 = vmatpush1.msra.mxu0 %v2048
        %2637 = vmatprep.subr.mxu0 %v2053
        %2638 = vmatpush1.msra.mxu0 %v2052
        %2639 = vmatprep.subr.mxu0 %v2057
        %2640 = vmatpush1.msra.mxu0 %v2056
        %2641 = vmatprep.subr.mxu0 %v2061
        %2642 = vmatpush1.msra.mxu0 %v2060
        %2643 = vmatprep.subr.mxu0 %v2065
        %2644 = vmatpush1.msra.mxu0 %v2064
        %2645 = vmatprep.subr.mxu0 %v2069
        %2646 = vmatpush1.msra.mxu0 %v2068
        %2647 = vmatprep.mubr.f32.mxu0 %v2071
        %2648 = vmatmul.mubr.f32.gmra.mrb[0].mxu0 %v2070
        %v2649 = vpop.f32.mrb[0].mxu0
        %v2650 = vadd.f32 %v2169, %v2649
        %v2651 = vpop.f32.mrb[0].mxu0
        %v2652 = vadd.f32 %v2169, %v2651
        %2653 = vmatprep.mubr.f32.mxu0 %v2073
        %2654 = vmatmul.mubr.f32.gmra.mrb[0].mxu0 %v2072
        %v2655 = vpop.f32.mrb[0].mxu0
        %v2656 = vadd.f32 %v2174, %v2655
        %v2657 = vpop.f32.mrb[0].mxu0
        %v2658 = vadd.f32 %v2174, %v2657
        %2659 = vmatprep.mubr.f32.mxu0 %v2075
        %2660 = vmatmul.mubr.f32.gmra.mrb[0].mxu0 %v2074
        %v2661 = vpop.f32.mrb[0].mxu0
        %v2662 = vadd.f32 %v2179, %v2661
        %v2663 = vpop.f32.mrb[0].mxu0
        %v2664 = vadd.f32 %v2179, %v2663
        %2665 = vmatprep.mubr.f32.mxu0 %v2077
        %2666 = vmatmul.mubr.f32.gmra.mrb[0].mxu0 %v2076
        %v2667 = vpop.f32.mrb[0].mxu0
        %v2668 = vadd.f32 %v2184, %v2667
        %v2669 = vpop.f32.mrb[0].mxu0
        %v2670 = vadd.f32 %v2184, %v2669
        %2671 = vmatprep.mubr.f32.mxu0 %v2079
        %2672 = vmatmul.mubr.f32.gmra.mrb[0].mxu0 %v2078
        %v2673 = vpop.f32.mrb[0].mxu0
        %v2674 = vadd.f32 %v2189, %v2673
        %v2675 = vpop.f32.mrb[0].mxu0
        %v2676 = vadd.f32 %v2189, %v2675
        %2677 = vmatprep.mubr.f32.mxu0 %v2081
        %2678 = vmatmul.mubr.f32.gmra.mrb[0].mxu0 %v2080
        %v2679 = vpop.f32.mrb[0].mxu0
        %v2680 = vadd.f32 %v2194, %v2679
        %v2681 = vpop.f32.mrb[0].mxu0
        %v2682 = vadd.f32 %v2194, %v2681
        %2683 = vmatprep.mubr.f32.mxu0 %v2083
        %2684 = vmatmul.mubr.f32.gmra.mrb[0].mxu0 %v2082
        %v2685 = vpop.f32.mrb[0].mxu0
        %v2686 = vadd.f32 %v2199, %v2685
        %v2687 = vpop.f32.mrb[0].mxu0
        %v2688 = vadd.f32 %v2199, %v2687
        %2689 = vmatprep.mubr.f32.mxu0 %v2085
        %2690 = vmatmul.mubr.f32.gmra.mrb[0].mxu0 %v2084
        %v2691 = vpop.f32.mrb[0].mxu0
        %v2692 = vadd.f32 %v2204, %v2691
        %v2693 = vpop.f32.mrb[0].mxu0
        %v2694 = vadd.f32 %v2204, %v2693
        %2695 = vmatprep.mubr.f32.mxu0 %v2087
        %2696 = vmatmul.mubr.f32.gmra.mrb[0].mxu0 %v2086
        %v2697 = vpop.f32.mrb[0].mxu0
        %v2698 = vadd.f32 %v2209, %v2697
        %v2699 = vpop.f32.mrb[0].mxu0
        %v2700 = vadd.f32 %v2209, %v2699
        %2701 = vmatprep.mubr.f32.mxu0 %v2089
        %2702 = vmatmul.mubr.f32.gmra.mrb[0].mxu0 %v2088
        %v2703 = vpop.f32.mrb[0].mxu0
        %v2704 = vadd.f32 %v2214, %v2703
        %v2705 = vpop.f32.mrb[0].mxu0
        %v2706 = vadd.f32 %v2214, %v2705
        %2707 = vmatprep.mubr.f32.mxu0 %v2091
        %2708 = vmatmul.mubr.f32.gmra.mrb[0].mxu0 %v2090
        %v2709 = vpop.f32.mrb[0].mxu0
        %v2710 = vadd.f32 %v2219, %v2709
        %v2711 = vpop.f32.mrb[0].mxu0
        %v2712 = vadd.f32 %v2219, %v2711
        %2713 = vmatprep.mubr.f32.mxu0 %v2093
        %2714 = vmatmul.mubr.f32.gmra.mrb[0].mxu0 %v2092
        %v2715 = vpop.f32.mrb[0].mxu0
        %v2716 = vadd.f32 %v2224, %v2715
        %v2717 = vpop.f32.mrb[0].mxu0
        %v2718 = vadd.f32 %v2224, %v2717
        %2719 = vmatprep.mubr.f32.mxu0 %v2095
        %2720 = vmatmul.mubr.f32.gmra.mrb[0].mxu0 %v2094
        %v2721 = vpop.f32.mrb[0].mxu0
        %v2722 = vadd.f32 %v2229, %v2721
        %v2723 = vpop.f32.mrb[0].mxu0
        %v2724 = vadd.f32 %v2229, %v2723
        %2725 = vmatprep.mubr.f32.mxu0 %v2097
        %2726 = vmatmul.mubr.f32.gmra.mrb[0].mxu0 %v2096
        %v2727 = vpop.f32.mrb[0].mxu0
        %v2728 = vadd.f32 %v2234, %v2727
        %v2729 = vpop.f32.mrb[0].mxu0
        %v2730 = vadd.f32 %v2234, %v2729
        %2731 = vmatprep.mubr.f32.mxu0 %v2099
        %2732 = vmatmul.mubr.f32.gmra.mrb[0].mxu0 %v2098
        %v2733 = vpop.f32.mrb[0].mxu0
        %v2734 = vadd.f32 %v2239, %v2733
        %v2735 = vpop.f32.mrb[0].mxu0
        %v2736 = vadd.f32 %v2239, %v2735
        %2737 = vmatprep.mubr.f32.mxu0 %v2101
        %2738 = vmatmul.mubr.f32.gmra.mrb[0].mxu0 %v2100
        %v2739 = vpop.f32.mrb[0].mxu0
        %v2740 = vadd.f32 %v2244, %v2739
        %v2741 = vpop.f32.mrb[0].mxu0
        %v2742 = vadd.f32 %v2244, %v2741
        %2743 = vmatprep.mubr.f32.mxu0 %v2103
        %2744 = vmatmul.mubr.f32.gmra.mrb[0].mxu0 %v2102
        %v2745 = vpop.f32.mrb[0].mxu0
        %v2746 = vadd.f32 %v2249, %v2745
        %v2747 = vpop.f32.mrb[0].mxu0
        %v2748 = vadd.f32 %v2249, %v2747
        %2749 = vmatprep.mubr.f32.mxu0 %v2105
        %2750 = vmatmul.mubr.f32.gmra.mrb[0].mxu0 %v2104
        %v2751 = vpop.f32.mrb[0].mxu0
        %v2752 = vadd.f32 %v2254, %v2751
        %v2753 = vpop.f32.mrb[0].mxu0
        %v2754 = vadd.f32 %v2254, %v2753
        %2755 = vmatprep.mubr.f32.mxu0 %v2107
        %2756 = vmatmul.mubr.f32.gmra.mrb[0].mxu0 %v2106
        %v2757 = vpop.f32.mrb[0].mxu0
        %v2758 = vadd.f32 %v2259, %v2757
        %v2759 = vpop.f32.mrb[0].mxu0
        %v2760 = vadd.f32 %v2259, %v2759
        %2761 = vmatprep.mubr.f32.mxu0 %v2109
        %2762 = vmatmul.mubr.f32.gmra.mrb[0].mxu0 %v2108
        %v2763 = vpop.f32.mrb[0].mxu0
        %v2764 = vadd.f32 %v2264, %v2763
        %v2765 = vpop.f32.mrb[0].mxu0
        %v2766 = vadd.f32 %v2264, %v2765
        %2767 = vmatprep.mubr.f32.mxu0 %v2111
        %2768 = vmatmul.mubr.f32.gmra.mrb[0].mxu0 %v2110
        %v2769 = vpop.f32.mrb[0].mxu0
        %v2770 = vadd.f32 %v2269, %v2769
        %v2771 = vpop.f32.mrb[0].mxu0
        %v2772 = vadd.f32 %v2269, %v2771
        %2773 = vmatprep.mubr.f32.mxu0 %v2113
        %2774 = vmatmul.mubr.f32.gmra.mrb[0].mxu0 %v2112
        %v2775 = vpop.f32.mrb[0].mxu0
        %v2776 = vadd.f32 %v2274, %v2775
        %v2777 = vpop.f32.mrb[0].mxu0
        %v2778 = vadd.f32 %v2274, %v2777
        %2779 = vmatprep.mubr.f32.mxu0 %v2115
        %2780 = vmatmul.mubr.f32.gmra.mrb[0].mxu0 %v2114
        %v2781 = vpop.f32.mrb[0].mxu0
        %v2782 = vadd.f32 %v2279, %v2781
        %v2783 = vpop.f32.mrb[0].mxu0
        %v2784 = vadd.f32 %v2279, %v2783
        %2785 = vmatprep.mubr.f32.mxu0 %v2117
        %2786 = vmatmul.mubr.f32.gmra.mrb[0].mxu0 %v2116
        %v2787 = vpop.f32.mrb[0].mxu0
        %v2788 = vadd.f32 %v2284, %v2787
        %v2789 = vpop.f32.mrb[0].mxu0
        %v2790 = vadd.f32 %v2284, %v2789
        %2791 = vmatprep.mubr.f32.mxu0 %v2119
        %2792 = vmatmul.mubr.f32.gmra.mrb[0].mxu0 %v2118
        %v2793 = vpop.f32.mrb[0].mxu0
        %v2794 = vadd.f32 %v2289, %v2793
        %v2795 = vpop.f32.mrb[0].mxu0
        %v2796 = vadd.f32 %v2289, %v2795
        %2797 = vmatprep.mubr.f32.mxu0 %v2121
        %2798 = vmatmul.mubr.f32.gmra.mrb[0].mxu0 %v2120
        %v2799 = vpop.f32.mrb[0].mxu0
        %v2800 = vadd.f32 %v2294, %v2799
        %v2801 = vpop.f32.mrb[0].mxu0
        %v2802 = vadd.f32 %v2294, %v2801
        %2803 = vmatprep.mubr.f32.mxu0 %v2123
        %2804 = vmatmul.mubr.f32.gmra.mrb[0].mxu0 %v2122
        %v2805 = vpop.f32.mrb[0].mxu0
        %v2806 = vadd.f32 %v2299, %v2805
        %v2807 = vpop.f32.mrb[0].mxu0
        %v2808 = vadd.f32 %v2299, %v2807
        %2809 = vmatprep.mubr.f32.mxu0 %v2125
        %2810 = vmatmul.mubr.f32.gmra.mrb[0].mxu0 %v2124
        %v2811 = vpop.f32.mrb[0].mxu0
        %v2812 = vadd.f32 %v2304, %v2811
        %v2813 = vpop.f32.mrb[0].mxu0
        %v2814 = vadd.f32 %v2304, %v2813
        %2815 = vmatprep.mubr.f32.mxu0 %v2127
        %2816 = vmatmul.mubr.f32.gmra.mrb[0].mxu0 %v2126
        %v2817 = vpop.f32.mrb[0].mxu0
        %v2818 = vadd.f32 %v2309, %v2817
        %v2819 = vpop.f32.mrb[0].mxu0
        %v2820 = vadd.f32 %v2309, %v2819
        %2821 = vmatprep.mubr.f32.mxu0 %v2129
        %2822 = vmatmul.mubr.f32.gmra.mrb[0].mxu0 %v2128
        %v2823 = vpop.f32.mrb[0].mxu0
        %v2824 = vadd.f32 %v2314, %v2823
        %v2825 = vpop.f32.mrb[0].mxu0
        %v2826 = vadd.f32 %v2314, %v2825
        %2827 = vmatprep.mubr.f32.mxu0 %v2131
        %2828 = vmatmul.mubr.f32.gmra.mrb[0].mxu0 %v2130
        %v2829 = vpop.f32.mrb[0].mxu0
        %v2830 = vadd.f32 %v2319, %v2829
        %v2831 = vpop.f32.mrb[0].mxu0
        %v2832 = vadd.f32 %v2319, %v2831
        %2833 = vmatprep.mubr.f32.mxu0 %v2133
        %2834 = vmatmul.mubr.f32.gmra.mrb[0].mxu0 %v2132
        %v2835 = vpop.f32.mrb[0].mxu0
        %v2836 = vadd.f32 %v2324, %v2835
        %v2837 = vpop.f32.mrb[0].mxu0
        %v2838 = vadd.f32 %v2324, %v2837
        %2839 = vdwg.mxu0
        %v2840 = vmax.f32 %v2393, 0.0
        %v2841 = vmax.f32 %v2395, 0.0
        %v2842 = vmax.f32 %v2650, 0.0
        %v2843 = vmax.f32 %v2652, 0.0
        %v2844 = vmax.f32 %v2399, 0.0
        %v2845 = vmax.f32 %v2401, 0.0
        %v2846 = vmax.f32 %v2656, 0.0
        %v2847 = vmax.f32 %v2658, 0.0
        %v2848 = vmax.f32 %v2405, 0.0
        %v2849 = vmax.f32 %v2407, 0.0
        %v2850 = vmax.f32 %v2662, 0.0
        %v2851 = vmax.f32 %v2664, 0.0
        %v2852 = vmax.f32 %v2411, 0.0
        %v2853 = vmax.f32 %v2413, 0.0
        %v2854 = vmax.f32 %v2668, 0.0
        %v2855 = vmax.f32 %v2670, 0.0
        %v2856 = vmax.f32 %v2417, 0.0
        %v2857 = vmax.f32 %v2419, 0.0
        %v2858 = vmax.f32 %v2674, 0.0
        %v2859 = vmax.f32 %v2676, 0.0
        %v2860 = vmax.f32 %v2423, 0.0
        %v2861 = vmax.f32 %v2425, 0.0
        %v2862 = vmax.f32 %v2680, 0.0
        %v2863 = vmax.f32 %v2682, 0.0
        %v2864 = vmax.f32 %v2429, 0.0
        %v2865 = vmax.f32 %v2431, 0.0
        %v2866 = vmax.f32 %v2686, 0.0
        %v2867 = vmax.f32 %v2688, 0.0
        %v2868 = vmax.f32 %v2435, 0.0
        %v2869 = vmax.f32 %v2437, 0.0
        %v2870 = vmax.f32 %v2692, 0.0
        %v2871 = vmax.f32 %v2694, 0.0
        %v2872 = vmax.f32 %v2441, 0.0
        %v2873 = vmax.f32 %v2443, 0.0
        %v2874 = vmax.f32 %v2698, 0.0
        %v2875 = vmax.f32 %v2700, 0.0
        %v2876 = vmax.f32 %v2447, 0.0
        %v2877 = vmax.f32 %v2449, 0.0
        %v2878 = vmax.f32 %v2704, 0.0
        %v2879 = vmax.f32 %v2706, 0.0
        %v2880 = vmax.f32 %v2453, 0.0
        %v2881 = vmax.f32 %v2455, 0.0
        %v2882 = vmax.f32 %v2710, 0.0
        %v2883 = vmax.f32 %v2712, 0.0
        %v2884 = vmax.f32 %v2459, 0.0
        %v2885 = vmax.f32 %v2461, 0.0
        %v2886 = vmax.f32 %v2716, 0.0
        %v2887 = vmax.f32 %v2718, 0.0
        %v2888 = vmax.f32 %v2465, 0.0
        %v2889 = vmax.f32 %v2467, 0.0
        %v2890 = vmax.f32 %v2722, 0.0
        %v2891 = vmax.f32 %v2724, 0.0
        %v2892 = vmax.f32 %v2471, 0.0
        %v2893 = vmax.f32 %v2473, 0.0
        %v2894 = vmax.f32 %v2728, 0.0
        %v2895 = vmax.f32 %v2730, 0.0
        %v2896 = vmax.f32 %v2477, 0.0
        %v2897 = vmax.f32 %v2479, 0.0
        %v2898 = vmax.f32 %v2734, 0.0
        %v2899 = vmax.f32 %v2736, 0.0
        %v2900 = vmax.f32 %v2483, 0.0
        %v2901 = vmax.f32 %v2485, 0.0
        %v2902 = vmax.f32 %v2740, 0.0
        %v2903 = vmax.f32 %v2742, 0.0
        %v2904 = vmax.f32 %v2489, 0.0
        %v2905 = vmax.f32 %v2491, 0.0
        %v2906 = vmax.f32 %v2746, 0.0
        %v2907 = vmax.f32 %v2748, 0.0
        %v2908 = vmax.f32 %v2495, 0.0
        %v2909 = vmax.f32 %v2497, 0.0
        %v2910 = vmax.f32 %v2752, 0.0
        %v2911 = vmax.f32 %v2754, 0.0
        %v2912 = vmax.f32 %v2501, 0.0
        %v2913 = vmax.f32 %v2503, 0.0
        %v2914 = vmax.f32 %v2758, 0.0
        %v2915 = vmax.f32 %v2760, 0.0
        %v2916 = vmax.f32 %v2507, 0.0
        %v2917 = vmax.f32 %v2509, 0.0
        %v2918 = vmax.f32 %v2764, 0.0
        %v2919 = vmax.f32 %v2766, 0.0
        %v2920 = vmax.f32 %v2513, 0.0
        %v2921 = vmax.f32 %v2515, 0.0
        %v2922 = vmax.f32 %v2770, 0.0
        %v2923 = vmax.f32 %v2772, 0.0
        %v2924 = vmax.f32 %v2519, 0.0
        %v2925 = vmax.f32 %v2521, 0.0
        %v2926 = vmax.f32 %v2776, 0.0
        %v2927 = vmax.f32 %v2778, 0.0
        %v2928 = vmax.f32 %v2525, 0.0
        %v2929 = vmax.f32 %v2527, 0.0
        %v2930 = vmax.f32 %v2782, 0.0
        %v2931 = vmax.f32 %v2784, 0.0
        %v2932 = vmax.f32 %v2531, 0.0
        %v2933 = vmax.f32 %v2533, 0.0
        %v2934 = vmax.f32 %v2788, 0.0
        %v2935 = vmax.f32 %v2790, 0.0
        %v2936 = vmax.f32 %v2537, 0.0
        %v2937 = vmax.f32 %v2539, 0.0
        %v2938 = vmax.f32 %v2794, 0.0
        %v2939 = vmax.f32 %v2796, 0.0
        %v2940 = vmax.f32 %v2543, 0.0
        %v2941 = vmax.f32 %v2545, 0.0
        %v2942 = vmax.f32 %v2800, 0.0
        %v2943 = vmax.f32 %v2802, 0.0
        %v2944 = vmax.f32 %v2549, 0.0
        %v2945 = vmax.f32 %v2551, 0.0
        %v2946 = vmax.f32 %v2806, 0.0
        %v2947 = vmax.f32 %v2808, 0.0
        %v2948 = vmax.f32 %v2555, 0.0
        %v2949 = vmax.f32 %v2557, 0.0
        %v2950 = vmax.f32 %v2812, 0.0
        %v2951 = vmax.f32 %v2814, 0.0
        %v2952 = vmax.f32 %v2561, 0.0
        %v2953 = vmax.f32 %v2563, 0.0
        %v2954 = vmax.f32 %v2818, 0.0
        %v2955 = vmax.f32 %v2820, 0.0
        %v2956 = vmax.f32 %v2567, 0.0
        %v2957 = vmax.f32 %v2569, 0.0
        %v2958 = vmax.f32 %v2824, 0.0
        %v2959 = vmax.f32 %v2826, 0.0
        %v2960 = vmax.f32 %v2573, 0.0
        %v2961 = vmax.f32 %v2575, 0.0
        %v2962 = vmax.f32 %v2830, 0.0
        %v2963 = vmax.f32 %v2832, 0.0
        %v2964 = vmax.f32 %v2579, 0.0
        %v2965 = vmax.f32 %v2581, 0.0
        %v2966 = vmax.f32 %v2836, 0.0
        %v2967 = vmax.f32 %v2838, 0.0
        %v2968 = vld [vmem:[%s7] sm:$0xff]
        %v2969 = vld [vmem:[%s7 + $0x8] sm:$0xff]
        %v2970 = vld [vmem:[%s7 + $0x10] sm:$0xff]
        %v2971 = vld [vmem:[%s7 + $0x18] sm:$0xff]
        %v2972 = vld [vmem:[%s7 + $0x20] sm:$0xff]
        %v2973 = vld [vmem:[%s7 + $0x28] sm:$0xff]
        %v2974 = vld [vmem:[%s7 + $0x30] sm:$0xff]
        %v2975 = vld [vmem:[%s7 + $0x38] sm:$0xff]
        %v2976 = vld [vmem:[%s7 + $0x40] sm:$0xff]
        %v2977 = vld [vmem:[%s7 + $0x48] sm:$0xff]
        %v2978 = vld [vmem:[%s7 + $0x50] sm:$0xff]
        %v2979 = vld [vmem:[%s7 + $0x58] sm:$0xff]
        %v2980 = vld [vmem:[%s7 + $0x60] sm:$0xff]
        %v2981 = vld [vmem:[%s7 + $0x68] sm:$0xff]
        %v2982 = vld [vmem:[%s7 + $0x70] sm:$0xff]
        %v2983 = vld [vmem:[%s7 + $0x78] sm:$0xff]
        %v2984 = vld [vmem:[%s7 + $0x80] sm:$0xff]
        %v2985 = vld [vmem:[%s7 + $0x88] sm:$0xff]
        %v2986 = vld [vmem:[%s7 + $0x90] sm:$0xff]
        %v2987 = vld [vmem:[%s7 + $0x98] sm:$0xff]
        %v2988 = vld [vmem:[%s7 + $0xa0] sm:$0xff]
        %v2989 = vld [vmem:[%s7 + $0xa8] sm:$0xff]
        %v2990 = vld [vmem:[%s7 + $0xb0] sm:$0xff]
        %v2991 = vld [vmem:[%s7 + $0xb8] sm:$0xff]
        %v2992 = vld [vmem:[%s7 + $0xc0] sm:$0xff]
        %v2993 = vld [vmem:[%s7 + $0xc8] sm:$0xff]
        %v2994 = vld [vmem:[%s7 + $0xd0] sm:$0xff]
        %v2995 = vld [vmem:[%s7 + $0xd8] sm:$0xff]
        %v2996 = vld [vmem:[%s7 + $0xe0] sm:$0xff]
        %v2997 = vld [vmem:[%s7 + $0xe8] sm:$0xff]
        %v2998 = vld [vmem:[%s7 + $0xf0] sm:$0xff]
        %v2999 = vld [vmem:[%s7 + $0xf8] sm:$0xff]
        %v3000 = vld [vmem:[%s7 + $0x100] sm:$0xff]
        %v3001 = vld [vmem:[%s7 + $0x108] sm:$0xff]
        %v3002 = vld [vmem:[%s7 + $0x110] sm:$0xff]
        %v3003 = vld [vmem:[%s7 + $0x118] sm:$0xff]
        %v3004 = vld [vmem:[%s7 + $0x120] sm:$0xff]
        %v3005 = vld [vmem:[%s7 + $0x128] sm:$0xff]
        %v3006 = vld [vmem:[%s7 + $0x130] sm:$0xff]
        %v3007 = vld [vmem:[%s7 + $0x138] sm:$0xff]
        %v3008 = vld [vmem:[%s7 + $0x140] sm:$0xff]
        %v3009 = vld [vmem:[%s7 + $0x148] sm:$0xff]
        %v3010 = vld [vmem:[%s7 + $0x150] sm:$0xff]
        %v3011 = vld [vmem:[%s7 + $0x158] sm:$0xff]
        %v3012 = vld [vmem:[%s7 + $0x160] sm:$0xff]
        %v3013 = vld [vmem:[%s7 + $0x168] sm:$0xff]
        %v3014 = vld [vmem:[%s7 + $0x170] sm:$0xff]
        %v3015 = vld [vmem:[%s7 + $0x178] sm:$0xff]
        %v3016 = vld [vmem:[%s7 + $0x180] sm:$0xff]
        %v3017 = vld [vmem:[%s7 + $0x188] sm:$0xff]
        %v3018 = vld [vmem:[%s7 + $0x190] sm:$0xff]
        %v3019 = vld [vmem:[%s7 + $0x198] sm:$0xff]
        %v3020 = vld [vmem:[%s7 + $0x1a0] sm:$0xff]
        %v3021 = vld [vmem:[%s7 + $0x1a8] sm:$0xff]
        %v3022 = vld [vmem:[%s7 + $0x1b0] sm:$0xff]
        %v3023 = vld [vmem:[%s7 + $0x1b8] sm:$0xff]
        %v3024 = vld [vmem:[%s7 + $0x1c0] sm:$0xff]
        %v3025 = vld [vmem:[%s7 + $0x1c8] sm:$0xff]
        %v3026 = vld [vmem:[%s7 + $0x1d0] sm:$0xff]
        %v3027 = vld [vmem:[%s7 + $0x1d8] sm:$0xff]
        %v3028 = vld [vmem:[%s7 + $0x1e0] sm:$0xff]
        %v3029 = vld [vmem:[%s7 + $0x1e8] sm:$0xff]
        %v3030 = vld [vmem:[%s7 + $0x1f0] sm:$0xff]
        %v3031 = vld [vmem:[%s7 + $0x1f8] sm:$0xff]
        %v3032 = vld [vmem:[%s8] sm:$0xff]
        %v3033 = vld [vmem:[%s8 + $0x8] sm:$0xff]
        %v3034 = vld [vmem:[%s8 + $0x10] sm:$0xff]
        %v3035 = vld [vmem:[%s8 + $0x18] sm:$0xff]
        %v3036 = vld [vmem:[%s8 + $0x20] sm:$0xff]
        %v3037 = vld [vmem:[%s8 + $0x28] sm:$0xff]
        %v3038 = vld [vmem:[%s8 + $0x30] sm:$0xff]
        %v3039 = vld [vmem:[%s8 + $0x38] sm:$0xff]
        %v3040 = vld [vmem:[%s8 + $0x40] sm:$0xff]
        %v3041 = vld [vmem:[%s8 + $0x48] sm:$0xff]
        %v3042 = vld [vmem:[%s8 + $0x50] sm:$0xff]
        %v3043 = vld [vmem:[%s8 + $0x58] sm:$0xff]
        %v3044 = vld [vmem:[%s8 + $0x60] sm:$0xff]
        %v3045 = vld [vmem:[%s8 + $0x68] sm:$0xff]
        %v3046 = vld [vmem:[%s8 + $0x70] sm:$0xff]
        %v3047 = vld [vmem:[%s8 + $0x78] sm:$0xff]
        %v3048 = vld [vmem:[%s8 + $0x80] sm:$0xff]
        %v3049 = vld [vmem:[%s8 + $0x88] sm:$0xff]
        %v3050 = vld [vmem:[%s8 + $0x90] sm:$0xff]
        %v3051 = vld [vmem:[%s8 + $0x98] sm:$0xff]
        %v3052 = vld [vmem:[%s8 + $0xa0] sm:$0xff]
        %v3053 = vld [vmem:[%s8 + $0xa8] sm:$0xff]
        %v3054 = vld [vmem:[%s8 + $0xb0] sm:$0xff]
        %v3055 = vld [vmem:[%s8 + $0xb8] sm:$0xff]
        %v3056 = vld [vmem:[%s8 + $0xc0] sm:$0xff]
        %v3057 = vld [vmem:[%s8 + $0xc8] sm:$0xff]
        %v3058 = vld [vmem:[%s8 + $0xd0] sm:$0xff]
        %v3059 = vld [vmem:[%s8 + $0xd8] sm:$0xff]
        %v3060 = vld [vmem:[%s8 + $0xe0] sm:$0xff]
        %v3061 = vld [vmem:[%s8 + $0xe8] sm:$0xff]
        %v3062 = vld [vmem:[%s8 + $0xf0] sm:$0xff]
        %v3063 = vld [vmem:[%s8 + $0xf8] sm:$0xff]
        %3065 = vset.pattern.permute.xlu0 0
        %3066 = vperm.xlu0 %3065, %v3032
        %v3067 = vpop.permute.xlu0 %3066
        %3070 = vset.pattern.permute.xlu0 0
        %3071 = vperm.xlu0 %3070, %v3033
        %v3072 = vpop.permute.xlu0 %3071
        %3075 = vset.pattern.permute.xlu0 0
        %3076 = vperm.xlu0 %3075, %v3034
        %v3077 = vpop.permute.xlu0 %3076
        %3080 = vset.pattern.permute.xlu0 0
        %3081 = vperm.xlu0 %3080, %v3035
        %v3082 = vpop.permute.xlu0 %3081
        %3085 = vset.pattern.permute.xlu0 0
        %3086 = vperm.xlu0 %3085, %v3036
        %v3087 = vpop.permute.xlu0 %3086
        %3090 = vset.pattern.permute.xlu0 0
        %3091 = vperm.xlu0 %3090, %v3037
        %v3092 = vpop.permute.xlu0 %3091
        %3095 = vset.pattern.permute.xlu0 0
        %3096 = vperm.xlu0 %3095, %v3038
        %v3097 = vpop.permute.xlu0 %3096
        %3100 = vset.pattern.permute.xlu0 0
        %3101 = vperm.xlu0 %3100, %v3039
        %v3102 = vpop.permute.xlu0 %3101
        %3105 = vset.pattern.permute.xlu0 0
        %3106 = vperm.xlu0 %3105, %v3040
        %v3107 = vpop.permute.xlu0 %3106
        %3110 = vset.pattern.permute.xlu0 0
        %3111 = vperm.xlu0 %3110, %v3041
        %v3112 = vpop.permute.xlu0 %3111
        %3115 = vset.pattern.permute.xlu0 0
        %3116 = vperm.xlu0 %3115, %v3042
        %v3117 = vpop.permute.xlu0 %3116
        %3120 = vset.pattern.permute.xlu0 0
        %3121 = vperm.xlu0 %3120, %v3043
        %v3122 = vpop.permute.xlu0 %3121
        %3125 = vset.pattern.permute.xlu0 0
        %3126 = vperm.xlu0 %3125, %v3044
        %v3127 = vpop.permute.xlu0 %3126
        %3130 = vset.pattern.permute.xlu0 0
        %3131 = vperm.xlu0 %3130, %v3045
        %v3132 = vpop.permute.xlu0 %3131
        %3135 = vset.pattern.permute.xlu0 0
        %3136 = vperm.xlu0 %3135, %v3046
        %v3137 = vpop.permute.xlu0 %3136
        %3140 = vset.pattern.permute.xlu0 0
        %3141 = vperm.xlu0 %3140, %v3047
        %v3142 = vpop.permute.xlu0 %3141
        %3145 = vset.pattern.permute.xlu0 0
        %3146 = vperm.xlu0 %3145, %v3048
        %v3147 = vpop.permute.xlu0 %3146
        %3150 = vset.pattern.permute.xlu0 0
        %3151 = vperm.xlu0 %3150, %v3049
        %v3152 = vpop.permute.xlu0 %3151
        %3155 = vset.pattern.permute.xlu0 0
        %3156 = vperm.xlu0 %3155, %v3050
        %v3157 = vpop.permute.xlu0 %3156
        %3160 = vset.pattern.permute.xlu0 0
        %3161 = vperm.xlu0 %3160, %v3051
        %v3162 = vpop.permute.xlu0 %3161
        %3165 = vset.pattern.permute.xlu0 0
        %3166 = vperm.xlu0 %3165, %v3052
        %v3167 = vpop.permute.xlu0 %3166
        %3170 = vset.pattern.permute.xlu0 0
        %3171 = vperm.xlu0 %3170, %v3053
        %v3172 = vpop.permute.xlu0 %3171
        %3175 = vset.pattern.permute.xlu0 0
        %3176 = vperm.xlu0 %3175, %v3054
        %v3177 = vpop.permute.xlu0 %3176
        %3180 = vset.pattern.permute.xlu0 0
        %3181 = vperm.xlu0 %3180, %v3055
        %v3182 = vpop.permute.xlu0 %3181
        %3185 = vset.pattern.permute.xlu0 0
        %3186 = vperm.xlu0 %3185, %v3056
        %v3187 = vpop.permute.xlu0 %3186
        %3190 = vset.pattern.permute.xlu0 0
        %3191 = vperm.xlu0 %3190, %v3057
        %v3192 = vpop.permute.xlu0 %3191
        %3195 = vset.pattern.permute.xlu0 0
        %3196 = vperm.xlu0 %3195, %v3058
        %v3197 = vpop.permute.xlu0 %3196
        %3200 = vset.pattern.permute.xlu0 0
        %3201 = vperm.xlu0 %3200, %v3059
        %v3202 = vpop.permute.xlu0 %3201
        %3205 = vset.pattern.permute.xlu0 0
        %3206 = vperm.xlu0 %3205, %v3060
        %v3207 = vpop.permute.xlu0 %3206
        %3210 = vset.pattern.permute.xlu0 0
        %3211 = vperm.xlu0 %3210, %v3061
        %v3212 = vpop.permute.xlu0 %3211
        %3215 = vset.pattern.permute.xlu0 0
        %3216 = vperm.xlu0 %3215, %v3062
        %v3217 = vpop.permute.xlu0 %3216
        %3220 = vset.pattern.permute.xlu0 0
        %3221 = vperm.xlu0 %3220, %v3063
        %v3222 = vpop.permute.xlu0 %3221
        %3224 = vmatprep.subr.mxu0 %v2841
        %3225 = vmatpush1.msra.mxu0 %v2840
        %3226 = vmatprep.subr.mxu0 %v2845
        %3227 = vmatpush1.msra.mxu0 %v2844
        %3228 = vmatprep.subr.mxu0 %v2849
        %3229 = vmatpush1.msra.mxu0 %v2848
        %3230 = vmatprep.subr.mxu0 %v2853
        %3231 = vmatpush1.msra.mxu0 %v2852
        %3232 = vmatprep.subr.mxu0 %v2857
        %3233 = vmatpush1.msra.mxu0 %v2856
        %3234 = vmatprep.subr.mxu0 %v2861
        %3235 = vmatpush1.msra.mxu0 %v2860
        %3236 = vmatprep.subr.mxu0 %v2865
        %3237 = vmatpush1.msra.mxu0 %v2864
        %3238 = vmatprep.subr.mxu0 %v2869
        %3239 = vmatpush1.msra.mxu0 %v2868
        %3240 = vmatprep.subr.mxu0 %v2873
        %3241 = vmatpush1.msra.mxu0 %v2872
        %3242 = vmatprep.subr.mxu0 %v2877
        %3243 = vmatpush1.msra.mxu0 %v2876
        %3244 = vmatprep.subr.mxu0 %v2881
        %3245 = vmatpush1.msra.mxu0 %v2880
        %3246 = vmatprep.subr.mxu0 %v2885
        %3247 = vmatpush1.msra.mxu0 %v2884
        %3248 = vmatprep.subr.mxu0 %v2889
        %3249 = vmatpush1.msra.mxu0 %v2888
        %3250 = vmatprep.subr.mxu0 %v2893
        %3251 = vmatpush1.msra.mxu0 %v2892
        %3252 = vmatprep.subr.mxu0 %v2897
        %3253 = vmatpush1.msra.mxu0 %v2896
        %3254 = vmatprep.subr.mxu0 %v2901
        %3255 = vmatpush1.msra.mxu0 %v2900
        %3256 = vmatprep.subr.mxu0 %v2905
        %3257 = vmatpush1.msra.mxu0 %v2904
        %3258 = vmatprep.subr.mxu0 %v2909
        %3259 = vmatpush1.msra.mxu0 %v2908
        %3260 = vmatprep.subr.mxu0 %v2913
        %3261 = vmatpush1.msra.mxu0 %v2912
        %3262 = vmatprep.subr.mxu0 %v2917
        %3263 = vmatpush1.msra.mxu0 %v2916
        %3264 = vmatprep.subr.mxu0 %v2921
        %3265 = vmatpush1.msra.mxu0 %v2920
        %3266 = vmatprep.subr.mxu0 %v2925
        %3267 = vmatpush1.msra.mxu0 %v2924
        %3268 = vmatprep.subr.mxu0 %v2929
        %3269 = vmatpush1.msra.mxu0 %v2928
        %3270 = vmatprep.subr.mxu0 %v2933
        %3271 = vmatpush1.msra.mxu0 %v2932
        %3272 = vmatprep.subr.mxu0 %v2937
        %3273 = vmatpush1.msra.mxu0 %v2936
        %3274 = vmatprep.subr.mxu0 %v2941
        %3275 = vmatpush1.msra.mxu0 %v2940
        %3276 = vmatprep.subr.mxu0 %v2945
        %3277 = vmatpush1.msra.mxu0 %v2944
        %3278 = vmatprep.subr.mxu0 %v2949
        %3279 = vmatpush1.msra.mxu0 %v2948
        %3280 = vmatprep.subr.mxu0 %v2953
        %3281 = vmatpush1.msra.mxu0 %v2952
        %3282 = vmatprep.subr.mxu0 %v2957
        %3283 = vmatpush1.msra.mxu0 %v2956
        %3284 = vmatprep.subr.mxu0 %v2961
        %3285 = vmatpush1.msra.mxu0 %v2960
        %3286 = vmatprep.subr.mxu0 %v2965
        %3287 = vmatpush1.msra.mxu0 %v2964
        %3288 = vmatprep.mubr.f32.mxu0 %v2969
        %3289 = vmatmul.mubr.f32.gmra.mrb[0].mxu0 %v2968
        %v3290 = vpop.f32.mrb[0].mxu0
        %v3291 = vadd.f32 %v3067, %v3290
        %v3292 = vpop.f32.mrb[0].mxu0
        %v3293 = vadd.f32 %v3067, %v3292
        %3294 = vmatprep.mubr.f32.mxu0 %v2971
        %3295 = vmatmul.mubr.f32.gmra.mrb[0].mxu0 %v2970
        %v3296 = vpop.f32.mrb[0].mxu0
        %v3297 = vadd.f32 %v3072, %v3296
        %v3298 = vpop.f32.mrb[0].mxu0
        %v3299 = vadd.f32 %v3072, %v3298
        %3300 = vmatprep.mubr.f32.mxu0 %v2973
        %3301 = vmatmul.mubr.f32.gmra.mrb[0].mxu0 %v2972
        %v3302 = vpop.f32.mrb[0].mxu0
        %v3303 = vadd.f32 %v3077, %v3302
        %v3304 = vpop.f32.mrb[0].mxu0
        %v3305 = vadd.f32 %v3077, %v3304
        %3306 = vmatprep.mubr.f32.mxu0 %v2975
        %3307 = vmatmul.mubr.f32.gmra.mrb[0].mxu0 %v2974
        %v3308 = vpop.f32.mrb[0].mxu0
        %v3309 = vadd.f32 %v3082, %v3308
        %v3310 = vpop.f32.mrb[0].mxu0
        %v3311 = vadd.f32 %v3082, %v3310
        %3312 = vmatprep.mubr.f32.mxu0 %v2977
        %3313 = vmatmul.mubr.f32.gmra.mrb[0].mxu0 %v2976
        %v3314 = vpop.f32.mrb[0].mxu0
        %v3315 = vadd.f32 %v3087, %v3314
        %v3316 = vpop.f32.mrb[0].mxu0
        %v3317 = vadd.f32 %v3087, %v3316
        %3318 = vmatprep.mubr.f32.mxu0 %v2979
        %3319 = vmatmul.mubr.f32.gmra.mrb[0].mxu0 %v2978
        %v3320 = vpop.f32.mrb[0].mxu0
        %v3321 = vadd.f32 %v3092, %v3320
        %v3322 = vpop.f32.mrb[0].mxu0
        %v3323 = vadd.f32 %v3092, %v3322
        %3324 = vmatprep.mubr.f32.mxu0 %v2981
        %3325 = vmatmul.mubr.f32.gmra.mrb[0].mxu0 %v2980
        %v3326 = vpop.f32.mrb[0].mxu0
        %v3327 = vadd.f32 %v3097, %v3326
        %v3328 = vpop.f32.mrb[0].mxu0
        %v3329 = vadd.f32 %v3097, %v3328
        %3330 = vmatprep.mubr.f32.mxu0 %v2983
        %3331 = vmatmul.mubr.f32.gmra.mrb[0].mxu0 %v2982
        %v3332 = vpop.f32.mrb[0].mxu0
        %v3333 = vadd.f32 %v3102, %v3332
        %v3334 = vpop.f32.mrb[0].mxu0
        %v3335 = vadd.f32 %v3102, %v3334
        %3336 = vmatprep.mubr.f32.mxu0 %v2985
        %3337 = vmatmul.mubr.f32.gmra.mrb[0].mxu0 %v2984
        %v3338 = vpop.f32.mrb[0].mxu0
        %v3339 = vadd.f32 %v3107, %v3338
        %v3340 = vpop.f32.mrb[0].mxu0
        %v3341 = vadd.f32 %v3107, %v3340
        %3342 = vmatprep.mubr.f32.mxu0 %v2987
        %3343 = vmatmul.mubr.f32.gmra.mrb[0].mxu0 %v2986
        %v3344 = vpop.f32.mrb[0].mxu0
        %v3345 = vadd.f32 %v3112, %v3344
        %v3346 = vpop.f32.mrb[0].mxu0
        %v3347 = vadd.f32 %v3112, %v3346
        %3348 = vmatprep.mubr.f32.mxu0 %v2989
        %3349 = vmatmul.mubr.f32.gmra.mrb[0].mxu0 %v2988
        %v3350 = vpop.f32.mrb[0].mxu0
        %v3351 = vadd.f32 %v3117, %v3350
        %v3352 = vpop.f32.mrb[0].mxu0
        %v3353 = vadd.f32 %v3117, %v3352
        %3354 = vmatprep.mubr.f32.mxu0 %v2991
        %3355 = vmatmul.mubr.f32.gmra.mrb[0].mxu0 %v2990
        %v3356 = vpop.f32.mrb[0].mxu0
        %v3357 = vadd.f32 %v3122, %v3356
        %v3358 = vpop.f32.mrb[0].mxu0
        %v3359 = vadd.f32 %v3122, %v3358
        %3360 = vmatprep.mubr.f32.mxu0 %v2993
        %3361 = vmatmul.mubr.f32.gmra.mrb[0].mxu0 %v2992
        %v3362 = vpop.f32.mrb[0].mxu0
        %v3363 = vadd.f32 %v3127, %v3362
        %v3364 = vpop.f32.mrb[0].mxu0
        %v3365 = vadd.f32 %v3127, %v3364
        %3366 = vmatprep.mubr.f32.mxu0 %v2995
        %3367 = vmatmul.mubr.f32.gmra.mrb[0].mxu0 %v2994
        %v3368 = vpop.f32.mrb[0].mxu0
        %v3369 = vadd.f32 %v3132, %v3368
        %v3370 = vpop.f32.mrb[0].mxu0
        %v3371 = vadd.f32 %v3132, %v3370
        %3372 = vmatprep.mubr.f32.mxu0 %v2997
        %3373 = vmatmul.mubr.f32.gmra.mrb[0].mxu0 %v2996
        %v3374 = vpop.f32.mrb[0].mxu0
        %v3375 = vadd.f32 %v3137, %v3374
        %v3376 = vpop.f32.mrb[0].mxu0
        %v3377 = vadd.f32 %v3137, %v3376
        %3378 = vmatprep.mubr.f32.mxu0 %v2999
        %3379 = vmatmul.mubr.f32.gmra.mrb[0].mxu0 %v2998
        %v3380 = vpop.f32.mrb[0].mxu0
        %v3381 = vadd.f32 %v3142, %v3380
        %v3382 = vpop.f32.mrb[0].mxu0
        %v3383 = vadd.f32 %v3142, %v3382
        %3384 = vmatprep.mubr.f32.mxu0 %v3001
        %3385 = vmatmul.mubr.f32.gmra.mrb[0].mxu0 %v3000
        %v3386 = vpop.f32.mrb[0].mxu0
        %v3387 = vadd.f32 %v3147, %v3386
        %v3388 = vpop.f32.mrb[0].mxu0
        %v3389 = vadd.f32 %v3147, %v3388
        %3390 = vmatprep.mubr.f32.mxu0 %v3003
        %3391 = vmatmul.mubr.f32.gmra.mrb[0].mxu0 %v3002
        %v3392 = vpop.f32.mrb[0].mxu0
        %v3393 = vadd.f32 %v3152, %v3392
        %v3394 = vpop.f32.mrb[0].mxu0
        %v3395 = vadd.f32 %v3152, %v3394
        %3396 = vmatprep.mubr.f32.mxu0 %v3005
        %3397 = vmatmul.mubr.f32.gmra.mrb[0].mxu0 %v3004
        %v3398 = vpop.f32.mrb[0].mxu0
        %v3399 = vadd.f32 %v3157, %v3398
        %v3400 = vpop.f32.mrb[0].mxu0
        %v3401 = vadd.f32 %v3157, %v3400
        %3402 = vmatprep.mubr.f32.mxu0 %v3007
        %3403 = vmatmul.mubr.f32.gmra.mrb[0].mxu0 %v3006
        %v3404 = vpop.f32.mrb[0].mxu0
        %v3405 = vadd.f32 %v3162, %v3404
        %v3406 = vpop.f32.mrb[0].mxu0
        %v3407 = vadd.f32 %v3162, %v3406
        %3408 = vmatprep.mubr.f32.mxu0 %v3009
        %3409 = vmatmul.mubr.f32.gmra.mrb[0].mxu0 %v3008
        %v3410 = vpop.f32.mrb[0].mxu0
        %v3411 = vadd.f32 %v3167, %v3410
        %v3412 = vpop.f32.mrb[0].mxu0
        %v3413 = vadd.f32 %v3167, %v3412
        %3414 = vmatprep.mubr.f32.mxu0 %v3011
        %3415 = vmatmul.mubr.f32.gmra.mrb[0].mxu0 %v3010
        %v3416 = vpop.f32.mrb[0].mxu0
        %v3417 = vadd.f32 %v3172, %v3416
        %v3418 = vpop.f32.mrb[0].mxu0
        %v3419 = vadd.f32 %v3172, %v3418
        %3420 = vmatprep.mubr.f32.mxu0 %v3013
        %3421 = vmatmul.mubr.f32.gmra.mrb[0].mxu0 %v3012
        %v3422 = vpop.f32.mrb[0].mxu0
        %v3423 = vadd.f32 %v3177, %v3422
        %v3424 = vpop.f32.mrb[0].mxu0
        %v3425 = vadd.f32 %v3177, %v3424
        %3426 = vmatprep.mubr.f32.mxu0 %v3015
        %3427 = vmatmul.mubr.f32.gmra.mrb[0].mxu0 %v3014
        %v3428 = vpop.f32.mrb[0].mxu0
        %v3429 = vadd.f32 %v3182, %v3428
        %v3430 = vpop.f32.mrb[0].mxu0
        %v3431 = vadd.f32 %v3182, %v3430
        %3432 = vmatprep.mubr.f32.mxu0 %v3017
        %3433 = vmatmul.mubr.f32.gmra.mrb[0].mxu0 %v3016
        %v3434 = vpop.f32.mrb[0].mxu0
        %v3435 = vadd.f32 %v3187, %v3434
        %v3436 = vpop.f32.mrb[0].mxu0
        %v3437 = vadd.f32 %v3187, %v3436
        %3438 = vmatprep.mubr.f32.mxu0 %v3019
        %3439 = vmatmul.mubr.f32.gmra.mrb[0].mxu0 %v3018
        %v3440 = vpop.f32.mrb[0].mxu0
        %v3441 = vadd.f32 %v3192, %v3440
        %v3442 = vpop.f32.mrb[0].mxu0
        %v3443 = vadd.f32 %v3192, %v3442
        %3444 = vmatprep.mubr.f32.mxu0 %v3021
        %3445 = vmatmul.mubr.f32.gmra.mrb[0].mxu0 %v3020
        %v3446 = vpop.f32.mrb[0].mxu0
        %v3447 = vadd.f32 %v3197, %v3446
        %v3448 = vpop.f32.mrb[0].mxu0
        %v3449 = vadd.f32 %v3197, %v3448
        %3450 = vmatprep.mubr.f32.mxu0 %v3023
        %3451 = vmatmul.mubr.f32.gmra.mrb[0].mxu0 %v3022
        %v3452 = vpop.f32.mrb[0].mxu0
        %v3453 = vadd.f32 %v3202, %v3452
        %v3454 = vpop.f32.mrb[0].mxu0
        %v3455 = vadd.f32 %v3202, %v3454
        %3456 = vmatprep.mubr.f32.mxu0 %v3025
        %3457 = vmatmul.mubr.f32.gmra.mrb[0].mxu0 %v3024
        %v3458 = vpop.f32.mrb[0].mxu0
        %v3459 = vadd.f32 %v3207, %v3458
        %v3460 = vpop.f32.mrb[0].mxu0
        %v3461 = vadd.f32 %v3207, %v3460
        %3462 = vmatprep.mubr.f32.mxu0 %v3027
        %3463 = vmatmul.mubr.f32.gmra.mrb[0].mxu0 %v3026
        %v3464 = vpop.f32.mrb[0].mxu0
        %v3465 = vadd.f32 %v3212, %v3464
        %v3466 = vpop.f32.mrb[0].mxu0
        %v3467 = vadd.f32 %v3212, %v3466
        %3468 = vmatprep.mubr.f32.mxu0 %v3029
        %3469 = vmatmul.mubr.f32.gmra.mrb[0].mxu0 %v3028
        %v3470 = vpop.f32.mrb[0].mxu0
        %v3471 = vadd.f32 %v3217, %v3470
        %v3472 = vpop.f32.mrb[0].mxu0
        %v3473 = vadd.f32 %v3217, %v3472
        %3474 = vmatprep.mubr.f32.mxu0 %v3031
        %3475 = vmatmul.mubr.f32.gmra.mrb[0].mxu0 %v3030
        %v3476 = vpop.f32.mrb[0].mxu0
        %v3477 = vadd.f32 %v3222, %v3476
        %v3478 = vpop.f32.mrb[0].mxu0
        %v3479 = vadd.f32 %v3222, %v3478
        %3480 = vdwg.mxu0
        %3481 = vmatprep.subr.mxu0 %v2843
        %3482 = vmatpush1.msra.mxu0 %v2842
        %3483 = vmatprep.subr.mxu0 %v2847
        %3484 = vmatpush1.msra.mxu0 %v2846
        %3485 = vmatprep.subr.mxu0 %v2851
        %3486 = vmatpush1.msra.mxu0 %v2850
        %3487 = vmatprep.subr.mxu0 %v2855
        %3488 = vmatpush1.msra.mxu0 %v2854
        %3489 = vmatprep.subr.mxu0 %v2859
        %3490 = vmatpush1.msra.mxu0 %v2858
        %3491 = vmatprep.subr.mxu0 %v2863
        %3492 = vmatpush1.msra.mxu0 %v2862
        %3493 = vmatprep.subr.mxu0 %v2867
        %3494 = vmatpush1.msra.mxu0 %v2866
        %3495 = vmatprep.subr.mxu0 %v2871
        %3496 = vmatpush1.msra.mxu0 %v2870
        %3497 = vmatprep.subr.mxu0 %v2875
        %3498 = vmatpush1.msra.mxu0 %v2874
        %3499 = vmatprep.subr.mxu0 %v2879
        %3500 = vmatpush1.msra.mxu0 %v2878
        %3501 = vmatprep.subr.mxu0 %v2883
        %3502 = vmatpush1.msra.mxu0 %v2882
        %3503 = vmatprep.subr.mxu0 %v2887
        %3504 = vmatpush1.msra.mxu0 %v2886
        %3505 = vmatprep.subr.mxu0 %v2891
        %3506 = vmatpush1.msra.mxu0 %v2890
        %3507 = vmatprep.subr.mxu0 %v2895
        %3508 = vmatpush1.msra.mxu0 %v2894
        %3509 = vmatprep.subr.mxu0 %v2899
        %3510 = vmatpush1.msra.mxu0 %v2898
        %3511 = vmatprep.subr.mxu0 %v2903
        %3512 = vmatpush1.msra.mxu0 %v2902
        %3513 = vmatprep.subr.mxu0 %v2907
        %3514 = vmatpush1.msra.mxu0 %v2906
        %3515 = vmatprep.subr.mxu0 %v2911
        %3516 = vmatpush1.msra.mxu0 %v2910
        %3517 = vmatprep.subr.mxu0 %v2915
        %3518 = vmatpush1.msra.mxu0 %v2914
        %3519 = vmatprep.subr.mxu0 %v2919
        %3520 = vmatpush1.msra.mxu0 %v2918
        %3521 = vmatprep.subr.mxu0 %v2923
        %3522 = vmatpush1.msra.mxu0 %v2922
        %3523 = vmatprep.subr.mxu0 %v2927
        %3524 = vmatpush1.msra.mxu0 %v2926
        %3525 = vmatprep.subr.mxu0 %v2931
        %3526 = vmatpush1.msra.mxu0 %v2930
        %3527 = vmatprep.subr.mxu0 %v2935
        %3528 = vmatpush1.msra.mxu0 %v2934
        %3529 = vmatprep.subr.mxu0 %v2939
        %3530 = vmatpush1.msra.mxu0 %v2938
        %3531 = vmatprep.subr.mxu0 %v2943
        %3532 = vmatpush1.msra.mxu0 %v2942
        %3533 = vmatprep.subr.mxu0 %v2947
        %3534 = vmatpush1.msra.mxu0 %v2946
        %3535 = vmatprep.subr.mxu0 %v2951
        %3536 = vmatpush1.msra.mxu0 %v2950
        %3537 = vmatprep.subr.mxu0 %v2955
        %3538 = vmatpush1.msra.mxu0 %v2954
        %3539 = vmatprep.subr.mxu0 %v2959
        %3540 = vmatpush1.msra.mxu0 %v2958
        %3541 = vmatprep.subr.mxu0 %v2963
        %3542 = vmatpush1.msra.mxu0 %v2962
        %3543 = vmatprep.subr.mxu0 %v2967
        %3544 = vmatpush1.msra.mxu0 %v2966
        %3545 = vmatprep.mubr.f32.mxu0 %v2969
        %3546 = vmatmul.mubr.f32.gmra.mrb[0].mxu0 %v2968
        %v3547 = vpop.f32.mrb[0].mxu0
        %v3548 = vadd.f32 %v3067, %v3547
        %v3549 = vpop.f32.mrb[0].mxu0
        %v3550 = vadd.f32 %v3067, %v3549
        %3551 = vmatprep.mubr.f32.mxu0 %v2971
        %3552 = vmatmul.mubr.f32.gmra.mrb[0].mxu0 %v2970
        %v3553 = vpop.f32.mrb[0].mxu0
        %v3554 = vadd.f32 %v3072, %v3553
        %v3555 = vpop.f32.mrb[0].mxu0
        %v3556 = vadd.f32 %v3072, %v3555
        %3557 = vmatprep.mubr.f32.mxu0 %v2973
        %3558 = vmatmul.mubr.f32.gmra.mrb[0].mxu0 %v2972
        %v3559 = vpop.f32.mrb[0].mxu0
        %v3560 = vadd.f32 %v3077, %v3559
        %v3561 = vpop.f32.mrb[0].mxu0
        %v3562 = vadd.f32 %v3077, %v3561
        %3563 = vmatprep.mubr.f32.mxu0 %v2975
        %3564 = vmatmul.mubr.f32.gmra.mrb[0].mxu0 %v2974
        %v3565 = vpop.f32.mrb[0].mxu0
        %v3566 = vadd.f32 %v3082, %v3565
        %v3567 = vpop.f32.mrb[0].mxu0
        %v3568 = vadd.f32 %v3082, %v3567
        %3569 = vmatprep.mubr.f32.mxu0 %v2977
        %3570 = vmatmul.mubr.f32.gmra.mrb[0].mxu0 %v2976
        %v3571 = vpop.f32.mrb[0].mxu0
        %v3572 = vadd.f32 %v3087, %v3571
        %v3573 = vpop.f32.mrb[0].mxu0
        %v3574 = vadd.f32 %v3087, %v3573
        %3575 = vmatprep.mubr.f32.mxu0 %v2979
        %3576 = vmatmul.mubr.f32.gmra.mrb[0].mxu0 %v2978
        %v3577 = vpop.f32.mrb[0].mxu0
        %v3578 = vadd.f32 %v3092, %v3577
        %v3579 = vpop.f32.mrb[0].mxu0
        %v3580 = vadd.f32 %v3092, %v3579
        %3581 = vmatprep.mubr.f32.mxu0 %v2981
        %3582 = vmatmul.mubr.f32.gmra.mrb[0].mxu0 %v2980
        %v3583 = vpop.f32.mrb[0].mxu0
        %v3584 = vadd.f32 %v3097, %v3583
        %v3585 = vpop.f32.mrb[0].mxu0
        %v3586 = vadd.f32 %v3097, %v3585
        %3587 = vmatprep.mubr.f32.mxu0 %v2983
        %3588 = vmatmul.mubr.f32.gmra.mrb[0].mxu0 %v2982
        %v3589 = vpop.f32.mrb[0].mxu0
        %v3590 = vadd.f32 %v3102, %v3589
        %v3591 = vpop.f32.mrb[0].mxu0
        %v3592 = vadd.f32 %v3102, %v3591
        %3593 = vmatprep.mubr.f32.mxu0 %v2985
        %3594 = vmatmul.mubr.f32.gmra.mrb[0].mxu0 %v2984
        %v3595 = vpop.f32.mrb[0].mxu0
        %v3596 = vadd.f32 %v3107, %v3595
        %v3597 = vpop.f32.mrb[0].mxu0
        %v3598 = vadd.f32 %v3107, %v3597
        %3599 = vmatprep.mubr.f32.mxu0 %v2987
        %3600 = vmatmul.mubr.f32.gmra.mrb[0].mxu0 %v2986
        %v3601 = vpop.f32.mrb[0].mxu0
        %v3602 = vadd.f32 %v3112, %v3601
        %v3603 = vpop.f32.mrb[0].mxu0
        %v3604 = vadd.f32 %v3112, %v3603
        %3605 = vmatprep.mubr.f32.mxu0 %v2989
        %3606 = vmatmul.mubr.f32.gmra.mrb[0].mxu0 %v2988
        %v3607 = vpop.f32.mrb[0].mxu0
        %v3608 = vadd.f32 %v3117, %v3607
        %v3609 = vpop.f32.mrb[0].mxu0
        %v3610 = vadd.f32 %v3117, %v3609
        %3611 = vmatprep.mubr.f32.mxu0 %v2991
        %3612 = vmatmul.mubr.f32.gmra.mrb[0].mxu0 %v2990
        %v3613 = vpop.f32.mrb[0].mxu0
        %v3614 = vadd.f32 %v3122, %v3613
        %v3615 = vpop.f32.mrb[0].mxu0
        %v3616 = vadd.f32 %v3122, %v3615
        %3617 = vmatprep.mubr.f32.mxu0 %v2993
        %3618 = vmatmul.mubr.f32.gmra.mrb[0].mxu0 %v2992
        %v3619 = vpop.f32.mrb[0].mxu0
        %v3620 = vadd.f32 %v3127, %v3619
        %v3621 = vpop.f32.mrb[0].mxu0
        %v3622 = vadd.f32 %v3127, %v3621
        %3623 = vmatprep.mubr.f32.mxu0 %v2995
        %3624 = vmatmul.mubr.f32.gmra.mrb[0].mxu0 %v2994
        %v3625 = vpop.f32.mrb[0].mxu0
        %v3626 = vadd.f32 %v3132, %v3625
        %v3627 = vpop.f32.mrb[0].mxu0
        %v3628 = vadd.f32 %v3132, %v3627
        %3629 = vmatprep.mubr.f32.mxu0 %v2997
        %3630 = vmatmul.mubr.f32.gmra.mrb[0].mxu0 %v2996
        %v3631 = vpop.f32.mrb[0].mxu0
        %v3632 = vadd.f32 %v3137, %v3631
        %v3633 = vpop.f32.mrb[0].mxu0
        %v3634 = vadd.f32 %v3137, %v3633
        %3635 = vmatprep.mubr.f32.mxu0 %v2999
        %3636 = vmatmul.mubr.f32.gmra.mrb[0].mxu0 %v2998
        %v3637 = vpop.f32.mrb[0].mxu0
        %v3638 = vadd.f32 %v3142, %v3637
        %v3639 = vpop.f32.mrb[0].mxu0
        %v3640 = vadd.f32 %v3142, %v3639
        %3641 = vmatprep.mubr.f32.mxu0 %v3001
        %3642 = vmatmul.mubr.f32.gmra.mrb[0].mxu0 %v3000
        %v3643 = vpop.f32.mrb[0].mxu0
        %v3644 = vadd.f32 %v3147, %v3643
        %v3645 = vpop.f32.mrb[0].mxu0
        %v3646 = vadd.f32 %v3147, %v3645
        %3647 = vmatprep.mubr.f32.mxu0 %v3003
        %3648 = vmatmul.mubr.f32.gmra.mrb[0].mxu0 %v3002
        %v3649 = vpop.f32.mrb[0].mxu0
        %v3650 = vadd.f32 %v3152, %v3649
        %v3651 = vpop.f32.mrb[0].mxu0
        %v3652 = vadd.f32 %v3152, %v3651
        %3653 = vmatprep.mubr.f32.mxu0 %v3005
        %3654 = vmatmul.mubr.f32.gmra.mrb[0].mxu0 %v3004
        %v3655 = vpop.f32.mrb[0].mxu0
        %v3656 = vadd.f32 %v3157, %v3655
        %v3657 = vpop.f32.mrb[0].mxu0
        %v3658 = vadd.f32 %v3157, %v3657
        %3659 = vmatprep.mubr.f32.mxu0 %v3007
        %3660 = vmatmul.mubr.f32.gmra.mrb[0].mxu0 %v3006
        %v3661 = vpop.f32.mrb[0].mxu0
        %v3662 = vadd.f32 %v3162, %v3661
        %v3663 = vpop.f32.mrb[0].mxu0
        %v3664 = vadd.f32 %v3162, %v3663
        %3665 = vmatprep.mubr.f32.mxu0 %v3009
        %3666 = vmatmul.mubr.f32.gmra.mrb[0].mxu0 %v3008
        %v3667 = vpop.f32.mrb[0].mxu0
        %v3668 = vadd.f32 %v3167, %v3667
        %v3669 = vpop.f32.mrb[0].mxu0
        %v3670 = vadd.f32 %v3167, %v3669
        %3671 = vmatprep.mubr.f32.mxu0 %v3011
        %3672 = vmatmul.mubr.f32.gmra.mrb[0].mxu0 %v3010
        %v3673 = vpop.f32.mrb[0].mxu0
        %v3674 = vadd.f32 %v3172, %v3673
        %v3675 = vpop.f32.mrb[0].mxu0
        %v3676 = vadd.f32 %v3172, %v3675
        %3677 = vmatprep.mubr.f32.mxu0 %v3013
        %3678 = vmatmul.mubr.f32.gmra.mrb[0].mxu0 %v3012
        %v3679 = vpop.f32.mrb[0].mxu0
        %v3680 = vadd.f32 %v3177, %v3679
        %v3681 = vpop.f32.mrb[0].mxu0
        %v3682 = vadd.f32 %v3177, %v3681
        %3683 = vmatprep.mubr.f32.mxu0 %v3015
        %3684 = vmatmul.mubr.f32.gmra.mrb[0].mxu0 %v3014
        %v3685 = vpop.f32.mrb[0].mxu0
        %v3686 = vadd.f32 %v3182, %v3685
        %v3687 = vpop.f32.mrb[0].mxu0
        %v3688 = vadd.f32 %v3182, %v3687
        %3689 = vmatprep.mubr.f32.mxu0 %v3017
        %3690 = vmatmul.mubr.f32.gmra.mrb[0].mxu0 %v3016
        %v3691 = vpop.f32.mrb[0].mxu0
        %v3692 = vadd.f32 %v3187, %v3691
        %v3693 = vpop.f32.mrb[0].mxu0
        %v3694 = vadd.f32 %v3187, %v3693
        %3695 = vmatprep.mubr.f32.mxu0 %v3019
        %3696 = vmatmul.mubr.f32.gmra.mrb[0].mxu0 %v3018
        %v3697 = vpop.f32.mrb[0].mxu0
        %v3698 = vadd.f32 %v3192, %v3697
        %v3699 = vpop.f32.mrb[0].mxu0
        %v3700 = vadd.f32 %v3192, %v3699
        %3701 = vmatprep.mubr.f32.mxu0 %v3021
        %3702 = vmatmul.mubr.f32.gmra.mrb[0].mxu0 %v3020
        %v3703 = vpop.f32.mrb[0].mxu0
        %v3704 = vadd.f32 %v3197, %v3703
        %v3705 = vpop.f32.mrb[0].mxu0
        %v3706 = vadd.f32 %v3197, %v3705
        %3707 = vmatprep.mubr.f32.mxu0 %v3023
        %3708 = vmatmul.mubr.f32.gmra.mrb[0].mxu0 %v3022
        %v3709 = vpop.f32.mrb[0].mxu0
        %v3710 = vadd.f32 %v3202, %v3709
        %v3711 = vpop.f32.mrb[0].mxu0
        %v3712 = vadd.f32 %v3202, %v3711
        %3713 = vmatprep.mubr.f32.mxu0 %v3025
        %3714 = vmatmul.mubr.f32.gmra.mrb[0].mxu0 %v3024
        %v3715 = vpop.f32.mrb[0].mxu0
        %v3716 = vadd.f32 %v3207, %v3715
        %v3717 = vpop.f32.mrb[0].mxu0
        %v3718 = vadd.f32 %v3207, %v3717
        %3719 = vmatprep.mubr.f32.mxu0 %v3027
        %3720 = vmatmul.mubr.f32.gmra.mrb[0].mxu0 %v3026
        %v3721 = vpop.f32.mrb[0].mxu0
        %v3722 = vadd.f32 %v3212, %v3721
        %v3723 = vpop.f32.mrb[0].mxu0
        %v3724 = vadd.f32 %v3212, %v3723
        %3725 = vmatprep.mubr.f32.mxu0 %v3029
        %3726 = vmatmul.mubr.f32.gmra.mrb[0].mxu0 %v3028
        %v3727 = vpop.f32.mrb[0].mxu0
        %v3728 = vadd.f32 %v3217, %v3727
        %v3729 = vpop.f32.mrb[0].mxu0
        %v3730 = vadd.f32 %v3217, %v3729
        %3731 = vmatprep.mubr.f32.mxu0 %v3031
        %3732 = vmatmul.mubr.f32.gmra.mrb[0].mxu0 %v3030
        %v3733 = vpop.f32.mrb[0].mxu0
        %v3734 = vadd.f32 %v3222, %v3733
        %v3735 = vpop.f32.mrb[0].mxu0
        %v3736 = vadd.f32 %v3222, %v3735
        %3737 = vdwg.mxu0
        %v3738 = vmax.f32 %v3291, 0.0
        %v3739 = vmax.f32 %v3293, 0.0
        %v3740 = vmax.f32 %v3548, 0.0
        %v3741 = vmax.f32 %v3550, 0.0
        %v3742 = vmax.f32 %v3297, 0.0
        %v3743 = vmax.f32 %v3299, 0.0
        %v3744 = vmax.f32 %v3554, 0.0
        %v3745 = vmax.f32 %v3556, 0.0
        %v3746 = vmax.f32 %v3303, 0.0
        %v3747 = vmax.f32 %v3305, 0.0
        %v3748 = vmax.f32 %v3560, 0.0
        %v3749 = vmax.f32 %v3562, 0.0
        %v3750 = vmax.f32 %v3309, 0.0
        %v3751 = vmax.f32 %v3311, 0.0
        %v3752 = vmax.f32 %v3566, 0.0
        %v3753 = vmax.f32 %v3568, 0.0
        %v3754 = vmax.f32 %v3315, 0.0
        %v3755 = vmax.f32 %v3317, 0.0
        %v3756 = vmax.f32 %v3572, 0.0
        %v3757 = vmax.f32 %v3574, 0.0
        %v3758 = vmax.f32 %v3321, 0.0
        %v3759 = vmax.f32 %v3323, 0.0
        %v3760 = vmax.f32 %v3578, 0.0
        %v3761 = vmax.f32 %v3580, 0.0
        %v3762 = vmax.f32 %v3327, 0.0
        %v3763 = vmax.f32 %v3329, 0.0
        %v3764 = vmax.f32 %v3584, 0.0
        %v3765 = vmax.f32 %v3586, 0.0
        %v3766 = vmax.f32 %v3333, 0.0
        %v3767 = vmax.f32 %v3335, 0.0
        %v3768 = vmax.f32 %v3590, 0.0
        %v3769 = vmax.f32 %v3592, 0.0
        %v3770 = vmax.f32 %v3339, 0.0
        %v3771 = vmax.f32 %v3341, 0.0
        %v3772 = vmax.f32 %v3596, 0.0
        %v3773 = vmax.f32 %v3598, 0.0
        %v3774 = vmax.f32 %v3345, 0.0
        %v3775 = vmax.f32 %v3347, 0.0
        %v3776 = vmax.f32 %v3602, 0.0
        %v3777 = vmax.f32 %v3604, 0.0
        %v3778 = vmax.f32 %v3351, 0.0
        %v3779 = vmax.f32 %v3353, 0.0
        %v3780 = vmax.f32 %v3608, 0.0
        %v3781 = vmax.f32 %v3610, 0.0
        %v3782 = vmax.f32 %v3357, 0.0
        %v3783 = vmax.f32 %v3359, 0.0
        %v3784 = vmax.f32 %v3614, 0.0
        %v3785 = vmax.f32 %v3616, 0.0
        %v3786 = vmax.f32 %v3363, 0.0
        %v3787 = vmax.f32 %v3365, 0.0
        %v3788 = vmax.f32 %v3620, 0.0
        %v3789 = vmax.f32 %v3622, 0.0
        %v3790 = vmax.f32 %v3369, 0.0
        %v3791 = vmax.f32 %v3371, 0.0
        %v3792 = vmax.f32 %v3626, 0.0
        %v3793 = vmax.f32 %v3628, 0.0
        %v3794 = vmax.f32 %v3375, 0.0
        %v3795 = vmax.f32 %v3377, 0.0
        %v3796 = vmax.f32 %v3632, 0.0
        %v3797 = vmax.f32 %v3634, 0.0
        %v3798 = vmax.f32 %v3381, 0.0
        %v3799 = vmax.f32 %v3383, 0.0
        %v3800 = vmax.f32 %v3638, 0.0
        %v3801 = vmax.f32 %v3640, 0.0
        %v3802 = vmax.f32 %v3387, 0.0
        %v3803 = vmax.f32 %v3389, 0.0
        %v3804 = vmax.f32 %v3644, 0.0
        %v3805 = vmax.f32 %v3646, 0.0
        %v3806 = vmax.f32 %v3393, 0.0
        %v3807 = vmax.f32 %v3395, 0.0
        %v3808 = vmax.f32 %v3650, 0.0
        %v3809 = vmax.f32 %v3652, 0.0
        %v3810 = vmax.f32 %v3399, 0.0
        %v3811 = vmax.f32 %v3401, 0.0
        %v3812 = vmax.f32 %v3656, 0.0
        %v3813 = vmax.f32 %v3658, 0.0
        %v3814 = vmax.f32 %v3405, 0.0
        %v3815 = vmax.f32 %v3407, 0.0
        %v3816 = vmax.f32 %v3662, 0.0
        %v3817 = vmax.f32 %v3664, 0.0
        %v3818 = vmax.f32 %v3411, 0.0
        %v3819 = vmax.f32 %v3413, 0.0
        %v3820 = vmax.f32 %v3668, 0.0
        %v3821 = vmax.f32 %v3670, 0.0
        %v3822 = vmax.f32 %v3417, 0.0
        %v3823 = vmax.f32 %v3419, 0.0
        %v3824 = vmax.f32 %v3674, 0.0
        %v3825 = vmax.f32 %v3676, 0.0
        %v3826 = vmax.f32 %v3423, 0.0
        %v3827 = vmax.f32 %v3425, 0.0
        %v3828 = vmax.f32 %v3680, 0.0
        %v3829 = vmax.f32 %v3682, 0.0
        %v3830 = vmax.f32 %v3429, 0.0
        %v3831 = vmax.f32 %v3431, 0.0
        %v3832 = vmax.f32 %v3686, 0.0
        %v3833 = vmax.f32 %v3688, 0.0
        %v3834 = vmax.f32 %v3435, 0.0
        %v3835 = vmax.f32 %v3437, 0.0
        %v3836 = vmax.f32 %v3692, 0.0
        %v3837 = vmax.f32 %v3694, 0.0
        %v3838 = vmax.f32 %v3441, 0.0
        %v3839 = vmax.f32 %v3443, 0.0
        %v3840 = vmax.f32 %v3698, 0.0
        %v3841 = vmax.f32 %v3700, 0.0
        %v3842 = vmax.f32 %v3447, 0.0
        %v3843 = vmax.f32 %v3449, 0.0
        %v3844 = vmax.f32 %v3704, 0.0
        %v3845 = vmax.f32 %v3706, 0.0
        %v3846 = vmax.f32 %v3453, 0.0
        %v3847 = vmax.f32 %v3455, 0.0
        %v3848 = vmax.f32 %v3710, 0.0
        %v3849 = vmax.f32 %v3712, 0.0
        %v3850 = vmax.f32 %v3459, 0.0
        %v3851 = vmax.f32 %v3461, 0.0
        %v3852 = vmax.f32 %v3716, 0.0
        %v3853 = vmax.f32 %v3718, 0.0
        %v3854 = vmax.f32 %v3465, 0.0
        %v3855 = vmax.f32 %v3467, 0.0
        %v3856 = vmax.f32 %v3722, 0.0
        %v3857 = vmax.f32 %v3724, 0.0
        %v3858 = vmax.f32 %v3471, 0.0
        %v3859 = vmax.f32 %v3473, 0.0
        %v3860 = vmax.f32 %v3728, 0.0
        %v3861 = vmax.f32 %v3730, 0.0
        %v3862 = vmax.f32 %v3477, 0.0
        %v3863 = vmax.f32 %v3479, 0.0
        %v3864 = vmax.f32 %v3734, 0.0
        %v3865 = vmax.f32 %v3736, 0.0
        %v3866 = vld [vmem:[%s9] sm:$0xff]
        %v3867 = vld [vmem:[%s9 + $0x8] sm:$0xff]
        %v3868 = vld [vmem:[%s9 + $0x10] sm:$0xff]
        %v3869 = vld [vmem:[%s9 + $0x18] sm:$0xff]
        %v3870 = vld [vmem:[%s9 + $0x20] sm:$0xff]
        %v3871 = vld [vmem:[%s9 + $0x28] sm:$0xff]
        %v3872 = vld [vmem:[%s9 + $0x30] sm:$0xff]
        %v3873 = vld [vmem:[%s9 + $0x38] sm:$0xff]
        %v3874 = vld [vmem:[%s9 + $0x40] sm:$0xff]
        %v3875 = vld [vmem:[%s9 + $0x48] sm:$0xff]
        %v3876 = vld [vmem:[%s9 + $0x50] sm:$0xff]
        %v3877 = vld [vmem:[%s9 + $0x58] sm:$0xff]
        %v3878 = vld [vmem:[%s9 + $0x60] sm:$0xff]
        %v3879 = vld [vmem:[%s9 + $0x68] sm:$0xff]
        %v3880 = vld [vmem:[%s9 + $0x70] sm:$0xff]
        %v3881 = vld [vmem:[%s9 + $0x78] sm:$0xff]
        %v3882 = vld [vmem:[%s9 + $0x80] sm:$0xff]
        %v3883 = vld [vmem:[%s9 + $0x88] sm:$0xff]
        %v3884 = vld [vmem:[%s9 + $0x90] sm:$0xff]
        %v3885 = vld [vmem:[%s9 + $0x98] sm:$0xff]
        %v3886 = vld [vmem:[%s9 + $0xa0] sm:$0xff]
        %v3887 = vld [vmem:[%s9 + $0xa8] sm:$0xff]
        %v3888 = vld [vmem:[%s9 + $0xb0] sm:$0xff]
        %v3889 = vld [vmem:[%s9 + $0xb8] sm:$0xff]
        %v3890 = vld [vmem:[%s9 + $0xc0] sm:$0xff]
        %v3891 = vld [vmem:[%s9 + $0xc8] sm:$0xff]
        %v3892 = vld [vmem:[%s9 + $0xd0] sm:$0xff]
        %v3893 = vld [vmem:[%s9 + $0xd8] sm:$0xff]
        %v3894 = vld [vmem:[%s9 + $0xe0] sm:$0xff]
        %v3895 = vld [vmem:[%s9 + $0xe8] sm:$0xff]
        %v3896 = vld [vmem:[%s9 + $0xf0] sm:$0xff]
        %v3897 = vld [vmem:[%s9 + $0xf8] sm:$0xff]
        %v3898 = vld [vmem:[%s10] sm:$0xff]
        %v3899 = vld [vmem:[%s10 + $0x8] sm:$0xff]
        %v3900 = vld [vmem:[%s10 + $0x10] sm:$0xff]
        %v3901 = vld [vmem:[%s10 + $0x18] sm:$0xff]
        %v3902 = vld [vmem:[%s10 + $0x20] sm:$0xff]
        %v3903 = vld [vmem:[%s10 + $0x28] sm:$0xff]
        %v3904 = vld [vmem:[%s10 + $0x30] sm:$0xff]
        %v3905 = vld [vmem:[%s10 + $0x38] sm:$0xff]
        %v3906 = vld [vmem:[%s10 + $0x40] sm:$0xff]
        %v3907 = vld [vmem:[%s10 + $0x48] sm:$0xff]
        %v3908 = vld [vmem:[%s10 + $0x50] sm:$0xff]
        %v3909 = vld [vmem:[%s10 + $0x58] sm:$0xff]
        %v3910 = vld [vmem:[%s10 + $0x60] sm:$0xff]
        %v3911 = vld [vmem:[%s10 + $0x68] sm:$0xff]
        %v3912 = vld [vmem:[%s10 + $0x70] sm:$0xff]
        %v3913 = vld [vmem:[%s10 + $0x78] sm:$0xff]
        %3915 = vset.pattern.permute.xlu0 0
        %3916 = vperm.xlu0 %3915, %v3898
        %v3917 = vpop.permute.xlu0 %3916
        %3920 = vset.pattern.permute.xlu0 0
        %3921 = vperm.xlu0 %3920, %v3899
        %v3922 = vpop.permute.xlu0 %3921
        %3925 = vset.pattern.permute.xlu0 0
        %3926 = vperm.xlu0 %3925, %v3900
        %v3927 = vpop.permute.xlu0 %3926
        %3930 = vset.pattern.permute.xlu0 0
        %3931 = vperm.xlu0 %3930, %v3901
        %v3932 = vpop.permute.xlu0 %3931
        %3935 = vset.pattern.permute.xlu0 0
        %3936 = vperm.xlu0 %3935, %v3902
        %v3937 = vpop.permute.xlu0 %3936
        %3940 = vset.pattern.permute.xlu0 0
        %3941 = vperm.xlu0 %3940, %v3903
        %v3942 = vpop.permute.xlu0 %3941
        %3945 = vset.pattern.permute.xlu0 0
        %3946 = vperm.xlu0 %3945, %v3904
        %v3947 = vpop.permute.xlu0 %3946
        %3950 = vset.pattern.permute.xlu0 0
        %3951 = vperm.xlu0 %3950, %v3905
        %v3952 = vpop.permute.xlu0 %3951
        %3955 = vset.pattern.permute.xlu0 0
        %3956 = vperm.xlu0 %3955, %v3906
        %v3957 = vpop.permute.xlu0 %3956
        %3960 = vset.pattern.permute.xlu0 0
        %3961 = vperm.xlu0 %3960, %v3907
        %v3962 = vpop.permute.xlu0 %3961
        %3965 = vset.pattern.permute.xlu0 0
        %3966 = vperm.xlu0 %3965, %v3908
        %v3967 = vpop.permute.xlu0 %3966
        %3970 = vset.pattern.permute.xlu0 0
        %3971 = vperm.xlu0 %3970, %v3909
        %v3972 = vpop.permute.xlu0 %3971
        %3975 = vset.pattern.permute.xlu0 0
        %3976 = vperm.xlu0 %3975, %v3910
        %v3977 = vpop.permute.xlu0 %3976
        %3980 = vset.pattern.permute.xlu0 0
        %3981 = vperm.xlu0 %3980, %v3911
        %v3982 = vpop.permute.xlu0 %3981
        %3985 = vset.pattern.permute.xlu0 0
        %3986 = vperm.xlu0 %3985, %v3912
        %v3987 = vpop.permute.xlu0 %3986
        %3990 = vset.pattern.permute.xlu0 0
        %3991 = vperm.xlu0 %3990, %v3913
        %v3992 = vpop.permute.xlu0 %3991
        %3994 = vmatprep.subr.mxu0 %v3739
        %3995 = vmatpush1.msra.mxu0 %v3738
        %3996 = vmatprep.subr.mxu0 %v3743
        %3997 = vmatpush1.msra.mxu0 %v3742
        %3998 = vmatprep.subr.mxu0 %v3747
        %3999 = vmatpush1.msra.mxu0 %v3746
        %4000 = vmatprep.subr.mxu0 %v3751
        %4001 = vmatpush1.msra.mxu0 %v3750
        %4002 = vmatprep.subr.mxu0 %v3755
        %4003 = vmatpush1.msra.mxu0 %v3754
        %4004 = vmatprep.subr.mxu0 %v3759
        %4005 = vmatpush1.msra.mxu0 %v3758
        %4006 = vmatprep.subr.mxu0 %v3763
        %4007 = vmatpush1.msra.mxu0 %v3762
        %4008 = vmatprep.subr.mxu0 %v3767
        %4009 = vmatpush1.msra.mxu0 %v3766
        %4010 = vmatprep.subr.mxu0 %v3771
        %4011 = vmatpush1.msra.mxu0 %v3770
        %4012 = vmatprep.subr.mxu0 %v3775
        %4013 = vmatpush1.msra.mxu0 %v3774
        %4014 = vmatprep.subr.mxu0 %v3779
        %4015 = vmatpush1.msra.mxu0 %v3778
        %4016 = vmatprep.subr.mxu0 %v3783
        %4017 = vmatpush1.msra.mxu0 %v3782
        %4018 = vmatprep.subr.mxu0 %v3787
        %4019 = vmatpush1.msra.mxu0 %v3786
        %4020 = vmatprep.subr.mxu0 %v3791
        %4021 = vmatpush1.msra.mxu0 %v3790
        %4022 = vmatprep.subr.mxu0 %v3795
        %4023 = vmatpush1.msra.mxu0 %v3794
        %4024 = vmatprep.subr.mxu0 %v3799
        %4025 = vmatpush1.msra.mxu0 %v3798
        %4026 = vmatprep.subr.mxu0 %v3803
        %4027 = vmatpush1.msra.mxu0 %v3802
        %4028 = vmatprep.subr.mxu0 %v3807
        %4029 = vmatpush1.msra.mxu0 %v3806
        %4030 = vmatprep.subr.mxu0 %v3811
        %4031 = vmatpush1.msra.mxu0 %v3810
        %4032 = vmatprep.subr.mxu0 %v3815
        %4033 = vmatpush1.msra.mxu0 %v3814
        %4034 = vmatprep.subr.mxu0 %v3819
        %4035 = vmatpush1.msra.mxu0 %v3818
        %4036 = vmatprep.subr.mxu0 %v3823
        %4037 = vmatpush1.msra.mxu0 %v3822
        %4038 = vmatprep.subr.mxu0 %v3827
        %4039 = vmatpush1.msra.mxu0 %v3826
        %4040 = vmatprep.subr.mxu0 %v3831
        %4041 = vmatpush1.msra.mxu0 %v3830
        %4042 = vmatprep.subr.mxu0 %v3835
        %4043 = vmatpush1.msra.mxu0 %v3834
        %4044 = vmatprep.subr.mxu0 %v3839
        %4045 = vmatpush1.msra.mxu0 %v3838
        %4046 = vmatprep.subr.mxu0 %v3843
        %4047 = vmatpush1.msra.mxu0 %v3842
        %4048 = vmatprep.subr.mxu0 %v3847
        %4049 = vmatpush1.msra.mxu0 %v3846
        %4050 = vmatprep.subr.mxu0 %v3851
        %4051 = vmatpush1.msra.mxu0 %v3850
        %4052 = vmatprep.subr.mxu0 %v3855
        %4053 = vmatpush1.msra.mxu0 %v3854
        %4054 = vmatprep.subr.mxu0 %v3859
        %4055 = vmatpush1.msra.mxu0 %v3858
        %4056 = vmatprep.subr.mxu0 %v3863
        %4057 = vmatpush1.msra.mxu0 %v3862
        %4058 = vmatprep.mubr.f32.mxu0 %v3867
        %4059 = vmatmul.mubr.f32.gmra.mrb[0].mxu0 %v3866
        %v4060 = vpop.f32.mrb[0].mxu0
        %v4061 = vadd.f32 %v3917, %v4060
        %v4062 = vpop.f32.mrb[0].mxu0
        %v4063 = vadd.f32 %v3917, %v4062
        %4064 = vmatprep.mubr.f32.mxu0 %v3869
        %4065 = vmatmul.mubr.f32.gmra.mrb[0].mxu0 %v3868
        %v4066 = vpop.f32.mrb[0].mxu0
        %v4067 = vadd.f32 %v3922, %v4066
        %v4068 = vpop.f32.mrb[0].mxu0
        %v4069 = vadd.f32 %v3922, %v4068
        %4070 = vmatprep.mubr.f32.mxu0 %v3871
        %4071 = vmatmul.mubr.f32.gmra.mrb[0].mxu0 %v3870
        %v4072 = vpop.f32.mrb[0].mxu0
        %v4073 = vadd.f32 %v3927, %v4072
        %v4074 = vpop.f32.mrb[0].mxu0
        %v4075 = vadd.f32 %v3927, %v4074
        %4076 = vmatprep.mubr.f32.mxu0 %v3873
        %4077 = vmatmul.mubr.f32.gmra.mrb[0].mxu0 %v3872
        %v4078 = vpop.f32.mrb[0].mxu0
        %v4079 = vadd.f32 %v3932, %v4078
        %v4080 = vpop.f32.mrb[0].mxu0
        %v4081 = vadd.f32 %v3932, %v4080
        %4082 = vmatprep.mubr.f32.mxu0 %v3875
        %4083 = vmatmul.mubr.f32.gmra.mrb[0].mxu0 %v3874
        %v4084 = vpop.f32.mrb[0].mxu0
        %v4085 = vadd.f32 %v3937, %v4084
        %v4086 = vpop.f32.mrb[0].mxu0
        %v4087 = vadd.f32 %v3937, %v4086
        %4088 = vmatprep.mubr.f32.mxu0 %v3877
        %4089 = vmatmul.mubr.f32.gmra.mrb[0].mxu0 %v3876
        %v4090 = vpop.f32.mrb[0].mxu0
        %v4091 = vadd.f32 %v3942, %v4090
        %v4092 = vpop.f32.mrb[0].mxu0
        %v4093 = vadd.f32 %v3942, %v4092
        %4094 = vmatprep.mubr.f32.mxu0 %v3879
        %4095 = vmatmul.mubr.f32.gmra.mrb[0].mxu0 %v3878
        %v4096 = vpop.f32.mrb[0].mxu0
        %v4097 = vadd.f32 %v3947, %v4096
        %v4098 = vpop.f32.mrb[0].mxu0
        %v4099 = vadd.f32 %v3947, %v4098
        %4100 = vmatprep.mubr.f32.mxu0 %v3881
        %4101 = vmatmul.mubr.f32.gmra.mrb[0].mxu0 %v3880
        %v4102 = vpop.f32.mrb[0].mxu0
        %v4103 = vadd.f32 %v3952, %v4102
        %v4104 = vpop.f32.mrb[0].mxu0
        %v4105 = vadd.f32 %v3952, %v4104
        %4106 = vmatprep.mubr.f32.mxu0 %v3883
        %4107 = vmatmul.mubr.f32.gmra.mrb[0].mxu0 %v3882
        %v4108 = vpop.f32.mrb[0].mxu0
        %v4109 = vadd.f32 %v3957, %v4108
        %v4110 = vpop.f32.mrb[0].mxu0
        %v4111 = vadd.f32 %v3957, %v4110
        %4112 = vmatprep.mubr.f32.mxu0 %v3885
        %4113 = vmatmul.mubr.f32.gmra.mrb[0].mxu0 %v3884
        %v4114 = vpop.f32.mrb[0].mxu0
        %v4115 = vadd.f32 %v3962, %v4114
        %v4116 = vpop.f32.mrb[0].mxu0
        %v4117 = vadd.f32 %v3962, %v4116
        %4118 = vmatprep.mubr.f32.mxu0 %v3887
        %4119 = vmatmul.mubr.f32.gmra.mrb[0].mxu0 %v3886
        %v4120 = vpop.f32.mrb[0].mxu0
        %v4121 = vadd.f32 %v3967, %v4120
        %v4122 = vpop.f32.mrb[0].mxu0
        %v4123 = vadd.f32 %v3967, %v4122
        %4124 = vmatprep.mubr.f32.mxu0 %v3889
        %4125 = vmatmul.mubr.f32.gmra.mrb[0].mxu0 %v3888
        %v4126 = vpop.f32.mrb[0].mxu0
        %v4127 = vadd.f32 %v3972, %v4126
        %v4128 = vpop.f32.mrb[0].mxu0
        %v4129 = vadd.f32 %v3972, %v4128
        %4130 = vmatprep.mubr.f32.mxu0 %v3891
        %4131 = vmatmul.mubr.f32.gmra.mrb[0].mxu0 %v3890
        %v4132 = vpop.f32.mrb[0].mxu0
        %v4133 = vadd.f32 %v3977, %v4132
        %v4134 = vpop.f32.mrb[0].mxu0
        %v4135 = vadd.f32 %v3977, %v4134
        %4136 = vmatprep.mubr.f32.mxu0 %v3893
        %4137 = vmatmul.mubr.f32.gmra.mrb[0].mxu0 %v3892
        %v4138 = vpop.f32.mrb[0].mxu0
        %v4139 = vadd.f32 %v3982, %v4138
        %v4140 = vpop.f32.mrb[0].mxu0
        %v4141 = vadd.f32 %v3982, %v4140
        %4142 = vmatprep.mubr.f32.mxu0 %v3895
        %4143 = vmatmul.mubr.f32.gmra.mrb[0].mxu0 %v3894
        %v4144 = vpop.f32.mrb[0].mxu0
        %v4145 = vadd.f32 %v3987, %v4144
        %v4146 = vpop.f32.mrb[0].mxu0
        %v4147 = vadd.f32 %v3987, %v4146
        %4148 = vmatprep.mubr.f32.mxu0 %v3897
        %4149 = vmatmul.mubr.f32.gmra.mrb[0].mxu0 %v3896
        %v4150 = vpop.f32.mrb[0].mxu0
        %v4151 = vadd.f32 %v3992, %v4150
        %v4152 = vpop.f32.mrb[0].mxu0
        %v4153 = vadd.f32 %v3992, %v4152
        %4154 = vdwg.mxu0
        %4155 = vmatprep.subr.mxu0 %v3741
        %4156 = vmatpush1.msra.mxu0 %v3740
        %4157 = vmatprep.subr.mxu0 %v3745
        %4158 = vmatpush1.msra.mxu0 %v3744
        %4159 = vmatprep.subr.mxu0 %v3749
        %4160 = vmatpush1.msra.mxu0 %v3748
        %4161 = vmatprep.subr.mxu0 %v3753
        %4162 = vmatpush1.msra.mxu0 %v3752
        %4163 = vmatprep.subr.mxu0 %v3757
        %4164 = vmatpush1.msra.mxu0 %v3756
        %4165 = vmatprep.subr.mxu0 %v3761
        %4166 = vmatpush1.msra.mxu0 %v3760
        %4167 = vmatprep.subr.mxu0 %v3765
        %4168 = vmatpush1.msra.mxu0 %v3764
        %4169 = vmatprep.subr.mxu0 %v3769
        %4170 = vmatpush1.msra.mxu0 %v3768
        %4171 = vmatprep.subr.mxu0 %v3773
        %4172 = vmatpush1.msra.mxu0 %v3772
        %4173 = vmatprep.subr.mxu0 %v3777
        %4174 = vmatpush1.msra.mxu0 %v3776
        %4175 = vmatprep.subr.mxu0 %v3781
        %4176 = vmatpush1.msra.mxu0 %v3780
        %4177 = vmatprep.subr.mxu0 %v3785
        %4178 = vmatpush1.msra.mxu0 %v3784
        %4179 = vmatprep.subr.mxu0 %v3789
        %4180 = vmatpush1.msra.mxu0 %v3788
        %4181 = vmatprep.subr.mxu0 %v3793
        %4182 = vmatpush1.msra.mxu0 %v3792
        %4183 = vmatprep.subr.mxu0 %v3797
        %4184 = vmatpush1.msra.mxu0 %v3796
        %4185 = vmatprep.subr.mxu0 %v3801
        %4186 = vmatpush1.msra.mxu0 %v3800
        %4187 = vmatprep.subr.mxu0 %v3805
        %4188 = vmatpush1.msra.mxu0 %v3804
        %4189 = vmatprep.subr.mxu0 %v3809
        %4190 = vmatpush1.msra.mxu0 %v3808
        %4191 = vmatprep.subr.mxu0 %v3813
        %4192 = vmatpush1.msra.mxu0 %v3812
        %4193 = vmatprep.subr.mxu0 %v3817
        %4194 = vmatpush1.msra.mxu0 %v3816
        %4195 = vmatprep.subr.mxu0 %v3821
        %4196 = vmatpush1.msra.mxu0 %v3820
        %4197 = vmatprep.subr.mxu0 %v3825
        %4198 = vmatpush1.msra.mxu0 %v3824
        %4199 = vmatprep.subr.mxu0 %v3829
        %4200 = vmatpush1.msra.mxu0 %v3828
        %4201 = vmatprep.subr.mxu0 %v3833
        %4202 = vmatpush1.msra.mxu0 %v3832
        %4203 = vmatprep.subr.mxu0 %v3837
        %4204 = vmatpush1.msra.mxu0 %v3836
        %4205 = vmatprep.subr.mxu0 %v3841
        %4206 = vmatpush1.msra.mxu0 %v3840
        %4207 = vmatprep.subr.mxu0 %v3845
        %4208 = vmatpush1.msra.mxu0 %v3844
        %4209 = vmatprep.subr.mxu0 %v3849
        %4210 = vmatpush1.msra.mxu0 %v3848
        %4211 = vmatprep.subr.mxu0 %v3853
        %4212 = vmatpush1.msra.mxu0 %v3852
        %4213 = vmatprep.subr.mxu0 %v3857
        %4214 = vmatpush1.msra.mxu0 %v3856
        %4215 = vmatprep.subr.mxu0 %v3861
        %4216 = vmatpush1.msra.mxu0 %v3860
        %4217 = vmatprep.subr.mxu0 %v3865
        %4218 = vmatpush1.msra.mxu0 %v3864
        %4219 = vmatprep.mubr.f32.mxu0 %v3867
        %4220 = vmatmul.mubr.f32.gmra.mrb[0].mxu0 %v3866
        %v4221 = vpop.f32.mrb[0].mxu0
        %v4222 = vadd.f32 %v3917, %v4221
        %v4223 = vpop.f32.mrb[0].mxu0
        %v4224 = vadd.f32 %v3917, %v4223
        %4225 = vmatprep.mubr.f32.mxu0 %v3869
        %4226 = vmatmul.mubr.f32.gmra.mrb[0].mxu0 %v3868
        %v4227 = vpop.f32.mrb[0].mxu0
        %v4228 = vadd.f32 %v3922, %v4227
        %v4229 = vpop.f32.mrb[0].mxu0
        %v4230 = vadd.f32 %v3922, %v4229
        %4231 = vmatprep.mubr.f32.mxu0 %v3871
        %4232 = vmatmul.mubr.f32.gmra.mrb[0].mxu0 %v3870
        %v4233 = vpop.f32.mrb[0].mxu0
        %v4234 = vadd.f32 %v3927, %v4233
        %v4235 = vpop.f32.mrb[0].mxu0
        %v4236 = vadd.f32 %v3927, %v4235
        %4237 = vmatprep.mubr.f32.mxu0 %v3873
        %4238 = vmatmul.mubr.f32.gmra.mrb[0].mxu0 %v3872
        %v4239 = vpop.f32.mrb[0].mxu0
        %v4240 = vadd.f32 %v3932, %v4239
        %v4241 = vpop.f32.mrb[0].mxu0
        %v4242 = vadd.f32 %v3932, %v4241
        %4243 = vmatprep.mubr.f32.mxu0 %v3875
        %4244 = vmatmul.mubr.f32.gmra.mrb[0].mxu0 %v3874
        %v4245 = vpop.f32.mrb[0].mxu0
        %v4246 = vadd.f32 %v3937, %v4245
        %v4247 = vpop.f32.mrb[0].mxu0
        %v4248 = vadd.f32 %v3937, %v4247
        %4249 = vmatprep.mubr.f32.mxu0 %v3877
        %4250 = vmatmul.mubr.f32.gmra.mrb[0].mxu0 %v3876
        %v4251 = vpop.f32.mrb[0].mxu0
        %v4252 = vadd.f32 %v3942, %v4251
        %v4253 = vpop.f32.mrb[0].mxu0
        %v4254 = vadd.f32 %v3942, %v4253
        %4255 = vmatprep.mubr.f32.mxu0 %v3879
        %4256 = vmatmul.mubr.f32.gmra.mrb[0].mxu0 %v3878
        %v4257 = vpop.f32.mrb[0].mxu0
        %v4258 = vadd.f32 %v3947, %v4257
        %v4259 = vpop.f32.mrb[0].mxu0
        %v4260 = vadd.f32 %v3947, %v4259
        %4261 = vmatprep.mubr.f32.mxu0 %v3881
        %4262 = vmatmul.mubr.f32.gmra.mrb[0].mxu0 %v3880
        %v4263 = vpop.f32.mrb[0].mxu0
        %v4264 = vadd.f32 %v3952, %v4263
        %v4265 = vpop.f32.mrb[0].mxu0
        %v4266 = vadd.f32 %v3952, %v4265
        %4267 = vmatprep.mubr.f32.mxu0 %v3883
        %4268 = vmatmul.mubr.f32.gmra.mrb[0].mxu0 %v3882
        %v4269 = vpop.f32.mrb[0].mxu0
        %v4270 = vadd.f32 %v3957, %v4269
        %v4271 = vpop.f32.mrb[0].mxu0
        %v4272 = vadd.f32 %v3957, %v4271
        %4273 = vmatprep.mubr.f32.mxu0 %v3885
        %4274 = vmatmul.mubr.f32.gmra.mrb[0].mxu0 %v3884
        %v4275 = vpop.f32.mrb[0].mxu0
        %v4276 = vadd.f32 %v3962, %v4275
        %v4277 = vpop.f32.mrb[0].mxu0
        %v4278 = vadd.f32 %v3962, %v4277
        %4279 = vmatprep.mubr.f32.mxu0 %v3887
        %4280 = vmatmul.mubr.f32.gmra.mrb[0].mxu0 %v3886
        %v4281 = vpop.f32.mrb[0].mxu0
        %v4282 = vadd.f32 %v3967, %v4281
        %v4283 = vpop.f32.mrb[0].mxu0
        %v4284 = vadd.f32 %v3967, %v4283
        %4285 = vmatprep.mubr.f32.mxu0 %v3889
        %4286 = vmatmul.mubr.f32.gmra.mrb[0].mxu0 %v3888
        %v4287 = vpop.f32.mrb[0].mxu0
        %v4288 = vadd.f32 %v3972, %v4287
        %v4289 = vpop.f32.mrb[0].mxu0
        %v4290 = vadd.f32 %v3972, %v4289
        %4291 = vmatprep.mubr.f32.mxu0 %v3891
        %4292 = vmatmul.mubr.f32.gmra.mrb[0].mxu0 %v3890
        %v4293 = vpop.f32.mrb[0].mxu0
        %v4294 = vadd.f32 %v3977, %v4293
        %v4295 = vpop.f32.mrb[0].mxu0
        %v4296 = vadd.f32 %v3977, %v4295
        %4297 = vmatprep.mubr.f32.mxu0 %v3893
        %4298 = vmatmul.mubr.f32.gmra.mrb[0].mxu0 %v3892
        %v4299 = vpop.f32.mrb[0].mxu0
        %v4300 = vadd.f32 %v3982, %v4299
        %v4301 = vpop.f32.mrb[0].mxu0
        %v4302 = vadd.f32 %v3982, %v4301
        %4303 = vmatprep.mubr.f32.mxu0 %v3895
        %4304 = vmatmul.mubr.f32.gmra.mrb[0].mxu0 %v3894
        %v4305 = vpop.f32.mrb[0].mxu0
        %v4306 = vadd.f32 %v3987, %v4305
        %v4307 = vpop.f32.mrb[0].mxu0
        %v4308 = vadd.f32 %v3987, %v4307
        %4309 = vmatprep.mubr.f32.mxu0 %v3897
        %4310 = vmatmul.mubr.f32.gmra.mrb[0].mxu0 %v3896
        %v4311 = vpop.f32.mrb[0].mxu0
        %v4312 = vadd.f32 %v3992, %v4311
        %v4313 = vpop.f32.mrb[0].mxu0
        %v4314 = vadd.f32 %v3992, %v4313
        %4315 = vdwg.mxu0
        %v4316 = vmul.f32 %v4061, %v4222
        %v4317 = vmul.f32 %v4063, %v4224
        %v4318 = vmul.f32 %v4067, %v4228
        %v4319 = vmul.f32 %v4069, %v4230
        %v4320 = vmul.f32 %v4073, %v4234
        %v4321 = vmul.f32 %v4075, %v4236
        %v4322 = vmul.f32 %v4079, %v4240
        %v4323 = vmul.f32 %v4081, %v4242
        %v4324 = vmul.f32 %v4085, %v4246
        %v4325 = vmul.f32 %v4087, %v4248
        %v4326 = vmul.f32 %v4091, %v4252
        %v4327 = vmul.f32 %v4093, %v4254
        %v4328 = vmul.f32 %v4097, %v4258
        %v4329 = vmul.f32 %v4099, %v4260
        %v4330 = vmul.f32 %v4103, %v4264
        %v4331 = vmul.f32 %v4105, %v4266
        %v4332 = vmul.f32 %v4109, %v4270
        %v4333 = vmul.f32 %v4111, %v4272
        %v4334 = vmul.f32 %v4115, %v4276
        %v4335 = vmul.f32 %v4117, %v4278
        %v4336 = vmul.f32 %v4121, %v4282
        %v4337 = vmul.f32 %v4123, %v4284
        %v4338 = vmul.f32 %v4127, %v4288
        %v4339 = vmul.f32 %v4129, %v4290
        %v4340 = vmul.f32 %v4133, %v4294
        %v4341 = vmul.f32 %v4135, %v4296
        %v4342 = vmul.f32 %v4139, %v4300
        %v4343 = vmul.f32 %v4141, %v4302
        %v4344 = vmul.f32 %v4145, %v4306
        %v4345 = vmul.f32 %v4147, %v4308
        %v4346 = vmul.f32 %v4151, %v4312
        %v4347 = vmul.f32 %v4153, %v4314
        %v4348 = vadd.f32 %v4316, %v4318
        %v4349 = vadd.f32 %v4348, %v4320
        %v4350 = vadd.f32 %v4349, %v4322
        %v4351 = vadd.f32 %v4350, %v4324
        %v4352 = vadd.f32 %v4351, %v4326
        %v4353 = vadd.f32 %v4352, %v4328
        %v4354 = vadd.f32 %v4353, %v4330
        %v4355 = vadd.f32 %v4354, %v4332
        %v4356 = vadd.f32 %v4355, %v4334
        %v4357 = vadd.f32 %v4356, %v4336
        %v4358 = vadd.f32 %v4357, %v4338
        %v4359 = vadd.f32 %v4358, %v4340
        %v4360 = vadd.f32 %v4359, %v4342
        %v4361 = vadd.f32 %v4360, %v4344
        %v4362 = vadd.f32 %v4361, %v4346
        %v4363 = vrot.slane %v4362, 4
        %v4364 = vadd.f32 %v4362, %v4363
        %v4365 = vrot.slane %v4364, 2
        %v4366 = vadd.f32 %v4364, %v4365
        %v4367 = vrot.slane %v4366, 1
        %v4368 = vadd.f32 %v4366, %v4367
        %v4369 = vadd.f32 %v4317, %v4319
        %v4370 = vadd.f32 %v4369, %v4321
        %v4371 = vadd.f32 %v4370, %v4323
        %v4372 = vadd.f32 %v4371, %v4325
        %v4373 = vadd.f32 %v4372, %v4327
        %v4374 = vadd.f32 %v4373, %v4329
        %v4375 = vadd.f32 %v4374, %v4331
        %v4376 = vadd.f32 %v4375, %v4333
        %v4377 = vadd.f32 %v4376, %v4335
        %v4378 = vadd.f32 %v4377, %v4337
        %v4379 = vadd.f32 %v4378, %v4339
        %v4380 = vadd.f32 %v4379, %v4341
        %v4381 = vadd.f32 %v4380, %v4343
        %v4382 = vadd.f32 %v4381, %v4345
        %v4383 = vadd.f32 %v4382, %v4347
        %v4384 = vrot.slane %v4383, 4
        %v4385 = vadd.f32 %v4383, %v4384
        %v4386 = vrot.slane %v4385, 2
        %v4387 = vadd.f32 %v4385, %v4386
        %v4388 = vrot.slane %v4387, 1
        %v4389 = vadd.f32 %v4387, %v4388
        %v4392 = vcombine.low %v4368, %v4389
        %v4394 = vunpack.c.l.s4 1966171168
        %v4395 = vunpack.c.0.s8 %v4394
        %v4396 = vlaneseq
        %v4397 = vshrl.u32 %v4396, 7
        %v4398 = vsub.s32 %v4395, %v4397
        %v4399 = vrot.slane %v4392, %v4398
        %v4401 = vunpack.c.l.s4 1966171168
        %v4402 = vunpack.c.0.s8 %v4401
        %v4403 = vlaneseq
        %v4404 = vshrl.u32 %v4403, 7
        %v4405 = vsub.s32 %v4402, %v4404
        %v4406 = vrot.slane %v4399, %v4405
        %v4408 = vlaneseq
        %vm4409 = vcmp.ge.s32.totalorder %v4408, 0
        %vm4410 = vcmp.lt.s32.totalorder %v4408, 256
        %vm4411 = vmand %vm4409, %vm4410
        %4412 = vst.msk [vmem:[%s377] sm:$0x3] %vm4411, %v4406
        %s4413 = sand.u32 %s269, 1
        %s4414 = scalar_lea.sflag [#allocation3], %s4413
        %s4415 = sand.u32 %s269, 1
        %s4416 = smul.addr %s4415, 2
        %s4417 = scalar_lea.vmem [#allocation2], %s4416
        // Predicated region
        $region65: #{model_std_forward.1} parent=63 // pred_check
          %p4418 = pneg %p279
        $region66: #{model_std_forward.1} parent=63 // pred_check_branch
          %4420 = sbr.rel (%p4418) target = $region68
        $region67: #{model_std_forward.1} parent=63 // pred_region
          %s4422 = ssub.s32 32, 32
          %4423 = vsyncadd %s4414, %s4422
          %s4424 = smul.addr %s25, 2
          %s4425 = smul.addr %s4424, 16
          %s4426 = scalar_lea.hbm %s11, %s4425
          %s4428 = sshll.u32 %s4417, 4
          %s4429 = int_to_ptr.vmem [resolvable:$true] %s4428
          %4431 = dma.vmem_to_hbm [thread:$0]  %s4429, 32, %s4426, %s4414
        $region68: #{model_std_forward.1} parent=63 // pred_fallthru
          _
      $region64: #{model_std_forward.1} parent=5 // pred_fallthru
        _
      %p4432 = scmp.le.s32.totalorder 2, %s20
      // Predicated region
      $region69: #{model_std_forward.1} parent=5 // pred_check
        %p4433 = pneg %p4432
      $region70: #{model_std_forward.1} parent=5 // pred_check_branch
        %4435 = sbr.rel (%p4433) target = $region72
      $region71: #{model_std_forward.1} parent=5 // pred_region
        %s4436 = ssub.s32 %s20, 2
        // Predicated region
        $region73: #{model_std_forward.1} parent=71 // pred_check
          %p4437 = pneg %p285
        $region74: #{model_std_forward.1} parent=71 // pred_check_branch
          %4439 = sbr.rel (%p4437) target = $region76
        $region75: #{model_std_forward.1} parent=71 // pred_region
          %s4440 = sand.u32 %s270, 1
          %s4441 = scalar_lea.sflag [#allocation3], %s4440
          %s4442 = sand.u32 %s270, 1
          %s4443 = smul.addr %s4442, 2
          %s4444 = scalar_lea.vmem [#allocation2], %s4443
          %4445 = dma.done %s4441, 32
        $region76: #{model_std_forward.1} parent=71 // pred_fallthru
          _
      $region72: #{model_std_forward.1} parent=5 // pred_fallthru
        _
    $region6: #{model_std_forward.1} parent=1 // loop_footer
      %s24 = sadd.s32 1, %s20
    $region7: #{model_std_forward.1} parent=1 // loop_footer_branch
      %19 = sbr.rel target = $region3
    $region8: #{model_std_forward.1} parent=1 // loop_exit
      _
    %4446 = vsyncpa [#allocation3], 1
    %s4447 = scalar_lea.sflag [#allocation3], 1
    %4448 = vsyncpa %s4447, 1

</llo_original>
